<compile_context>
chip_gen: v7x
topology: tpu7x:2x2x1
jax: 0.10.0
libtpu: 0.0.40
codegen_flags: <defaults>
</compile_context>

<pallas_src>
import functools

import jax
import jax.numpy as jnp
from jax import lax
from jax.experimental import pallas as pl
from jax.experimental.pallas import tpu as pltpu

BLK = 33                   # fixed by stride=33 and PixelShuffle(33)
D = BLK * BLK              # 1089 flattened patch length
D_PAD = 1152               # 9 * 128 -> lane-dense blocks / stores
MATMUL_DTYPE = jnp.bfloat16
DEFAULT_ROW_TILE = 512     # MXU/DMA-friendly row tile (adaptively clamped below)


def _round_up(x, m):
    return ((x + m - 1) // m) * m


def _vmem_limit_bytes():
    """Generation-aware VMEM limit: 3/4 of physical, capped at 96 MiB."""
    cap = 64 * 1024 * 1024
    try:
        cap = int(pltpu.get_tpu_info().vmem_capacity_bytes)
    except Exception:
        pass
    return min(96 * 1024 * 1024, (cap * 3) // 4)


# ------------------------------ Pallas kernel --------------------------------

def _fused_kernel(gammas_ref, x_ref, phiA_ref, phiB_ref, out_ref, *, num_layers):
    """Sampling (PhiTb) + all BasicBlock layers for one row tile, fully in VMEM.

    x_ref:    (TR, D_PAD) bf16 image blocks
    phiA_ref: (D_PAD, M_PAD) bf16   (v @ phiA == conv(x, PhiW, stride=33))
    phiB_ref: (M_PAD, D_PAD) bf16   (t @ phiB == PixelShuffle(conv1x1(t, PhiTW)))
    gammas_ref: (num_layers,) f32 in SMEM, gamma_i = beta_i * lambda_i
    """
    phiA = phiA_ref[...]
    phiB = phiB_ref[...]

    # PhiTb = (x @ Phi^T) @ Phi, also the initial x of the ISTA iteration.
    t0 = jnp.dot(x_ref[...], phiA, preferred_element_type=jnp.float32)
    phitb = jnp.dot(t0.astype(MATMUL_DTYPE), phiB,
                    preferred_element_type=jnp.float32)           # (TR, D_PAD) f32

    xk = phitb
    for i in range(num_layers):                                   # static unroll
        gamma = gammas_ref[i]
        # r = PhiT Phi xk via the factored form (two small matmuls).
        t = jnp.dot(xk.astype(MATMUL_DTYPE), phiA,
                    preferred_element_type=jnp.float32)            # (TR, M_PAD)
        r = jnp.dot(t.astype(MATMUL_DTYPE), phiB,
                    preferred_element_type=jnp.float32)            # (TR, D_PAD)
        # TODO(synk): TransNet (window-attention denoiser, img_size=264, uses
        # soft_thr) is not in the provided snippet; with the identity placeholder
        # z = 2q - x_input, the BasicBlock reduces algebraically to
        #   out = x_input + beta*lambda * (PhiTb - PhiTPhi(x_input)).
        xk = xk + gamma * (phitb - r)

    out_ref[...] = xk


# ------------------------------- glue (JAX) -----------------------------------

def img_to_blocks(x):
    """(N, 1, H, W) -> (N*hb*wb, 33*33), row-major patches."""
    N, _, H, W = x.shape
    hb, wb = H // BLK, W // BLK
    m = x.reshape(N, hb, BLK, wb, BLK).transpose(0, 1, 3, 2, 4)
    return m.reshape(N * hb * wb, D)


def blocks_to_img(m, N, H, W):
    """(N*hb*wb, 33*33) -> (N, 1, H, W)."""
    hb, wb = H // BLK, W // BLK
    x = m.reshape(N, hb, wb, BLK, BLK).transpose(0, 1, 3, 2, 4)
    return x.reshape(N, 1, H, W)


def drtransnet_forward(x, Phi, Phi_scale, lambdas, betas,
                       row_tile_max=DEFAULT_ROW_TILE):
    """Pallas implementation of DrTransNet.forward (TransNet -> identity)."""
    N, _, H, W = x.shape
    M = Phi.shape[0]
    M_PAD = _round_up(M, 128)
    num_layers = int(lambdas.shape[0])

    rows = N * (H // BLK) * (W // BLK)
    # Row tile: multiple of 16 (bf16 sublane packing), and chosen so the row grid
    # has >= 2 balanced steps where rows allow (keeps both v7x TensorCores busy).
    row_tile_max = max(16, (row_tile_max // 16) * 16)
    row_tile = min(row_tile_max, _round_up(max(pl.cdiv(rows, 2), 1), 16))
    rows_p = _round_up(rows, row_tile)

    # MyBinarize(Phi) * Phi_scale   (MySign maps >= 0 -> +1, < 0 -> -1)
    Phi_eff = (Phi_scale * jnp.where(Phi >= 0.0, 1.0, -1.0)).astype(jnp.float32)

    # Padded bf16 operators; padding rows/cols are zero so the D_PAD tail of the
    # row tensors stays exactly zero through every layer and is cropped at the end.
    phiA = jnp.zeros((D_PAD, M_PAD), MATMUL_DTYPE).at[:D, :M].set(
        Phi_eff.T.astype(MATMUL_DTYPE))
    phiB = jnp.zeros((M_PAD, D_PAD), MATMUL_DTYPE).at[:M, :D].set(
        Phi_eff.astype(MATMUL_DTYPE))

    # gamma_i = beta_i * lambda_i (identity-TransNet simplification of the tail)
    gammas = (jnp.asarray(betas, jnp.float32) *
              jnp.asarray(lambdas, jnp.float32)).astype(jnp.float32)

    # Layout transform done ONCE for the whole net; bf16 storage is loss-free
    # since x is only consumed through a bf16 matmul.
    x_blk = img_to_blocks(x)
    x_blk = jnp.pad(x_blk, ((0, rows_p - rows), (0, D_PAD - D))).astype(MATMUL_DTYPE)

    row_in_spec = pl.BlockSpec((row_tile, D_PAD), lambda i: (i, 0))
    row_out_spec = pl.BlockSpec((row_tile, D_PAD), lambda i: (i, 0))
    vmem_full = pl.BlockSpec(memory_space=pltpu.MemorySpace.VMEM)
    smem_spec = pl.BlockSpec(memory_space=pltpu.MemorySpace.SMEM)

    kernel = functools.partial(_fused_kernel, num_layers=num_layers)

    xk = pl.pallas_call(
        kernel,
        out_shape=jax.ShapeDtypeStruct((rows_p, D_PAD), jnp.float32),
        grid_spec=pltpu.PrefetchScalarGridSpec(
            num_scalar_prefetch=0,
            grid=(rows_p // row_tile,),
            in_specs=[smem_spec, row_in_spec, vmem_full, vmem_full],
            out_specs=row_out_spec,
        ),
        compiler_params=pltpu.CompilerParams(
            dimension_semantics=("parallel",),
            vmem_limit_bytes=_vmem_limit_bytes(),
        ),
    )(gammas, x_blk, phiA, phiB)

    x_final = blocks_to_img(xk[:rows, :D], N, H, W)
    return x_final, Phi_eff


# --------------------------- pure-JAX reference -------------------------------

def _conv(x, w, stride):
    return lax.conv_general_dilated(
        x.astype(MATMUL_DTYPE), w, (stride, stride), "VALID",
        dimension_numbers=("NCHW", "OIHW", "NCHW"),
        preferred_element_type=jnp.float32)


def _pixel_shuffle_33(t):
    N, _, hb, wb = t.shape
    t = t.reshape(N, 1, BLK, BLK, hb, wb).transpose(0, 1, 4, 2, 5, 3)
    return t.reshape(N, 1, hb * BLK, wb * BLK)


def _phitphi_ref(x, PhiW, PhiTW):
    t = _conv(x, PhiW, BLK)
    t = _conv(t, PhiTW, 1)
    return _pixel_shuffle_33(t)


def _reference_forward(x, Phi, Phi_scale, lambdas, betas):
    """Direct transliteration of DrTransNet.forward (TransNet -> identity)."""
    M = Phi.shape[0]
    Phi_eff = (Phi_scale * jnp.where(Phi >= 0.0, 1.0, -1.0)).astype(jnp.float32)
    PhiW = Phi_eff.reshape(M, 1, BLK, BLK).astype(MATMUL_DTYPE)
    PhiTW = Phi_eff.T.reshape(D, M, 1, 1).astype(MATMUL_DTYPE)

    Phix = _conv(x, PhiW, BLK)
    PhiTb = _pixel_shuffle_33(_conv(Phix, PhiTW, 1))

    xk = PhiTb
    for lam, beta in zip(lambdas, betas):
        r = _phitphi_ref(xk, PhiW, PhiTW)
        xs = xk - lam * r + lam * PhiTb
        q = xs
        z = 2.0 * q - xk          # identity placeholder for TransNet
        xk = xk + beta * (z - q)
    return xk, Phi_eff


# ---------------------------------- main --------------------------------------

if __name__ == "__main__":
    key = jax.random.PRNGKey(0)
    k1, k2 = jax.random.split(key, 2)

    cs_ratio = 10
    M = {1: 10, 4: 43, 10: 109, 25: 272, 30: 327, 40: 436, 50: 545}[cs_ratio]
    LayerNo = 3
    N, H, W = 2, 132, 132          # small: 2 images of 4x4 blocks of 33x33

    x = jax.random.normal(k1, (N, 1, H, W), dtype=jnp.float32)
    Phi = 0.04 * jax.random.normal(k2, (M, D), dtype=jnp.float32)  # binarized anyway
    Phi_scale = jnp.float32(0.01)

    # nn.Parameter inits from BasicBlock.__init__ (soft_thr=0.01 is consumed
    # inside TransNet, which is not part of the provided snippet).
    lambdas = jnp.full((LayerNo,), 0.5, jnp.float32)
    betas = jnp.full((LayerNo,), 0.1, jnp.float32)

    fwd = jax.jit(drtransnet_forward)
    out, Phi_ret = fwd(x, Phi, Phi_scale, lambdas, betas)
    out = jax.block_until_ready(out)

    ref, _ = _reference_forward(x, Phi, Phi_scale, lambdas, betas)
    assert out.shape == (N, 1, H, W)
    assert Phi_ret.shape == (M, D)
    max_err = float(jnp.max(jnp.abs(out - ref)))
    assert max_err < 3e-3, max_err

    print("KERNEL_OK")
</pallas_src>

<mosaic_0001>
module attributes {stable_mosaic.version = 11 : i64} {
  func.func @_fused_kernel(%arg0: i32, %arg1: memref<3xf32, #tpu.memory_space<smem>>, %arg2: memref<16x1152xbf16, #tpu.memory_space<vmem>>, %arg3: memref<1152x128xbf16, #tpu.memory_space<vmem>>, %arg4: memref<128x1152xbf16, #tpu.memory_space<vmem>>, %arg5: memref<16x1152xf32, #tpu.memory_space<vmem>>) attributes {dimension_semantics = [#tpu.dimension_semantics<parallel>], iteration_bounds = array<i64: 2>, scalar_prefetch = 0 : i64, scratch_operands = 0 : i64, tpu.core_type = #tpu.core_type<tc>, window_params = [{transform_indices = @transform_0, window_bounds = array<i64: 3>}, {transform_indices = @transform_1, window_bounds = array<i64: 16, 1152>}, {pipeline_mode = #tpu.pipeline_mode<synchronous>, transform_indices = @transform_2, window_bounds = array<i64: 1152, 128>}, {pipeline_mode = #tpu.pipeline_mode<synchronous>, transform_indices = @transform_3, window_bounds = array<i64: 128, 1152>}, {transform_indices = @transform_4, window_bounds = array<i64: 16, 1152>}]} {
    %c0 = arith.constant 0 : index
    %c0_0 = arith.constant 0 : index
    %0 = vector.load %arg3[%c0, %c0_0] : memref<1152x128xbf16, #tpu.memory_space<vmem>>, vector<1152x128xbf16>
    %c0_1 = arith.constant 0 : index
    %c0_2 = arith.constant 0 : index
    %1 = vector.load %arg4[%c0_1, %c0_2] : memref<128x1152xbf16, #tpu.memory_space<vmem>>, vector<128x1152xbf16>
    %c0_3 = arith.constant 0 : index
    %c0_4 = arith.constant 0 : index
    %2 = vector.load %arg2[%c0_3, %c0_4] : memref<16x1152xbf16, #tpu.memory_space<vmem>>, vector<16x1152xbf16>
    %cst = arith.constant dense<0.000000e+00> : vector<16x128xf32>
    %3 = tpu.matmul %2, %0, %cst {dimension_numbers = #tpu.dot_dimension_numbers<[1], [0], [0], [1], [0, 0, 1, 1], [], []>} : vector<16x1152xbf16>, vector<1152x128xbf16>, vector<16x128xf32> -> vector<16x128xf32>
    %4 = arith.truncf %3 : vector<16x128xf32> to vector<16x128xbf16>
    %cst_5 = arith.constant dense<0.000000e+00> : vector<16x1152xf32>
    %5 = tpu.matmul %4, %1, %cst_5 {dimension_numbers = #tpu.dot_dimension_numbers<[1], [0], [0], [1], [0, 0, 1, 1], [], []>} : vector<16x128xbf16>, vector<128x1152xbf16>, vector<16x1152xf32> -> vector<16x1152xf32>
    %c0_6 = arith.constant 0 : index
    %6 = memref.load %arg1[%c0_6] : memref<3xf32, #tpu.memory_space<smem>>
    %7 = arith.truncf %5 : vector<16x1152xf32> to vector<16x1152xbf16>
    %cst_7 = arith.constant dense<0.000000e+00> : vector<16x128xf32>
    %8 = tpu.matmul %7, %0, %cst_7 {dimension_numbers = #tpu.dot_dimension_numbers<[1], [0], [0], [1], [0, 0, 1, 1], [], []>} : vector<16x1152xbf16>, vector<1152x128xbf16>, vector<16x128xf32> -> vector<16x128xf32>
    %9 = arith.truncf %8 : vector<16x128xf32> to vector<16x128xbf16>
    %cst_8 = arith.constant dense<0.000000e+00> : vector<16x1152xf32>
    %10 = tpu.matmul %9, %1, %cst_8 {dimension_numbers = #tpu.dot_dimension_numbers<[1], [0], [0], [1], [0, 0, 1, 1], [], []>} : vector<16x128xbf16>, vector<128x1152xbf16>, vector<16x1152xf32> -> vector<16x1152xf32>
    %11 = arith.subf %5, %10 : vector<16x1152xf32>
    %12 = vector.broadcast %6 : f32 to vector<16x1152xf32>
    %13 = arith.mulf %12, %11 : vector<16x1152xf32>
    %14 = arith.addf %5, %13 : vector<16x1152xf32>
    %c1 = arith.constant 1 : index
    %15 = memref.load %arg1[%c1] : memref<3xf32, #tpu.memory_space<smem>>
    %16 = arith.truncf %14 : vector<16x1152xf32> to vector<16x1152xbf16>
    %cst_9 = arith.constant dense<0.000000e+00> : vector<16x128xf32>
    %17 = tpu.matmul %16, %0, %cst_9 {dimension_numbers = #tpu.dot_dimension_numbers<[1], [0], [0], [1], [0, 0, 1, 1], [], []>} : vector<16x1152xbf16>, vector<1152x128xbf16>, vector<16x128xf32> -> vector<16x128xf32>
    %18 = arith.truncf %17 : vector<16x128xf32> to vector<16x128xbf16>
    %cst_10 = arith.constant dense<0.000000e+00> : vector<16x1152xf32>
    %19 = tpu.matmul %18, %1, %cst_10 {dimension_numbers = #tpu.dot_dimension_numbers<[1], [0], [0], [1], [0, 0, 1, 1], [], []>} : vector<16x128xbf16>, vector<128x1152xbf16>, vector<16x1152xf32> -> vector<16x1152xf32>
    %20 = arith.subf %5, %19 : vector<16x1152xf32>
    %21 = vector.broadcast %15 : f32 to vector<16x1152xf32>
    %22 = arith.mulf %21, %20 : vector<16x1152xf32>
    %23 = arith.addf %14, %22 : vector<16x1152xf32>
    %c2 = arith.constant 2 : index
    %24 = memref.load %arg1[%c2] : memref<3xf32, #tpu.memory_space<smem>>
    %25 = arith.truncf %23 : vector<16x1152xf32> to vector<16x1152xbf16>
    %cst_11 = arith.constant dense<0.000000e+00> : vector<16x128xf32>
    %26 = tpu.matmul %25, %0, %cst_11 {dimension_numbers = #tpu.dot_dimension_numbers<[1], [0], [0], [1], [0, 0, 1, 1], [], []>} : vector<16x1152xbf16>, vector<1152x128xbf16>, vector<16x128xf32> -> vector<16x128xf32>
    %27 = arith.truncf %26 : vector<16x128xf32> to vector<16x128xbf16>
    %cst_12 = arith.constant dense<0.000000e+00> : vector<16x1152xf32>
    %28 = tpu.matmul %27, %1, %cst_12 {dimension_numbers = #tpu.dot_dimension_numbers<[1], [0], [0], [1], [0, 0, 1, 1], [], []>} : vector<16x128xbf16>, vector<128x1152xbf16>, vector<16x1152xf32> -> vector<16x1152xf32>
    %29 = arith.subf %5, %28 : vector<16x1152xf32>
    %30 = vector.broadcast %24 : f32 to vector<16x1152xf32>
    %31 = arith.mulf %30, %29 : vector<16x1152xf32>
    %32 = arith.addf %23, %31 : vector<16x1152xf32>
    %c0_13 = arith.constant 0 : index
    %c0_14 = arith.constant 0 : index
    %33 = vector.load %arg5[%c0_13, %c0_14] : memref<16x1152xf32, #tpu.memory_space<vmem>>, vector<16x1152xf32>
    tpu.vector_store %arg5[%c0_13, %c0_14], %32 {strides = array<i32>} : memref<16x1152xf32, #tpu.memory_space<vmem>>, vector<16x1152xf32>,
    return
  }
  func.func @transform_0(%arg0: i32) -> i32 {
    %c0_i32 = arith.constant 0 : i32
    %c0_i32_0 = arith.constant 0 : i32
    return %c0_i32 : i32
  }
  func.func @transform_1(%arg0: i32) -> (i32, i32) {
    %c0_i32 = arith.constant 0 : i32
    %c0_i32_0 = arith.constant 0 : i32
    return %arg0, %c0_i32 : i32, i32
  }
  func.func @transform_2(%arg0: i32) -> (i32, i32) {
    %c0_i32 = arith.constant 0 : i32
    %c0_i32_0 = arith.constant 0 : i32
    %c0_i32_1 = arith.constant 0 : i32
    return %c0_i32, %c0_i32_0 : i32, i32
  }
  func.func @transform_3(%arg0: i32) -> (i32, i32) {
    %c0_i32 = arith.constant 0 : i32
    %c0_i32_0 = arith.constant 0 : i32
    %c0_i32_1 = arith.constant 0 : i32
    return %c0_i32, %c0_i32_0 : i32, i32
  }
  func.func @transform_4(%arg0: i32) -> (i32, i32) {
    %c0_i32 = arith.constant 0 : i32
    %c0_i32_0 = arith.constant 0 : i32
    return %arg0, %c0_i32 : i32, i32
  }
}

</mosaic_0001>

<llo_original>
// kernel: mul.5
$region0: #{mul.5}
  #allocation0 [shape = 's32[1]{0}', space=sflag, size = 0x4, scoped, tag = 'scoped memory for mul.5']
  %s0 = inlined_call_operand.vmem [shape: f32[3], index: 0, kind: input, shape index: {}]
  %s1 = inlined_call_operand.vmem [shape: f32[3], index: 1, kind: input, shape index: {}]
  %s2 = inlined_call_operand.vmem [shape: f32[3], index: 2, kind: output, shape index: {}]
  %v3 = vld [vmem:[%s0] sm:$0x1]
  %v4 = vld [vmem:[%s1] sm:$0x1]
  %5 = xla_tuple %v3, %v4
  %6 = xla_tuple %5
  %v7 = vmul.f32 %v3, %v4
  %8 = xla_tuple %v7
  %9 = vst [vmem:[%s2] sm:$0x1] %v7

// kernel: drtransnet_forward.1
$region0: #{drtransnet_forward.1}
  #allocation0 [shape = 'u32[]', space=smem, size = 0x4, offset = 0x4, fixed_abs, tag = 'smem constant byte address 0x4 - core index']
  #allocation1 [shape = 'u32[144,128]{1,0:T(1,128)}', space=vmem, size = 0x12000, scoped, tag = 'internal scratch']
  %s0 = inlined_call_operand.vmem [shape: f32[3], index: 0, kind: input, shape index: {}]
  %s1 = inlined_call_operand.vmem [shape: bf16[32,1152], index: 1, kind: input, shape index: {}]
  %s2 = inlined_call_operand.vmem [shape: bf16[1152,128], index: 2, kind: input, shape index: {}]
  %s3 = inlined_call_operand.vmem [shape: bf16[128,1152], index: 3, kind: input, shape index: {}]
  %s4 = inlined_call_operand.vmem [shape: f32[32,1152], index: 4, kind: output, shape index: {}]
  %s5 = sld [smem:[#allocation0]]
  $region53: #{drtransnet_forward.1} parent=0
    _
  %s7 = ssub.s32 1, %s5
  %s8 = scalar_select 0, %s7, %s5
  $region1: #{drtransnet_forward.1} parent=0
    #allocation2 [shape = 'u8[512]{0}', space=smem, size = 0x200, scoped, tag = 'input window, operand 0, single buffered']
    #allocation3 [shape = 's32[2]{0}', space=sflag, size = 0x8, scoped, tag = 'scoped memory for drtransnet_forward.1']
    %9 = vsyncpa [#allocation3], 0
    loop: start=0, step=1, limit=4
    $region2: #{drtransnet_forward.1} parent=1 // loop_pre_header
      _
    $region3: #{drtransnet_forward.1} parent=1 // loop_header
      %s11 = sphi 0, %s15
      %p12 = scmp.ge.s32.totalorder %s11, 4
      %s19 = sphi 0, %s19
      %s21 = sphi 0, %s19
      %s22 = sphi 0, %s21
      %s36 = sphi 0, %s22
      %s42 = sphi 0, %s44
      %s45 = sphi 0, %s42
      %s46 = sphi 0, %s45
      %s62 = sphi 0, %s46
      %s66 = sphi 0, %s66
      %s68 = sphi 0, %s66
      %s69 = sphi 0, %s68
      %s83 = sphi 0, %s69
      %s87 = sphi 0, %s87
      %s89 = sphi 0, %s87
      %s90 = sphi 0, %s89
      %s104 = sphi 0, %s90
      %s110 = sphi 0, %s112
      %s113 = sphi 0, %s110
      %s114 = sphi 0, %s113
      %s130 = sphi 0, %s114
    $region4: #{drtransnet_forward.1} parent=1 // loop_header_branch
      %14 = sbr.rel (%p12) target = $region8
    $region5: #{drtransnet_forward.1} parent=1 // loop_body
      %s16 = ssub.s32 %s11, 1
      %s17 = ssub.s32 %s11, 2
      %s18 = sadd.s32 %s11, 1
      %s20 = sadd.s32 %s19, 1
      %p23 = scmp.eq.s32.totalorder %s11, 1
      %p24 = scmp.ne.s32.totalorder %s19, %s21
      %p25 = scmp.eq.s32.totalorder %s11, 0
      %p26 = por %p24, %p25
      %p27 = scmp.ne.s32.totalorder %s19, %s21
      %p28 = scmp.eq.s32.totalorder %s16, 1
      %p29 = por %p27, %p28
      %p30 = scmp.ne.s32.totalorder %s21, %s22
      %p31 = scmp.eq.s32.totalorder %s16, 0
      %p32 = por %p30, %p31
      %p33 = scmp.ne.s32.totalorder %s21, %s22
      %p34 = scmp.eq.s32.totalorder %s17, 1
      %p35 = por %p33, %p34
      %p37 = scmp.ne.s32.totalorder %s22, %s36
      %p38 = scmp.eq.s32.totalorder %s17, 0
      %p39 = por %p37, %p38
      %s40 = ssub.s32 %s11, %s18
      %p41 = scmp.eq.s32.totalorder %s40, 0
      %s43 = sadd.s32 %s42, 1
      %s44 = scalar_select %p41, %s42, %s43
      %p47 = pneg %p41
      %p48 = scmp.eq.s32.totalorder %s11, 1
      %p49 = por %p47, %p48
      %p50 = scmp.ne.s32.totalorder %s42, %s45
      %p51 = scmp.eq.s32.totalorder %s11, 0
      %p52 = por %p50, %p51
      %p53 = scmp.ne.s32.totalorder %s42, %s45
      %p54 = scmp.eq.s32.totalorder %s16, 1
      %p55 = por %p53, %p54
      %p56 = scmp.ne.s32.totalorder %s45, %s46
      %p57 = scmp.eq.s32.totalorder %s16, 0
      %p58 = por %p56, %p57
      %p59 = scmp.ne.s32.totalorder %s45, %s46
      %p60 = scmp.eq.s32.totalorder %s17, 1
      %p61 = por %p59, %p60
      %p63 = scmp.ne.s32.totalorder %s46, %s62
      %p64 = scmp.eq.s32.totalorder %s17, 0
      %p65 = por %p63, %p64
      %s67 = sadd.s32 %s66, 1
      %p70 = scmp.eq.s32.totalorder %s11, 1
      %p71 = scmp.ne.s32.totalorder %s66, %s68
      %p72 = scmp.eq.s32.totalorder %s11, 0
      %p73 = por %p71, %p72
      %p74 = scmp.ne.s32.totalorder %s66, %s68
      %p75 = scmp.eq.s32.totalorder %s16, 1
      %p76 = por %p74, %p75
      %p77 = scmp.ne.s32.totalorder %s68, %s69
      %p78 = scmp.eq.s32.totalorder %s16, 0
      %p79 = por %p77, %p78
      %p80 = scmp.ne.s32.totalorder %s68, %s69
      %p81 = scmp.eq.s32.totalorder %s17, 1
      %p82 = por %p80, %p81
      %p84 = scmp.ne.s32.totalorder %s69, %s83
      %p85 = scmp.eq.s32.totalorder %s17, 0
      %p86 = por %p84, %p85
      %s88 = sadd.s32 %s87, 1
      %p91 = scmp.eq.s32.totalorder %s11, 1
      %p92 = scmp.ne.s32.totalorder %s87, %s89
      %p93 = scmp.eq.s32.totalorder %s11, 0
      %p94 = por %p92, %p93
      %p95 = scmp.ne.s32.totalorder %s87, %s89
      %p96 = scmp.eq.s32.totalorder %s16, 1
      %p97 = por %p95, %p96
      %p98 = scmp.ne.s32.totalorder %s89, %s90
      %p99 = scmp.eq.s32.totalorder %s16, 0
      %p100 = por %p98, %p99
      %p101 = scmp.ne.s32.totalorder %s89, %s90
      %p102 = scmp.eq.s32.totalorder %s17, 1
      %p103 = por %p101, %p102
      %p105 = scmp.ne.s32.totalorder %s90, %s104
      %p106 = scmp.eq.s32.totalorder %s17, 0
      %p107 = por %p105, %p106
      %s108 = ssub.s32 %s11, %s18
      %p109 = scmp.eq.s32.totalorder %s108, 0
      %s111 = sadd.s32 %s110, 1
      %s112 = scalar_select %p109, %s110, %s111
      %p115 = pneg %p109
      %p116 = scmp.eq.s32.totalorder %s11, 1
      %p117 = por %p115, %p116
      %p118 = scmp.ne.s32.totalorder %s110, %s113
      %p119 = scmp.eq.s32.totalorder %s11, 0
      %p120 = por %p118, %p119
      %p121 = scmp.ne.s32.totalorder %s110, %s113
      %p122 = scmp.eq.s32.totalorder %s16, 1
      %p123 = por %p121, %p122
      %p124 = scmp.ne.s32.totalorder %s113, %s114
      %p125 = scmp.eq.s32.totalorder %s16, 0
      %p126 = por %p124, %p125
      %p127 = scmp.ne.s32.totalorder %s113, %s114
      %p128 = scmp.eq.s32.totalorder %s17, 1
      %p129 = por %p127, %p128
      %p131 = scmp.ne.s32.totalorder %s114, %s130
      %p132 = scmp.eq.s32.totalorder %s17, 0
      %p133 = por %p131, %p132
      %p134 = scmp.le.s32.totalorder 1, %s11
      %p135 = scmp.lt.s32.totalorder %s11, 3
      %p136 = pnand %p134, %p135
      %p137 = pneg %p136
      // Predicated region
      $region9: #{drtransnet_forward.1} parent=5 // pred_check
        _
      $region10: #{drtransnet_forward.1} parent=5 // pred_check_branch
        %139 = sbr.rel (%p136) target = $region12
      $region11: #{drtransnet_forward.1} parent=5 // pred_region
        %s140 = ssub.s32 %s11, 1
        // Predicated region
        $region13: #{drtransnet_forward.1} parent=11 // pred_check
          %p141 = pneg %p32
        $region14: #{drtransnet_forward.1} parent=11 // pred_check_branch
          %143 = sbr.rel (%p141) target = $region16
        $region15: #{drtransnet_forward.1} parent=11 // pred_region
          %s145 = ssub.s32 16, 16
          %146 = vsyncadd [#allocation3], %s145
          %s148 = sshll.u32 %s0, 4
          %s149 = int_to_ptr.vmem [resolvable:$true] %s148
          %151 = dma.vmem_to_smem %s149, 16, [#allocation2], [#allocation3]
        $region16: #{drtransnet_forward.1} parent=11 // pred_fallthru
          _
        // Predicated region
        $region17: #{drtransnet_forward.1} parent=11 // pred_check
          %p152 = pneg %p79
        $region18: #{drtransnet_forward.1} parent=11 // pred_check_branch
          %154 = sbr.rel (%p152) target = $region20
        $region19: #{drtransnet_forward.1} parent=11 // pred_region
          _
        $region20: #{drtransnet_forward.1} parent=11 // pred_fallthru
          _
        // Predicated region
        $region21: #{drtransnet_forward.1} parent=11 // pred_check
          %p155 = pneg %p100
        $region22: #{drtransnet_forward.1} parent=11 // pred_check_branch
          %157 = sbr.rel (%p155) target = $region24
        $region23: #{drtransnet_forward.1} parent=11 // pred_region
          _
        $region24: #{drtransnet_forward.1} parent=11 // pred_fallthru
          _
      $region12: #{drtransnet_forward.1} parent=5 // pred_fallthru
        _
      %p158 = scmp.lt.s32.totalorder %s11, 2
      // Predicated region
      $region25: #{drtransnet_forward.1} parent=5 // pred_check
        %p159 = pneg %p158
      $region26: #{drtransnet_forward.1} parent=5 // pred_check_branch
        %161 = sbr.rel (%p159) target = $region28
      $region27: #{drtransnet_forward.1} parent=5 // pred_region
        // Predicated region
        $region29: #{drtransnet_forward.1} parent=27 // pred_check
          %p162 = pneg %p52
        $region30: #{drtransnet_forward.1} parent=27 // pred_check_branch
          %164 = sbr.rel (%p162) target = $region32
        $region31: #{drtransnet_forward.1} parent=27 // pred_region
          %s165 = smul.u32 2, %s11
          %p166 = scmp.lt.s32.totalorder %s165, 3
          %s167 = scalar_select %p166, %s165, 3
          %s168 = smul.addr %s167, 9
          %s169 = smul.addr %s168, 4
          %s170 = scalar_lea.vmem %s1, %s169
          %s171 = smul.u32 2, %s11
        $region32: #{drtransnet_forward.1} parent=27 // pred_fallthru
          _
      $region28: #{drtransnet_forward.1} parent=5 // pred_fallthru
        _
      %p172 = scmp.le.s32.totalorder 1, %s11
      %p173 = scmp.lt.s32.totalorder %s11, 3
      %p174 = pnand %p172, %p173
      %p175 = pneg %p174
      // Predicated region
      $region33: #{drtransnet_forward.1} parent=5 // pred_check
        _
      $region34: #{drtransnet_forward.1} parent=5 // pred_check_branch
        %177 = sbr.rel (%p174) target = $region36
      $region35: #{drtransnet_forward.1} parent=5 // pred_region
        %s178 = ssub.s32 %s11, 1
        // Predicated region
        $region37: #{drtransnet_forward.1} parent=35 // pred_check
          %p179 = pneg %p32
        $region38: #{drtransnet_forward.1} parent=35 // pred_check_branch
          %181 = sbr.rel (%p179) target = $region40
        $region39: #{drtransnet_forward.1} parent=35 // pred_region
          %182 = dma.done [#allocation3], 16
        $region40: #{drtransnet_forward.1} parent=35 // pred_fallthru
          _
        %183 = sfence
        %p184 = pneg %p32
        %p185 = pneg %p29
        %s186 = smul.u32 2, %s16
        %p187 = scmp.lt.s32.totalorder %s186, 3
        %s188 = scalar_select %p187, %s186, 3
        %s189 = smul.addr %s188, 9
        %s190 = smul.addr %s189, 4
        %s191 = scalar_lea.vmem %s1, %s190
        %p192 = pneg %p58
        %p193 = pneg %p55
        %p194 = pneg %p79
        %p195 = pneg %p76
        %p196 = pneg %p100
        %p197 = pneg %p97
        %p198 = pneg %p126
        %p199 = pneg %p123
        %s200 = smul.u32 2, %s16
        %p201 = scmp.lt.s32.totalorder %s200, 3
        %s202 = scalar_select %p201, %s200, 3
        %s203 = smul.addr %s202, 9
        %s204 = smul.addr %s203, 8
        %s205 = scalar_lea.vmem %s4, %s204
        %s206 = smul.u32 2, %s16
        %p207 = scmp.lt.s32.totalorder %s206, 3
        %s208 = scalar_select %p207, %s206, 3
        %s209 = smul.addr %s208, 9
        %s210 = smul.addr %s209, 4
        %s211 = scalar_lea.vmem %s1, %s210
        %s212 = smul.u32 2, %s16
        %s213 = smul.u32 2, %s16
        %p214 = scmp.lt.s32.totalorder %s213, 3
        %s215 = scalar_select %p214, %s213, 3
        %s216 = smul.addr %s215, 9
        %s217 = smul.addr %s216, 8
        %s218 = scalar_lea.vmem %s4, %s217
        %s219 = smul.u32 2, %s16
        %v221 = vld [vmem:[%s2] sm:$0xf]
        %v222 = vld [vmem:[%s2 + $0x4] sm:$0xf]
        %v223 = vld [vmem:[%s2 + $0x8] sm:$0xf]
        %v224 = vld [vmem:[%s2 + $0xc] sm:$0xf]
        %v225 = vld [vmem:[%s2 + $0x10] sm:$0xf]
        %v226 = vld [vmem:[%s2 + $0x14] sm:$0xf]
        %v227 = vld [vmem:[%s2 + $0x18] sm:$0xf]
        %v228 = vld [vmem:[%s2 + $0x1c] sm:$0xf]
        %v229 = vld [vmem:[%s2 + $0x20] sm:$0xf]
        %v230 = vld [vmem:[%s2 + $0x24] sm:$0xf]
        %v231 = vld [vmem:[%s2 + $0x28] sm:$0xf]
        %v232 = vld [vmem:[%s2 + $0x2c] sm:$0xf]
        %v233 = vld [vmem:[%s2 + $0x30] sm:$0xf]
        %v234 = vld [vmem:[%s2 + $0x34] sm:$0xf]
        %v235 = vld [vmem:[%s2 + $0x38] sm:$0xf]
        %v236 = vld [vmem:[%s2 + $0x3c] sm:$0xf]
        %v237 = vld [vmem:[%s2 + $0x40] sm:$0xf]
        %v238 = vld [vmem:[%s2 + $0x44] sm:$0xf]
        %v239 = vld [vmem:[%s2 + $0x48] sm:$0xf]
        %v240 = vld [vmem:[%s2 + $0x4c] sm:$0xf]
        %v241 = vld [vmem:[%s2 + $0x50] sm:$0xf]
        %v242 = vld [vmem:[%s2 + $0x54] sm:$0xf]
        %v243 = vld [vmem:[%s2 + $0x58] sm:$0xf]
        %v244 = vld [vmem:[%s2 + $0x5c] sm:$0xf]
        %v245 = vld [vmem:[%s2 + $0x60] sm:$0xf]
        %v246 = vld [vmem:[%s2 + $0x64] sm:$0xf]
        %v247 = vld [vmem:[%s2 + $0x68] sm:$0xf]
        %v248 = vld [vmem:[%s2 + $0x6c] sm:$0xf]
        %v249 = vld [vmem:[%s2 + $0x70] sm:$0xf]
        %v250 = vld [vmem:[%s2 + $0x74] sm:$0xf]
        %v251 = vld [vmem:[%s2 + $0x78] sm:$0xf]
        %v252 = vld [vmem:[%s2 + $0x7c] sm:$0xf]
        %v253 = vld [vmem:[%s2 + $0x80] sm:$0xf]
        %v254 = vld [vmem:[%s2 + $0x84] sm:$0xf]
        %v255 = vld [vmem:[%s2 + $0x88] sm:$0xf]
        %v256 = vld [vmem:[%s2 + $0x8c] sm:$0xf]
        %v257 = vld [vmem:[%s2 + $0x90] sm:$0xf]
        %v258 = vld [vmem:[%s2 + $0x94] sm:$0xf]
        %v259 = vld [vmem:[%s2 + $0x98] sm:$0xf]
        %v260 = vld [vmem:[%s2 + $0x9c] sm:$0xf]
        %v261 = vld [vmem:[%s2 + $0xa0] sm:$0xf]
        %v262 = vld [vmem:[%s2 + $0xa4] sm:$0xf]
        %v263 = vld [vmem:[%s2 + $0xa8] sm:$0xf]
        %v264 = vld [vmem:[%s2 + $0xac] sm:$0xf]
        %v265 = vld [vmem:[%s2 + $0xb0] sm:$0xf]
        %v266 = vld [vmem:[%s2 + $0xb4] sm:$0xf]
        %v267 = vld [vmem:[%s2 + $0xb8] sm:$0xf]
        %v268 = vld [vmem:[%s2 + $0xbc] sm:$0xf]
        %v269 = vld [vmem:[%s2 + $0xc0] sm:$0xf]
        %v270 = vld [vmem:[%s2 + $0xc4] sm:$0xf]
        %v271 = vld [vmem:[%s2 + $0xc8] sm:$0xf]
        %v272 = vld [vmem:[%s2 + $0xcc] sm:$0xf]
        %v273 = vld [vmem:[%s2 + $0xd0] sm:$0xf]
        %v274 = vld [vmem:[%s2 + $0xd4] sm:$0xf]
        %v275 = vld [vmem:[%s2 + $0xd8] sm:$0xf]
        %v276 = vld [vmem:[%s2 + $0xdc] sm:$0xf]
        %v277 = vld [vmem:[%s2 + $0xe0] sm:$0xf]
        %v278 = vld [vmem:[%s2 + $0xe4] sm:$0xf]
        %v279 = vld [vmem:[%s2 + $0xe8] sm:$0xf]
        %v280 = vld [vmem:[%s2 + $0xec] sm:$0xf]
        %v281 = vld [vmem:[%s2 + $0xf0] sm:$0xf]
        %v282 = vld [vmem:[%s2 + $0xf4] sm:$0xf]
        %v283 = vld [vmem:[%s2 + $0xf8] sm:$0xf]
        %v284 = vld [vmem:[%s2 + $0xfc] sm:$0xf]
        %v285 = vld [vmem:[%s2 + $0x100] sm:$0xf]
        %v286 = vld [vmem:[%s2 + $0x104] sm:$0xf]
        %v287 = vld [vmem:[%s2 + $0x108] sm:$0xf]
        %v288 = vld [vmem:[%s2 + $0x10c] sm:$0xf]
        %v289 = vld [vmem:[%s2 + $0x110] sm:$0xf]
        %v290 = vld [vmem:[%s2 + $0x114] sm:$0xf]
        %v291 = vld [vmem:[%s2 + $0x118] sm:$0xf]
        %v292 = vld [vmem:[%s2 + $0x11c] sm:$0xf]
        %v293 = vld [vmem:[%s2 + $0x120] sm:$0xf]
        %v294 = vld [vmem:[%s2 + $0x124] sm:$0xf]
        %v295 = vld [vmem:[%s2 + $0x128] sm:$0xf]
        %v296 = vld [vmem:[%s2 + $0x12c] sm:$0xf]
        %v297 = vld [vmem:[%s2 + $0x130] sm:$0xf]
        %v298 = vld [vmem:[%s2 + $0x134] sm:$0xf]
        %v299 = vld [vmem:[%s2 + $0x138] sm:$0xf]
        %v300 = vld [vmem:[%s2 + $0x13c] sm:$0xf]
        %v301 = vld [vmem:[%s2 + $0x140] sm:$0xf]
        %v302 = vld [vmem:[%s2 + $0x144] sm:$0xf]
        %v303 = vld [vmem:[%s2 + $0x148] sm:$0xf]
        %v304 = vld [vmem:[%s2 + $0x14c] sm:$0xf]
        %v305 = vld [vmem:[%s2 + $0x150] sm:$0xf]
        %v306 = vld [vmem:[%s2 + $0x154] sm:$0xf]
        %v307 = vld [vmem:[%s2 + $0x158] sm:$0xf]
        %v308 = vld [vmem:[%s2 + $0x15c] sm:$0xf]
        %v309 = vld [vmem:[%s2 + $0x160] sm:$0xf]
        %v310 = vld [vmem:[%s2 + $0x164] sm:$0xf]
        %v311 = vld [vmem:[%s2 + $0x168] sm:$0xf]
        %v312 = vld [vmem:[%s2 + $0x16c] sm:$0xf]
        %v313 = vld [vmem:[%s2 + $0x170] sm:$0xf]
        %v314 = vld [vmem:[%s2 + $0x174] sm:$0xf]
        %v315 = vld [vmem:[%s2 + $0x178] sm:$0xf]
        %v316 = vld [vmem:[%s2 + $0x17c] sm:$0xf]
        %v317 = vld [vmem:[%s2 + $0x180] sm:$0xf]
        %v318 = vld [vmem:[%s2 + $0x184] sm:$0xf]
        %v319 = vld [vmem:[%s2 + $0x188] sm:$0xf]
        %v320 = vld [vmem:[%s2 + $0x18c] sm:$0xf]
        %v321 = vld [vmem:[%s2 + $0x190] sm:$0xf]
        %v322 = vld [vmem:[%s2 + $0x194] sm:$0xf]
        %v323 = vld [vmem:[%s2 + $0x198] sm:$0xf]
        %v324 = vld [vmem:[%s2 + $0x19c] sm:$0xf]
        %v325 = vld [vmem:[%s2 + $0x1a0] sm:$0xf]
        %v326 = vld [vmem:[%s2 + $0x1a4] sm:$0xf]
        %v327 = vld [vmem:[%s2 + $0x1a8] sm:$0xf]
        %v328 = vld [vmem:[%s2 + $0x1ac] sm:$0xf]
        %v329 = vld [vmem:[%s2 + $0x1b0] sm:$0xf]
        %v330 = vld [vmem:[%s2 + $0x1b4] sm:$0xf]
        %v331 = vld [vmem:[%s2 + $0x1b8] sm:$0xf]
        %v332 = vld [vmem:[%s2 + $0x1bc] sm:$0xf]
        %v333 = vld [vmem:[%s2 + $0x1c0] sm:$0xf]
        %v334 = vld [vmem:[%s2 + $0x1c4] sm:$0xf]
        %v335 = vld [vmem:[%s2 + $0x1c8] sm:$0xf]
        %v336 = vld [vmem:[%s2 + $0x1cc] sm:$0xf]
        %v337 = vld [vmem:[%s2 + $0x1d0] sm:$0xf]
        %v338 = vld [vmem:[%s2 + $0x1d4] sm:$0xf]
        %v339 = vld [vmem:[%s2 + $0x1d8] sm:$0xf]
        %v340 = vld [vmem:[%s2 + $0x1dc] sm:$0xf]
        %v341 = vld [vmem:[%s2 + $0x1e0] sm:$0xf]
        %v342 = vld [vmem:[%s2 + $0x1e4] sm:$0xf]
        %v343 = vld [vmem:[%s2 + $0x1e8] sm:$0xf]
        %v344 = vld [vmem:[%s2 + $0x1ec] sm:$0xf]
        %v345 = vld [vmem:[%s2 + $0x1f0] sm:$0xf]
        %v346 = vld [vmem:[%s2 + $0x1f4] sm:$0xf]
        %v347 = vld [vmem:[%s2 + $0x1f8] sm:$0xf]
        %v348 = vld [vmem:[%s2 + $0x1fc] sm:$0xf]
        %v349 = vld [vmem:[%s2 + $0x200] sm:$0xf]
        %v350 = vld [vmem:[%s2 + $0x204] sm:$0xf]
        %v351 = vld [vmem:[%s2 + $0x208] sm:$0xf]
        %v352 = vld [vmem:[%s2 + $0x20c] sm:$0xf]
        %v353 = vld [vmem:[%s2 + $0x210] sm:$0xf]
        %v354 = vld [vmem:[%s2 + $0x214] sm:$0xf]
        %v355 = vld [vmem:[%s2 + $0x218] sm:$0xf]
        %v356 = vld [vmem:[%s2 + $0x21c] sm:$0xf]
        %v357 = vld [vmem:[%s2 + $0x220] sm:$0xf]
        %v358 = vld [vmem:[%s2 + $0x224] sm:$0xf]
        %v359 = vld [vmem:[%s2 + $0x228] sm:$0xf]
        %v360 = vld [vmem:[%s2 + $0x22c] sm:$0xf]
        %v361 = vld [vmem:[%s2 + $0x230] sm:$0xf]
        %v362 = vld [vmem:[%s2 + $0x234] sm:$0xf]
        %v363 = vld [vmem:[%s2 + $0x238] sm:$0xf]
        %v364 = vld [vmem:[%s2 + $0x23c] sm:$0xf]
        %v365 = vld [vmem:[%s3] sm:$0xff]
        %v366 = vld [vmem:[%s3 + $0x8] sm:$0xff]
        %v367 = vld [vmem:[%s3 + $0x10] sm:$0xff]
        %v368 = vld [vmem:[%s3 + $0x18] sm:$0xff]
        %v369 = vld [vmem:[%s3 + $0x20] sm:$0xf]
        %v370 = vld [vmem:[%s3 + $0x24] sm:$0xff]
        %v371 = vld [vmem:[%s3 + $0x2c] sm:$0xff]
        %v372 = vld [vmem:[%s3 + $0x34] sm:$0xff]
        %v373 = vld [vmem:[%s3 + $0x3c] sm:$0xff]
        %v374 = vld [vmem:[%s3 + $0x44] sm:$0xf]
        %v375 = vld [vmem:[%s3 + $0x48] sm:$0xff]
        %v376 = vld [vmem:[%s3 + $0x50] sm:$0xff]
        %v377 = vld [vmem:[%s3 + $0x58] sm:$0xff]
        %v378 = vld [vmem:[%s3 + $0x60] sm:$0xff]
        %v379 = vld [vmem:[%s3 + $0x68] sm:$0xf]
        %v380 = vld [vmem:[%s3 + $0x6c] sm:$0xff]
        %v381 = vld [vmem:[%s3 + $0x74] sm:$0xff]
        %v382 = vld [vmem:[%s3 + $0x7c] sm:$0xff]
        %v383 = vld [vmem:[%s3 + $0x84] sm:$0xff]
        %v384 = vld [vmem:[%s3 + $0x8c] sm:$0xf]
        %v385 = vld [vmem:[%s3 + $0x90] sm:$0xff]
        %v386 = vld [vmem:[%s3 + $0x98] sm:$0xff]
        %v387 = vld [vmem:[%s3 + $0xa0] sm:$0xff]
        %v388 = vld [vmem:[%s3 + $0xa8] sm:$0xff]
        %v389 = vld [vmem:[%s3 + $0xb0] sm:$0xf]
        %v390 = vld [vmem:[%s3 + $0xb4] sm:$0xff]
        %v391 = vld [vmem:[%s3 + $0xbc] sm:$0xff]
        %v392 = vld [vmem:[%s3 + $0xc4] sm:$0xff]
        %v393 = vld [vmem:[%s3 + $0xcc] sm:$0xff]
        %v394 = vld [vmem:[%s3 + $0xd4] sm:$0xf]
        %v395 = vld [vmem:[%s3 + $0xd8] sm:$0xff]
        %v396 = vld [vmem:[%s3 + $0xe0] sm:$0xff]
        %v397 = vld [vmem:[%s3 + $0xe8] sm:$0xff]
        %v398 = vld [vmem:[%s3 + $0xf0] sm:$0xff]
        %v399 = vld [vmem:[%s3 + $0xf8] sm:$0xf]
        %v400 = vld [vmem:[%s3 + $0xfc] sm:$0xff]
        %v401 = vld [vmem:[%s3 + $0x104] sm:$0xff]
        %v402 = vld [vmem:[%s3 + $0x10c] sm:$0xff]
        %v403 = vld [vmem:[%s3 + $0x114] sm:$0xff]
        %v404 = vld [vmem:[%s3 + $0x11c] sm:$0xf]
        %v405 = vld [vmem:[%s3 + $0x120] sm:$0xff]
        %v406 = vld [vmem:[%s3 + $0x128] sm:$0xff]
        %v407 = vld [vmem:[%s3 + $0x130] sm:$0xff]
        %v408 = vld [vmem:[%s3 + $0x138] sm:$0xff]
        %v409 = vld [vmem:[%s3 + $0x140] sm:$0xf]
        %v410 = vld [vmem:[%s3 + $0x144] sm:$0xff]
        %v411 = vld [vmem:[%s3 + $0x14c] sm:$0xff]
        %v412 = vld [vmem:[%s3 + $0x154] sm:$0xff]
        %v413 = vld [vmem:[%s3 + $0x15c] sm:$0xff]
        %v414 = vld [vmem:[%s3 + $0x164] sm:$0xf]
        %v415 = vld [vmem:[%s3 + $0x168] sm:$0xff]
        %v416 = vld [vmem:[%s3 + $0x170] sm:$0xff]
        %v417 = vld [vmem:[%s3 + $0x178] sm:$0xff]
        %v418 = vld [vmem:[%s3 + $0x180] sm:$0xff]
        %v419 = vld [vmem:[%s3 + $0x188] sm:$0xf]
        %v420 = vld [vmem:[%s3 + $0x18c] sm:$0xff]
        %v421 = vld [vmem:[%s3 + $0x194] sm:$0xff]
        %v422 = vld [vmem:[%s3 + $0x19c] sm:$0xff]
        %v423 = vld [vmem:[%s3 + $0x1a4] sm:$0xff]
        %v424 = vld [vmem:[%s3 + $0x1ac] sm:$0xf]
        %v425 = vld [vmem:[%s3 + $0x1b0] sm:$0xff]
        %v426 = vld [vmem:[%s3 + $0x1b8] sm:$0xff]
        %v427 = vld [vmem:[%s3 + $0x1c0] sm:$0xff]
        %v428 = vld [vmem:[%s3 + $0x1c8] sm:$0xff]
        %v429 = vld [vmem:[%s3 + $0x1d0] sm:$0xf]
        %v430 = vld [vmem:[%s3 + $0x1d4] sm:$0xff]
        %v431 = vld [vmem:[%s3 + $0x1dc] sm:$0xff]
        %v432 = vld [vmem:[%s3 + $0x1e4] sm:$0xff]
        %v433 = vld [vmem:[%s3 + $0x1ec] sm:$0xff]
        %v434 = vld [vmem:[%s3 + $0x1f4] sm:$0xf]
        %v435 = vld [vmem:[%s3 + $0x1f8] sm:$0xff]
        %v436 = vld [vmem:[%s3 + $0x200] sm:$0xff]
        %v437 = vld [vmem:[%s3 + $0x208] sm:$0xff]
        %v438 = vld [vmem:[%s3 + $0x210] sm:$0xff]
        %v439 = vld [vmem:[%s3 + $0x218] sm:$0xf]
        %v440 = vld [vmem:[%s3 + $0x21c] sm:$0xff]
        %v441 = vld [vmem:[%s3 + $0x224] sm:$0xff]
        %v442 = vld [vmem:[%s3 + $0x22c] sm:$0xff]
        %v443 = vld [vmem:[%s3 + $0x234] sm:$0xff]
        %v444 = vld [vmem:[%s3 + $0x23c] sm:$0xf]
        %v445 = vld [vmem:[%s211] sm:$0xff]
        %v446 = vld [vmem:[%s211 + $0x8] sm:$0xff]
        %v447 = vld [vmem:[%s211 + $0x10] sm:$0xff]
        %v448 = vld [vmem:[%s211 + $0x18] sm:$0xff]
        %v449 = vld [vmem:[%s211 + $0x20] sm:$0xf]
        %v450 = vld [vmem:[%s211 + $0x24] sm:$0xff]
        %v451 = vld [vmem:[%s211 + $0x2c] sm:$0xff]
        %v452 = vld [vmem:[%s211 + $0x34] sm:$0xff]
        %v453 = vld [vmem:[%s211 + $0x3c] sm:$0xff]
        %v454 = vld [vmem:[%s211 + $0x44] sm:$0xf]
        %v465 = vunpack.c.l.b16 %v445
        %v466 = vunpack.c.h.b16 %v445
        %v467 = vunpack.c.l.b16 %v446
        %v468 = vunpack.c.h.b16 %v446
        %v469 = vunpack.c.l.b16 %v447
        %v470 = vunpack.c.h.b16 %v447
        %v471 = vunpack.c.l.b16 %v448
        %v472 = vunpack.c.h.b16 %v448
        %v473 = vunpack.c.l.b16 %v449
        %v474 = vunpack.c.l.b16 %v450
        %v475 = vunpack.c.h.b16 %v450
        %v476 = vunpack.c.l.b16 %v451
        %v477 = vunpack.c.h.b16 %v451
        %v478 = vunpack.c.l.b16 %v452
        %v479 = vunpack.c.h.b16 %v452
        %v480 = vunpack.c.l.b16 %v453
        %v481 = vunpack.c.h.b16 %v453
        %v482 = vunpack.c.l.b16 %v454
        %v483 = vpack.c.b16 %v474, %v465
        %v484 = vpack.c.b16 %v475, %v466
        %v485 = vpack.c.b16 %v476, %v467
        %v486 = vpack.c.b16 %v477, %v468
        %v487 = vpack.c.b16 %v478, %v469
        %v488 = vpack.c.b16 %v479, %v470
        %v489 = vpack.c.b16 %v480, %v471
        %v490 = vpack.c.b16 %v481, %v472
        %v491 = vpack.c.b16 %v482, %v473
        %v645 = vunpack.c.l.b16 %v221
        %v646 = vunpack.c.l.b16 %v222
        %v647 = vunpack.c.l.b16 %v223
        %v648 = vunpack.c.l.b16 %v224
        %v649 = vunpack.c.l.b16 %v225
        %v650 = vunpack.c.l.b16 %v226
        %v651 = vunpack.c.l.b16 %v227
        %v652 = vunpack.c.l.b16 %v228
        %v653 = vunpack.c.l.b16 %v229
        %v654 = vunpack.c.l.b16 %v230
        %v655 = vunpack.c.l.b16 %v231
        %v656 = vunpack.c.l.b16 %v232
        %v657 = vunpack.c.l.b16 %v233
        %v658 = vunpack.c.l.b16 %v234
        %v659 = vunpack.c.l.b16 %v235
        %v660 = vunpack.c.l.b16 %v236
        %v661 = vunpack.c.l.b16 %v237
        %v662 = vunpack.c.l.b16 %v238
        %v663 = vunpack.c.l.b16 %v239
        %v664 = vunpack.c.l.b16 %v240
        %v665 = vunpack.c.l.b16 %v241
        %v666 = vunpack.c.l.b16 %v242
        %v667 = vunpack.c.l.b16 %v243
        %v668 = vunpack.c.l.b16 %v244
        %v669 = vunpack.c.l.b16 %v245
        %v670 = vunpack.c.l.b16 %v246
        %v671 = vunpack.c.l.b16 %v247
        %v672 = vunpack.c.l.b16 %v248
        %v673 = vunpack.c.l.b16 %v249
        %v674 = vunpack.c.l.b16 %v250
        %v675 = vunpack.c.l.b16 %v251
        %v676 = vunpack.c.l.b16 %v252
        %v677 = vunpack.c.l.b16 %v253
        %v678 = vunpack.c.l.b16 %v254
        %v679 = vunpack.c.l.b16 %v255
        %v680 = vunpack.c.l.b16 %v256
        %v681 = vunpack.c.l.b16 %v257
        %v682 = vunpack.c.l.b16 %v258
        %v683 = vunpack.c.l.b16 %v259
        %v684 = vunpack.c.l.b16 %v260
        %v685 = vunpack.c.l.b16 %v261
        %v686 = vunpack.c.l.b16 %v262
        %v687 = vunpack.c.l.b16 %v263
        %v688 = vunpack.c.l.b16 %v264
        %v689 = vunpack.c.l.b16 %v265
        %v690 = vunpack.c.l.b16 %v266
        %v691 = vunpack.c.l.b16 %v267
        %v692 = vunpack.c.l.b16 %v268
        %v693 = vunpack.c.l.b16 %v269
        %v694 = vunpack.c.l.b16 %v270
        %v695 = vunpack.c.l.b16 %v271
        %v696 = vunpack.c.l.b16 %v272
        %v697 = vunpack.c.l.b16 %v273
        %v698 = vunpack.c.l.b16 %v274
        %v699 = vunpack.c.l.b16 %v275
        %v700 = vunpack.c.l.b16 %v276
        %v701 = vunpack.c.l.b16 %v277
        %v702 = vunpack.c.l.b16 %v278
        %v703 = vunpack.c.l.b16 %v279
        %v704 = vunpack.c.l.b16 %v280
        %v705 = vunpack.c.l.b16 %v281
        %v706 = vunpack.c.l.b16 %v282
        %v707 = vunpack.c.l.b16 %v283
        %v708 = vunpack.c.l.b16 %v284
        %v709 = vunpack.c.l.b16 %v285
        %v710 = vunpack.c.l.b16 %v286
        %v711 = vunpack.c.l.b16 %v287
        %v712 = vunpack.c.l.b16 %v288
        %v713 = vunpack.c.l.b16 %v289
        %v714 = vunpack.c.l.b16 %v290
        %v715 = vunpack.c.l.b16 %v291
        %v716 = vunpack.c.l.b16 %v292
        %v717 = vunpack.c.l.b16 %v293
        %v718 = vunpack.c.l.b16 %v294
        %v719 = vunpack.c.l.b16 %v295
        %v720 = vunpack.c.l.b16 %v296
        %v721 = vunpack.c.l.b16 %v297
        %v722 = vunpack.c.l.b16 %v298
        %v723 = vunpack.c.l.b16 %v299
        %v724 = vunpack.c.l.b16 %v300
        %v725 = vunpack.c.l.b16 %v301
        %v726 = vunpack.c.l.b16 %v302
        %v727 = vunpack.c.l.b16 %v303
        %v728 = vunpack.c.l.b16 %v304
        %v729 = vunpack.c.l.b16 %v305
        %v730 = vunpack.c.l.b16 %v306
        %v731 = vunpack.c.l.b16 %v307
        %v732 = vunpack.c.l.b16 %v308
        %v733 = vunpack.c.l.b16 %v309
        %v734 = vunpack.c.l.b16 %v310
        %v735 = vunpack.c.l.b16 %v311
        %v736 = vunpack.c.l.b16 %v312
        %v737 = vunpack.c.l.b16 %v313
        %v738 = vunpack.c.l.b16 %v314
        %v739 = vunpack.c.l.b16 %v315
        %v740 = vunpack.c.l.b16 %v316
        %v741 = vunpack.c.l.b16 %v317
        %v742 = vunpack.c.l.b16 %v318
        %v743 = vunpack.c.l.b16 %v319
        %v744 = vunpack.c.l.b16 %v320
        %v745 = vunpack.c.l.b16 %v321
        %v746 = vunpack.c.l.b16 %v322
        %v747 = vunpack.c.l.b16 %v323
        %v748 = vunpack.c.l.b16 %v324
        %v749 = vunpack.c.l.b16 %v325
        %v750 = vunpack.c.l.b16 %v326
        %v751 = vunpack.c.l.b16 %v327
        %v752 = vunpack.c.l.b16 %v328
        %v753 = vunpack.c.l.b16 %v329
        %v754 = vunpack.c.l.b16 %v330
        %v755 = vunpack.c.l.b16 %v331
        %v756 = vunpack.c.l.b16 %v332
        %v757 = vunpack.c.l.b16 %v333
        %v758 = vunpack.c.l.b16 %v334
        %v759 = vunpack.c.l.b16 %v335
        %v760 = vunpack.c.l.b16 %v336
        %v761 = vunpack.c.l.b16 %v337
        %v762 = vunpack.c.l.b16 %v338
        %v763 = vunpack.c.l.b16 %v339
        %v764 = vunpack.c.l.b16 %v340
        %v765 = vunpack.c.l.b16 %v341
        %v766 = vunpack.c.l.b16 %v342
        %v767 = vunpack.c.l.b16 %v343
        %v768 = vunpack.c.l.b16 %v344
        %v769 = vunpack.c.l.b16 %v345
        %v770 = vunpack.c.l.b16 %v346
        %v771 = vunpack.c.l.b16 %v347
        %v772 = vunpack.c.l.b16 %v348
        %v773 = vunpack.c.l.b16 %v349
        %v774 = vunpack.c.l.b16 %v350
        %v775 = vunpack.c.l.b16 %v351
        %v776 = vunpack.c.l.b16 %v352
        %v777 = vunpack.c.l.b16 %v353
        %v778 = vunpack.c.l.b16 %v354
        %v779 = vunpack.c.l.b16 %v355
        %v780 = vunpack.c.l.b16 %v356
        %v781 = vunpack.c.l.b16 %v357
        %v782 = vunpack.c.l.b16 %v358
        %v783 = vunpack.c.l.b16 %v359
        %v784 = vunpack.c.l.b16 %v360
        %v785 = vunpack.c.l.b16 %v361
        %v786 = vunpack.c.l.b16 %v362
        %v787 = vunpack.c.l.b16 %v363
        %v788 = vunpack.c.l.b16 %v364
        %v789 = vpack.c.b16 %v646, %v645
        %v790 = vpack.c.b16 %v648, %v647
        %v791 = vpack.c.b16 %v650, %v649
        %v792 = vpack.c.b16 %v652, %v651
        %v793 = vpack.c.b16 %v654, %v653
        %v794 = vpack.c.b16 %v656, %v655
        %v795 = vpack.c.b16 %v658, %v657
        %v796 = vpack.c.b16 %v660, %v659
        %v797 = vpack.c.b16 %v662, %v661
        %v798 = vpack.c.b16 %v664, %v663
        %v799 = vpack.c.b16 %v666, %v665
        %v800 = vpack.c.b16 %v668, %v667
        %v801 = vpack.c.b16 %v670, %v669
        %v802 = vpack.c.b16 %v672, %v671
        %v803 = vpack.c.b16 %v674, %v673
        %v804 = vpack.c.b16 %v676, %v675
        %v805 = vpack.c.b16 %v678, %v677
        %v806 = vpack.c.b16 %v680, %v679
        %v807 = vpack.c.b16 %v682, %v681
        %v808 = vpack.c.b16 %v684, %v683
        %v809 = vpack.c.b16 %v686, %v685
        %v810 = vpack.c.b16 %v688, %v687
        %v811 = vpack.c.b16 %v690, %v689
        %v812 = vpack.c.b16 %v692, %v691
        %v813 = vpack.c.b16 %v694, %v693
        %v814 = vpack.c.b16 %v696, %v695
        %v815 = vpack.c.b16 %v698, %v697
        %v816 = vpack.c.b16 %v700, %v699
        %v817 = vpack.c.b16 %v702, %v701
        %v818 = vpack.c.b16 %v704, %v703
        %v819 = vpack.c.b16 %v706, %v705
        %v820 = vpack.c.b16 %v708, %v707
        %v821 = vpack.c.b16 %v710, %v709
        %v822 = vpack.c.b16 %v712, %v711
        %v823 = vpack.c.b16 %v714, %v713
        %v824 = vpack.c.b16 %v716, %v715
        %v825 = vpack.c.b16 %v718, %v717
        %v826 = vpack.c.b16 %v720, %v719
        %v827 = vpack.c.b16 %v722, %v721
        %v828 = vpack.c.b16 %v724, %v723
        %v829 = vpack.c.b16 %v726, %v725
        %v830 = vpack.c.b16 %v728, %v727
        %v831 = vpack.c.b16 %v730, %v729
        %v832 = vpack.c.b16 %v732, %v731
        %v833 = vpack.c.b16 %v734, %v733
        %v834 = vpack.c.b16 %v736, %v735
        %v835 = vpack.c.b16 %v738, %v737
        %v836 = vpack.c.b16 %v740, %v739
        %v837 = vpack.c.b16 %v742, %v741
        %v838 = vpack.c.b16 %v744, %v743
        %v839 = vpack.c.b16 %v746, %v745
        %v840 = vpack.c.b16 %v748, %v747
        %v841 = vpack.c.b16 %v750, %v749
        %v842 = vpack.c.b16 %v752, %v751
        %v843 = vpack.c.b16 %v754, %v753
        %v844 = vpack.c.b16 %v756, %v755
        %v845 = vpack.c.b16 %v758, %v757
        %v846 = vpack.c.b16 %v760, %v759
        %v847 = vpack.c.b16 %v762, %v761
        %v848 = vpack.c.b16 %v764, %v763
        %v849 = vpack.c.b16 %v766, %v765
        %v850 = vpack.c.b16 %v768, %v767
        %v851 = vpack.c.b16 %v770, %v769
        %v852 = vpack.c.b16 %v772, %v771
        %v853 = vpack.c.b16 %v774, %v773
        %v854 = vpack.c.b16 %v776, %v775
        %v855 = vpack.c.b16 %v778, %v777
        %v856 = vpack.c.b16 %v780, %v779
        %v857 = vpack.c.b16 %v782, %v781
        %v858 = vpack.c.b16 %v784, %v783
        %v859 = vpack.c.b16 %v786, %v785
        %v860 = vpack.c.b16 %v788, %v787
        %933 = vmatprep.subr.bf16.mxu0 0
        %934 = vmatpush1.bf16.msra.mxu0 %v789
        %935 = vmatprep.subr.bf16.mxu0 0
        %936 = vmatpush1.bf16.msra.mxu0 %v790
        %937 = vmatprep.subr.bf16.mxu0 0
        %938 = vmatpush1.bf16.msra.mxu0 %v791
        %939 = vmatprep.subr.bf16.mxu0 0
        %940 = vmatpush1.bf16.msra.mxu0 %v792
        %941 = vmatprep.subr.bf16.mxu0 0
        %942 = vmatpush1.bf16.msra.mxu0 %v793
        %943 = vmatprep.subr.bf16.mxu0 0
        %944 = vmatpush1.bf16.msra.mxu0 %v794
        %945 = vmatprep.subr.bf16.mxu0 0
        %946 = vmatpush1.bf16.msra.mxu0 %v795
        %947 = vmatprep.subr.bf16.mxu0 0
        %948 = vmatpush1.bf16.msra.mxu0 %v796
        %949 = vmatprep.subr.bf16.mxu0 0
        %950 = vmatpush1.bf16.msra.mxu0 %v797
        %951 = vmatprep.subr.bf16.mxu0 0
        %952 = vmatpush1.bf16.msra.mxu0 %v798
        %953 = vmatprep.subr.bf16.mxu0 0
        %954 = vmatpush1.bf16.msra.mxu0 %v799
        %955 = vmatprep.subr.bf16.mxu0 0
        %956 = vmatpush1.bf16.msra.mxu0 %v800
        %957 = vmatprep.subr.bf16.mxu0 0
        %958 = vmatpush1.bf16.msra.mxu0 %v801
        %959 = vmatprep.subr.bf16.mxu0 0
        %960 = vmatpush1.bf16.msra.mxu0 %v802
        %961 = vmatprep.subr.bf16.mxu0 0
        %962 = vmatpush1.bf16.msra.mxu0 %v803
        %963 = vmatprep.subr.bf16.mxu0 0
        %964 = vmatpush1.bf16.msra.mxu0 %v804
        %965 = vmatprep.mubr.bf16.mxu0 %v484
        %966 = vmatmul.mubr.bf16.gmra.mrb[0].mxu0 %v483
        %v967 = vpop.f32.mrb[0].mxu0
        %v968 = vadd.f32 0.0, %v967
        %v969 = vpop.f32.mrb[0].mxu0
        %v970 = vpop.f32.mrb[0].mxu0
        %v971 = vadd.f32 0.0, %v970
        %v972 = vpop.f32.mrb[0].mxu0
        %973 = vdwg.mxu0
        %974 = vmatprep.subr.bf16.mxu0 0
        %975 = vmatpush1.bf16.msra.mxu0 %v805
        %976 = vmatprep.subr.bf16.mxu0 0
        %977 = vmatpush1.bf16.msra.mxu0 %v806
        %978 = vmatprep.subr.bf16.mxu0 0
        %979 = vmatpush1.bf16.msra.mxu0 %v807
        %980 = vmatprep.subr.bf16.mxu0 0
        %981 = vmatpush1.bf16.msra.mxu0 %v808
        %982 = vmatprep.subr.bf16.mxu0 0
        %983 = vmatpush1.bf16.msra.mxu0 %v809
        %984 = vmatprep.subr.bf16.mxu0 0
        %985 = vmatpush1.bf16.msra.mxu0 %v810
        %986 = vmatprep.subr.bf16.mxu0 0
        %987 = vmatpush1.bf16.msra.mxu0 %v811
        %988 = vmatprep.subr.bf16.mxu0 0
        %989 = vmatpush1.bf16.msra.mxu0 %v812
        %990 = vmatprep.subr.bf16.mxu0 0
        %991 = vmatpush1.bf16.msra.mxu0 %v813
        %992 = vmatprep.subr.bf16.mxu0 0
        %993 = vmatpush1.bf16.msra.mxu0 %v814
        %994 = vmatprep.subr.bf16.mxu0 0
        %995 = vmatpush1.bf16.msra.mxu0 %v815
        %996 = vmatprep.subr.bf16.mxu0 0
        %997 = vmatpush1.bf16.msra.mxu0 %v816
        %998 = vmatprep.subr.bf16.mxu0 0
        %999 = vmatpush1.bf16.msra.mxu0 %v817
        %1000 = vmatprep.subr.bf16.mxu0 0
        %1001 = vmatpush1.bf16.msra.mxu0 %v818
        %1002 = vmatprep.subr.bf16.mxu0 0
        %1003 = vmatpush1.bf16.msra.mxu0 %v819
        %1004 = vmatprep.subr.bf16.mxu0 0
        %1005 = vmatpush1.bf16.msra.mxu0 %v820
        %1006 = vmatprep.mubr.bf16.mxu0 %v486
        %1007 = vmatmul.mubr.bf16.gmra.mrb[0].mxu0 %v485
        %v1008 = vpop.f32.mrb[0].mxu0
        %v1009 = vadd.f32 %v968, %v1008
        %v1010 = vpop.f32.mrb[0].mxu0
        %v1011 = vpop.f32.mrb[0].mxu0
        %v1012 = vadd.f32 %v971, %v1011
        %v1013 = vpop.f32.mrb[0].mxu0
        %1014 = vdwg.mxu0
        %1015 = vmatprep.subr.bf16.mxu0 0
        %1016 = vmatpush1.bf16.msra.mxu0 %v821
        %1017 = vmatprep.subr.bf16.mxu0 0
        %1018 = vmatpush1.bf16.msra.mxu0 %v822
        %1019 = vmatprep.subr.bf16.mxu0 0
        %1020 = vmatpush1.bf16.msra.mxu0 %v823
        %1021 = vmatprep.subr.bf16.mxu0 0
        %1022 = vmatpush1.bf16.msra.mxu0 %v824
        %1023 = vmatprep.subr.bf16.mxu0 0
        %1024 = vmatpush1.bf16.msra.mxu0 %v825
        %1025 = vmatprep.subr.bf16.mxu0 0
        %1026 = vmatpush1.bf16.msra.mxu0 %v826
        %1027 = vmatprep.subr.bf16.mxu0 0
        %1028 = vmatpush1.bf16.msra.mxu0 %v827
        %1029 = vmatprep.subr.bf16.mxu0 0
        %1030 = vmatpush1.bf16.msra.mxu0 %v828
        %1031 = vmatprep.subr.bf16.mxu0 0
        %1032 = vmatpush1.bf16.msra.mxu0 %v829
        %1033 = vmatprep.subr.bf16.mxu0 0
        %1034 = vmatpush1.bf16.msra.mxu0 %v830
        %1035 = vmatprep.subr.bf16.mxu0 0
        %1036 = vmatpush1.bf16.msra.mxu0 %v831
        %1037 = vmatprep.subr.bf16.mxu0 0
        %1038 = vmatpush1.bf16.msra.mxu0 %v832
        %1039 = vmatprep.subr.bf16.mxu0 0
        %1040 = vmatpush1.bf16.msra.mxu0 %v833
        %1041 = vmatprep.subr.bf16.mxu0 0
        %1042 = vmatpush1.bf16.msra.mxu0 %v834
        %1043 = vmatprep.subr.bf16.mxu0 0
        %1044 = vmatpush1.bf16.msra.mxu0 %v835
        %1045 = vmatprep.subr.bf16.mxu0 0
        %1046 = vmatpush1.bf16.msra.mxu0 %v836
        %1047 = vmatprep.mubr.bf16.mxu0 %v488
        %1048 = vmatmul.mubr.bf16.gmra.mrb[0].mxu0 %v487
        %v1049 = vpop.f32.mrb[0].mxu0
        %v1050 = vadd.f32 %v1009, %v1049
        %v1051 = vpop.f32.mrb[0].mxu0
        %v1052 = vpop.f32.mrb[0].mxu0
        %v1053 = vadd.f32 %v1012, %v1052
        %v1054 = vpop.f32.mrb[0].mxu0
        %1055 = vdwg.mxu0
        %1056 = vmatprep.subr.bf16.mxu0 0
        %1057 = vmatpush1.bf16.msra.mxu0 %v837
        %1058 = vmatprep.subr.bf16.mxu0 0
        %1059 = vmatpush1.bf16.msra.mxu0 %v838
        %1060 = vmatprep.subr.bf16.mxu0 0
        %1061 = vmatpush1.bf16.msra.mxu0 %v839
        %1062 = vmatprep.subr.bf16.mxu0 0
        %1063 = vmatpush1.bf16.msra.mxu0 %v840
        %1064 = vmatprep.subr.bf16.mxu0 0
        %1065 = vmatpush1.bf16.msra.mxu0 %v841
        %1066 = vmatprep.subr.bf16.mxu0 0
        %1067 = vmatpush1.bf16.msra.mxu0 %v842
        %1068 = vmatprep.subr.bf16.mxu0 0
        %1069 = vmatpush1.bf16.msra.mxu0 %v843
        %1070 = vmatprep.subr.bf16.mxu0 0
        %1071 = vmatpush1.bf16.msra.mxu0 %v844
        %1072 = vmatprep.subr.bf16.mxu0 0
        %1073 = vmatpush1.bf16.msra.mxu0 %v845
        %1074 = vmatprep.subr.bf16.mxu0 0
        %1075 = vmatpush1.bf16.msra.mxu0 %v846
        %1076 = vmatprep.subr.bf16.mxu0 0
        %1077 = vmatpush1.bf16.msra.mxu0 %v847
        %1078 = vmatprep.subr.bf16.mxu0 0
        %1079 = vmatpush1.bf16.msra.mxu0 %v848
        %1080 = vmatprep.subr.bf16.mxu0 0
        %1081 = vmatpush1.bf16.msra.mxu0 %v849
        %1082 = vmatprep.subr.bf16.mxu0 0
        %1083 = vmatpush1.bf16.msra.mxu0 %v850
        %1084 = vmatprep.subr.bf16.mxu0 0
        %1085 = vmatpush1.bf16.msra.mxu0 %v851
        %1086 = vmatprep.subr.bf16.mxu0 0
        %1087 = vmatpush1.bf16.msra.mxu0 %v852
        %1088 = vmatprep.mubr.bf16.mxu0 %v490
        %1089 = vmatmul.mubr.bf16.gmra.mrb[0].mxu0 %v489
        %v1090 = vpop.f32.mrb[0].mxu0
        %v1091 = vadd.f32 %v1050, %v1090
        %v1092 = vpop.f32.mrb[0].mxu0
        %v1093 = vpop.f32.mrb[0].mxu0
        %v1094 = vadd.f32 %v1053, %v1093
        %v1095 = vpop.f32.mrb[0].mxu0
        %1096 = vdwg.mxu0
        %1097 = vmatprep.subr.bf16.mxu0 0
        %1098 = vmatpush1.bf16.msra.mxu0 %v853
        %1099 = vmatprep.subr.bf16.mxu0 0
        %1100 = vmatpush1.bf16.msra.mxu0 %v854
        %1101 = vmatprep.subr.bf16.mxu0 0
        %1102 = vmatpush1.bf16.msra.mxu0 %v855
        %1103 = vmatprep.subr.bf16.mxu0 0
        %1104 = vmatpush1.bf16.msra.mxu0 %v856
        %1105 = vmatprep.subr.bf16.mxu0 0
        %1106 = vmatpush1.bf16.msra.mxu0 %v857
        %1107 = vmatprep.subr.bf16.mxu0 0
        %1108 = vmatpush1.bf16.msra.mxu0 %v858
        %1109 = vmatprep.subr.bf16.mxu0 0
        %1110 = vmatpush1.bf16.msra.mxu0 %v859
        %1111 = vmatprep.subr.bf16.mxu0 0
        %1112 = vmatpush1.bf16.msra.mxu0 %v860
        %1113 = vmatprep.subr.bf16.mxu0 0
        %1114 = vmatpush1.bf16.msra.mxu0 0
        %1115 = vmatprep.subr.bf16.mxu0 0
        %1116 = vmatpush1.bf16.msra.mxu0 0
        %1117 = vmatprep.subr.bf16.mxu0 0
        %1118 = vmatpush1.bf16.msra.mxu0 0
        %1119 = vmatprep.subr.bf16.mxu0 0
        %1120 = vmatpush1.bf16.msra.mxu0 0
        %1121 = vmatprep.subr.bf16.mxu0 0
        %1122 = vmatpush1.bf16.msra.mxu0 0
        %1123 = vmatprep.subr.bf16.mxu0 0
        %1124 = vmatpush1.bf16.msra.mxu0 0
        %1125 = vmatprep.subr.bf16.mxu0 0
        %1126 = vmatpush1.bf16.msra.mxu0 0
        %1127 = vmatprep.subr.bf16.mxu0 0
        %1128 = vmatpush1.bf16.msra.mxu0 0
        %1129 = vmatprep.mubr.bf16.mxu0 0
        %1130 = vmatmul.mubr.bf16.gmra.mrb[0].mxu0 %v491
        %v1131 = vpop.f32.mrb[0].mxu0
        %v1132 = vadd.f32 %v1091, %v1131
        %v1133 = vpop.f32.mrb[0].mxu0
        %v1134 = vpop.f32.mrb[0].mxu0
        %v1135 = vadd.f32 %v1094, %v1134
        %v1136 = vpop.f32.mrb[0].mxu0
        %1137 = vdwg.mxu0
        %v1138 = vpack.c.bf16 %v1135, %v1132
        %v1219 = vunpack.c.l.b16 %v365
        %v1220 = vunpack.c.h.b16 %v365
        %v1221 = vunpack.c.l.b16 %v366
        %v1222 = vunpack.c.h.b16 %v366
        %v1223 = vunpack.c.l.b16 %v367
        %v1224 = vunpack.c.h.b16 %v367
        %v1225 = vunpack.c.l.b16 %v368
        %v1226 = vunpack.c.h.b16 %v368
        %v1227 = vunpack.c.l.b16 %v369
        %v1228 = vunpack.c.l.b16 %v370
        %v1229 = vunpack.c.h.b16 %v370
        %v1230 = vunpack.c.l.b16 %v371
        %v1231 = vunpack.c.h.b16 %v371
        %v1232 = vunpack.c.l.b16 %v372
        %v1233 = vunpack.c.h.b16 %v372
        %v1234 = vunpack.c.l.b16 %v373
        %v1235 = vunpack.c.h.b16 %v373
        %v1236 = vunpack.c.l.b16 %v374
        %v1237 = vunpack.c.l.b16 %v375
        %v1238 = vunpack.c.h.b16 %v375
        %v1239 = vunpack.c.l.b16 %v376
        %v1240 = vunpack.c.h.b16 %v376
        %v1241 = vunpack.c.l.b16 %v377
        %v1242 = vunpack.c.h.b16 %v377
        %v1243 = vunpack.c.l.b16 %v378
        %v1244 = vunpack.c.h.b16 %v378
        %v1245 = vunpack.c.l.b16 %v379
        %v1246 = vunpack.c.l.b16 %v380
        %v1247 = vunpack.c.h.b16 %v380
        %v1248 = vunpack.c.l.b16 %v381
        %v1249 = vunpack.c.h.b16 %v381
        %v1250 = vunpack.c.l.b16 %v382
        %v1251 = vunpack.c.h.b16 %v382
        %v1252 = vunpack.c.l.b16 %v383
        %v1253 = vunpack.c.h.b16 %v383
        %v1254 = vunpack.c.l.b16 %v384
        %v1255 = vunpack.c.l.b16 %v385
        %v1256 = vunpack.c.h.b16 %v385
        %v1257 = vunpack.c.l.b16 %v386
        %v1258 = vunpack.c.h.b16 %v386
        %v1259 = vunpack.c.l.b16 %v387
        %v1260 = vunpack.c.h.b16 %v387
        %v1261 = vunpack.c.l.b16 %v388
        %v1262 = vunpack.c.h.b16 %v388
        %v1263 = vunpack.c.l.b16 %v389
        %v1264 = vunpack.c.l.b16 %v390
        %v1265 = vunpack.c.h.b16 %v390
        %v1266 = vunpack.c.l.b16 %v391
        %v1267 = vunpack.c.h.b16 %v391
        %v1268 = vunpack.c.l.b16 %v392
        %v1269 = vunpack.c.h.b16 %v392
        %v1270 = vunpack.c.l.b16 %v393
        %v1271 = vunpack.c.h.b16 %v393
        %v1272 = vunpack.c.l.b16 %v394
        %v1273 = vunpack.c.l.b16 %v395
        %v1274 = vunpack.c.h.b16 %v395
        %v1275 = vunpack.c.l.b16 %v396
        %v1276 = vunpack.c.h.b16 %v396
        %v1277 = vunpack.c.l.b16 %v397
        %v1278 = vunpack.c.h.b16 %v397
        %v1279 = vunpack.c.l.b16 %v398
        %v1280 = vunpack.c.h.b16 %v398
        %v1281 = vunpack.c.l.b16 %v399
        %v1282 = vunpack.c.l.b16 %v400
        %v1283 = vunpack.c.h.b16 %v400
        %v1284 = vunpack.c.l.b16 %v401
        %v1285 = vunpack.c.h.b16 %v401
        %v1286 = vunpack.c.l.b16 %v402
        %v1287 = vunpack.c.h.b16 %v402
        %v1288 = vunpack.c.l.b16 %v403
        %v1289 = vunpack.c.h.b16 %v403
        %v1290 = vunpack.c.l.b16 %v404
        %v1291 = vunpack.c.l.b16 %v405
        %v1292 = vunpack.c.h.b16 %v405
        %v1293 = vunpack.c.l.b16 %v406
        %v1294 = vunpack.c.h.b16 %v406
        %v1295 = vunpack.c.l.b16 %v407
        %v1296 = vunpack.c.h.b16 %v407
        %v1297 = vunpack.c.l.b16 %v408
        %v1298 = vunpack.c.h.b16 %v408
        %v1299 = vunpack.c.l.b16 %v409
        %v1300 = vunpack.c.l.b16 %v410
        %v1301 = vunpack.c.h.b16 %v410
        %v1302 = vunpack.c.l.b16 %v411
        %v1303 = vunpack.c.h.b16 %v411
        %v1304 = vunpack.c.l.b16 %v412
        %v1305 = vunpack.c.h.b16 %v412
        %v1306 = vunpack.c.l.b16 %v413
        %v1307 = vunpack.c.h.b16 %v413
        %v1308 = vunpack.c.l.b16 %v414
        %v1309 = vunpack.c.l.b16 %v415
        %v1310 = vunpack.c.h.b16 %v415
        %v1311 = vunpack.c.l.b16 %v416
        %v1312 = vunpack.c.h.b16 %v416
        %v1313 = vunpack.c.l.b16 %v417
        %v1314 = vunpack.c.h.b16 %v417
        %v1315 = vunpack.c.l.b16 %v418
        %v1316 = vunpack.c.h.b16 %v418
        %v1317 = vunpack.c.l.b16 %v419
        %v1318 = vunpack.c.l.b16 %v420
        %v1319 = vunpack.c.h.b16 %v420
        %v1320 = vunpack.c.l.b16 %v421
        %v1321 = vunpack.c.h.b16 %v421
        %v1322 = vunpack.c.l.b16 %v422
        %v1323 = vunpack.c.h.b16 %v422
        %v1324 = vunpack.c.l.b16 %v423
        %v1325 = vunpack.c.h.b16 %v423
        %v1326 = vunpack.c.l.b16 %v424
        %v1327 = vunpack.c.l.b16 %v425
        %v1328 = vunpack.c.h.b16 %v425
        %v1329 = vunpack.c.l.b16 %v426
        %v1330 = vunpack.c.h.b16 %v426
        %v1331 = vunpack.c.l.b16 %v427
        %v1332 = vunpack.c.h.b16 %v427
        %v1333 = vunpack.c.l.b16 %v428
        %v1334 = vunpack.c.h.b16 %v428
        %v1335 = vunpack.c.l.b16 %v429
        %v1336 = vunpack.c.l.b16 %v430
        %v1337 = vunpack.c.h.b16 %v430
        %v1338 = vunpack.c.l.b16 %v431
        %v1339 = vunpack.c.h.b16 %v431
        %v1340 = vunpack.c.l.b16 %v432
        %v1341 = vunpack.c.h.b16 %v432
        %v1342 = vunpack.c.l.b16 %v433
        %v1343 = vunpack.c.h.b16 %v433
        %v1344 = vunpack.c.l.b16 %v434
        %v1345 = vunpack.c.l.b16 %v435
        %v1346 = vunpack.c.h.b16 %v435
        %v1347 = vunpack.c.l.b16 %v436
        %v1348 = vunpack.c.h.b16 %v436
        %v1349 = vunpack.c.l.b16 %v437
        %v1350 = vunpack.c.h.b16 %v437
        %v1351 = vunpack.c.l.b16 %v438
        %v1352 = vunpack.c.h.b16 %v438
        %v1353 = vunpack.c.l.b16 %v439
        %v1354 = vunpack.c.l.b16 %v440
        %v1355 = vunpack.c.h.b16 %v440
        %v1356 = vunpack.c.l.b16 %v441
        %v1357 = vunpack.c.h.b16 %v441
        %v1358 = vunpack.c.l.b16 %v442
        %v1359 = vunpack.c.h.b16 %v442
        %v1360 = vunpack.c.l.b16 %v443
        %v1361 = vunpack.c.h.b16 %v443
        %v1362 = vunpack.c.l.b16 %v444
        %v1363 = vpack.c.b16 %v1228, %v1219
        %v1364 = vpack.c.b16 %v1229, %v1220
        %v1365 = vpack.c.b16 %v1230, %v1221
        %v1366 = vpack.c.b16 %v1231, %v1222
        %v1367 = vpack.c.b16 %v1232, %v1223
        %v1368 = vpack.c.b16 %v1233, %v1224
        %v1369 = vpack.c.b16 %v1234, %v1225
        %v1370 = vpack.c.b16 %v1235, %v1226
        %v1371 = vpack.c.b16 %v1236, %v1227
        %v1372 = vpack.c.b16 %v1246, %v1237
        %v1373 = vpack.c.b16 %v1247, %v1238
        %v1374 = vpack.c.b16 %v1248, %v1239
        %v1375 = vpack.c.b16 %v1249, %v1240
        %v1376 = vpack.c.b16 %v1250, %v1241
        %v1377 = vpack.c.b16 %v1251, %v1242
        %v1378 = vpack.c.b16 %v1252, %v1243
        %v1379 = vpack.c.b16 %v1253, %v1244
        %v1380 = vpack.c.b16 %v1254, %v1245
        %v1381 = vpack.c.b16 %v1264, %v1255
        %v1382 = vpack.c.b16 %v1265, %v1256
        %v1383 = vpack.c.b16 %v1266, %v1257
        %v1384 = vpack.c.b16 %v1267, %v1258
        %v1385 = vpack.c.b16 %v1268, %v1259
        %v1386 = vpack.c.b16 %v1269, %v1260
        %v1387 = vpack.c.b16 %v1270, %v1261
        %v1388 = vpack.c.b16 %v1271, %v1262
        %v1389 = vpack.c.b16 %v1272, %v1263
        %v1390 = vpack.c.b16 %v1282, %v1273
        %v1391 = vpack.c.b16 %v1283, %v1274
        %v1392 = vpack.c.b16 %v1284, %v1275
        %v1393 = vpack.c.b16 %v1285, %v1276
        %v1394 = vpack.c.b16 %v1286, %v1277
        %v1395 = vpack.c.b16 %v1287, %v1278
        %v1396 = vpack.c.b16 %v1288, %v1279
        %v1397 = vpack.c.b16 %v1289, %v1280
        %v1398 = vpack.c.b16 %v1290, %v1281
        %v1399 = vpack.c.b16 %v1300, %v1291
        %v1400 = vpack.c.b16 %v1301, %v1292
        %v1401 = vpack.c.b16 %v1302, %v1293
        %v1402 = vpack.c.b16 %v1303, %v1294
        %v1403 = vpack.c.b16 %v1304, %v1295
        %v1404 = vpack.c.b16 %v1305, %v1296
        %v1405 = vpack.c.b16 %v1306, %v1297
        %v1406 = vpack.c.b16 %v1307, %v1298
        %v1407 = vpack.c.b16 %v1308, %v1299
        %v1408 = vpack.c.b16 %v1318, %v1309
        %v1409 = vpack.c.b16 %v1319, %v1310
        %v1410 = vpack.c.b16 %v1320, %v1311
        %v1411 = vpack.c.b16 %v1321, %v1312
        %v1412 = vpack.c.b16 %v1322, %v1313
        %v1413 = vpack.c.b16 %v1323, %v1314
        %v1414 = vpack.c.b16 %v1324, %v1315
        %v1415 = vpack.c.b16 %v1325, %v1316
        %v1416 = vpack.c.b16 %v1326, %v1317
        %v1417 = vpack.c.b16 %v1336, %v1327
        %v1418 = vpack.c.b16 %v1337, %v1328
        %v1419 = vpack.c.b16 %v1338, %v1329
        %v1420 = vpack.c.b16 %v1339, %v1330
        %v1421 = vpack.c.b16 %v1340, %v1331
        %v1422 = vpack.c.b16 %v1341, %v1332
        %v1423 = vpack.c.b16 %v1342, %v1333
        %v1424 = vpack.c.b16 %v1343, %v1334
        %v1425 = vpack.c.b16 %v1344, %v1335
        %v1426 = vpack.c.b16 %v1354, %v1345
        %v1427 = vpack.c.b16 %v1355, %v1346
        %v1428 = vpack.c.b16 %v1356, %v1347
        %v1429 = vpack.c.b16 %v1357, %v1348
        %v1430 = vpack.c.b16 %v1358, %v1349
        %v1431 = vpack.c.b16 %v1359, %v1350
        %v1432 = vpack.c.b16 %v1360, %v1351
        %v1433 = vpack.c.b16 %v1361, %v1352
        %v1434 = vpack.c.b16 %v1362, %v1353
        %1507 = vmatprep.subr.bf16.mxu0 %v1364
        %1508 = vmatpush1.bf16.msra.mxu0 %v1363
        %1509 = vmatprep.subr.bf16.mxu0 %v1373
        %1510 = vmatpush1.bf16.msra.mxu0 %v1372
        %1511 = vmatprep.subr.bf16.mxu0 %v1382
        %1512 = vmatpush1.bf16.msra.mxu0 %v1381
        %1513 = vmatprep.subr.bf16.mxu0 %v1391
        %1514 = vmatpush1.bf16.msra.mxu0 %v1390
        %1515 = vmatprep.subr.bf16.mxu0 %v1400
        %1516 = vmatpush1.bf16.msra.mxu0 %v1399
        %1517 = vmatprep.subr.bf16.mxu0 %v1409
        %1518 = vmatpush1.bf16.msra.mxu0 %v1408
        %1519 = vmatprep.subr.bf16.mxu0 %v1418
        %1520 = vmatpush1.bf16.msra.mxu0 %v1417
        %1521 = vmatprep.subr.bf16.mxu0 %v1427
        %1522 = vmatpush1.bf16.msra.mxu0 %v1426
        %1523 = vmatprep.subr.bf16.mxu0 0
        %1524 = vmatpush1.bf16.msra.mxu0 0
        %1525 = vmatprep.subr.bf16.mxu0 0
        %1526 = vmatpush1.bf16.msra.mxu0 0
        %1527 = vmatprep.subr.bf16.mxu0 0
        %1528 = vmatpush1.bf16.msra.mxu0 0
        %1529 = vmatprep.subr.bf16.mxu0 0
        %1530 = vmatpush1.bf16.msra.mxu0 0
        %1531 = vmatprep.subr.bf16.mxu0 0
        %1532 = vmatpush1.bf16.msra.mxu0 0
        %1533 = vmatprep.subr.bf16.mxu0 0
        %1534 = vmatpush1.bf16.msra.mxu0 0
        %1535 = vmatprep.subr.bf16.mxu0 0
        %1536 = vmatpush1.bf16.msra.mxu0 0
        %1537 = vmatprep.subr.bf16.mxu0 0
        %1538 = vmatpush1.bf16.msra.mxu0 0
        %1539 = vmatprep.mubr.bf16.mxu0 0
        %1540 = vmatmul.mubr.bf16.gmra.mrb[0].mxu0 %v1138
        %v1541 = vpop.f32.mrb[0].mxu0
        %v1542 = vadd.f32 0.0, %v1541
        %v1543 = vpop.f32.mrb[0].mxu0
        %v1544 = vadd.f32 0.0, %v1543
        %v1545 = vpop.f32.mrb[0].mxu0
        %v1546 = vadd.f32 0.0, %v1545
        %v1547 = vpop.f32.mrb[0].mxu0
        %v1548 = vadd.f32 0.0, %v1547
        %1549 = vdwg.mxu0
        %1550 = vmatprep.subr.bf16.mxu0 %v1366
        %1551 = vmatpush1.bf16.msra.mxu0 %v1365
        %1552 = vmatprep.subr.bf16.mxu0 %v1375
        %1553 = vmatpush1.bf16.msra.mxu0 %v1374
        %1554 = vmatprep.subr.bf16.mxu0 %v1384
        %1555 = vmatpush1.bf16.msra.mxu0 %v1383
        %1556 = vmatprep.subr.bf16.mxu0 %v1393
        %1557 = vmatpush1.bf16.msra.mxu0 %v1392
        %1558 = vmatprep.subr.bf16.mxu0 %v1402
        %1559 = vmatpush1.bf16.msra.mxu0 %v1401
        %1560 = vmatprep.subr.bf16.mxu0 %v1411
        %1561 = vmatpush1.bf16.msra.mxu0 %v1410
        %1562 = vmatprep.subr.bf16.mxu0 %v1420
        %1563 = vmatpush1.bf16.msra.mxu0 %v1419
        %1564 = vmatprep.subr.bf16.mxu0 %v1429
        %1565 = vmatpush1.bf16.msra.mxu0 %v1428
        %1566 = vmatprep.subr.bf16.mxu0 0
        %1567 = vmatpush1.bf16.msra.mxu0 0
        %1568 = vmatprep.subr.bf16.mxu0 0
        %1569 = vmatpush1.bf16.msra.mxu0 0
        %1570 = vmatprep.subr.bf16.mxu0 0
        %1571 = vmatpush1.bf16.msra.mxu0 0
        %1572 = vmatprep.subr.bf16.mxu0 0
        %1573 = vmatpush1.bf16.msra.mxu0 0
        %1574 = vmatprep.subr.bf16.mxu0 0
        %1575 = vmatpush1.bf16.msra.mxu0 0
        %1576 = vmatprep.subr.bf16.mxu0 0
        %1577 = vmatpush1.bf16.msra.mxu0 0
        %1578 = vmatprep.subr.bf16.mxu0 0
        %1579 = vmatpush1.bf16.msra.mxu0 0
        %1580 = vmatprep.subr.bf16.mxu0 0
        %1581 = vmatpush1.bf16.msra.mxu0 0
        %1582 = vmatprep.mubr.bf16.mxu0 0
        %1583 = vmatmul.mubr.bf16.gmra.mrb[0].mxu0 %v1138
        %v1584 = vpop.f32.mrb[0].mxu0
        %v1585 = vadd.f32 0.0, %v1584
        %v1586 = vpop.f32.mrb[0].mxu0
        %v1587 = vadd.f32 0.0, %v1586
        %v1588 = vpop.f32.mrb[0].mxu0
        %v1589 = vadd.f32 0.0, %v1588
        %v1590 = vpop.f32.mrb[0].mxu0
        %v1591 = vadd.f32 0.0, %v1590
        %1592 = vdwg.mxu0
        %1593 = vmatprep.subr.bf16.mxu0 %v1368
        %1594 = vmatpush1.bf16.msra.mxu0 %v1367
        %1595 = vmatprep.subr.bf16.mxu0 %v1377
        %1596 = vmatpush1.bf16.msra.mxu0 %v1376
        %1597 = vmatprep.subr.bf16.mxu0 %v1386
        %1598 = vmatpush1.bf16.msra.mxu0 %v1385
        %1599 = vmatprep.subr.bf16.mxu0 %v1395
        %1600 = vmatpush1.bf16.msra.mxu0 %v1394
        %1601 = vmatprep.subr.bf16.mxu0 %v1404
        %1602 = vmatpush1.bf16.msra.mxu0 %v1403
        %1603 = vmatprep.subr.bf16.mxu0 %v1413
        %1604 = vmatpush1.bf16.msra.mxu0 %v1412
        %1605 = vmatprep.subr.bf16.mxu0 %v1422
        %1606 = vmatpush1.bf16.msra.mxu0 %v1421
        %1607 = vmatprep.subr.bf16.mxu0 %v1431
        %1608 = vmatpush1.bf16.msra.mxu0 %v1430
        %1609 = vmatprep.subr.bf16.mxu0 0
        %1610 = vmatpush1.bf16.msra.mxu0 0
        %1611 = vmatprep.subr.bf16.mxu0 0
        %1612 = vmatpush1.bf16.msra.mxu0 0
        %1613 = vmatprep.subr.bf16.mxu0 0
        %1614 = vmatpush1.bf16.msra.mxu0 0
        %1615 = vmatprep.subr.bf16.mxu0 0
        %1616 = vmatpush1.bf16.msra.mxu0 0
        %1617 = vmatprep.subr.bf16.mxu0 0
        %1618 = vmatpush1.bf16.msra.mxu0 0
        %1619 = vmatprep.subr.bf16.mxu0 0
        %1620 = vmatpush1.bf16.msra.mxu0 0
        %1621 = vmatprep.subr.bf16.mxu0 0
        %1622 = vmatpush1.bf16.msra.mxu0 0
        %1623 = vmatprep.subr.bf16.mxu0 0
        %1624 = vmatpush1.bf16.msra.mxu0 0
        %1625 = vmatprep.mubr.bf16.mxu0 0
        %1626 = vmatmul.mubr.bf16.gmra.mrb[0].mxu0 %v1138
        %v1627 = vpop.f32.mrb[0].mxu0
        %v1628 = vadd.f32 0.0, %v1627
        %v1629 = vpop.f32.mrb[0].mxu0
        %v1630 = vadd.f32 0.0, %v1629
        %v1631 = vpop.f32.mrb[0].mxu0
        %v1632 = vadd.f32 0.0, %v1631
        %v1633 = vpop.f32.mrb[0].mxu0
        %v1634 = vadd.f32 0.0, %v1633
        %1635 = vdwg.mxu0
        %1636 = vmatprep.subr.bf16.mxu0 %v1370
        %1637 = vmatpush1.bf16.msra.mxu0 %v1369
        %1638 = vmatprep.subr.bf16.mxu0 %v1379
        %1639 = vmatpush1.bf16.msra.mxu0 %v1378
        %1640 = vmatprep.subr.bf16.mxu0 %v1388
        %1641 = vmatpush1.bf16.msra.mxu0 %v1387
        %1642 = vmatprep.subr.bf16.mxu0 %v1397
        %1643 = vmatpush1.bf16.msra.mxu0 %v1396
        %1644 = vmatprep.subr.bf16.mxu0 %v1406
        %1645 = vmatpush1.bf16.msra.mxu0 %v1405
        %1646 = vmatprep.subr.bf16.mxu0 %v1415
        %1647 = vmatpush1.bf16.msra.mxu0 %v1414
        %1648 = vmatprep.subr.bf16.mxu0 %v1424
        %1649 = vmatpush1.bf16.msra.mxu0 %v1423
        %1650 = vmatprep.subr.bf16.mxu0 %v1433
        %1651 = vmatpush1.bf16.msra.mxu0 %v1432
        %1652 = vmatprep.subr.bf16.mxu0 0
        %1653 = vmatpush1.bf16.msra.mxu0 0
        %1654 = vmatprep.subr.bf16.mxu0 0
        %1655 = vmatpush1.bf16.msra.mxu0 0
        %1656 = vmatprep.subr.bf16.mxu0 0
        %1657 = vmatpush1.bf16.msra.mxu0 0
        %1658 = vmatprep.subr.bf16.mxu0 0
        %1659 = vmatpush1.bf16.msra.mxu0 0
        %1660 = vmatprep.subr.bf16.mxu0 0
        %1661 = vmatpush1.bf16.msra.mxu0 0
        %1662 = vmatprep.subr.bf16.mxu0 0
        %1663 = vmatpush1.bf16.msra.mxu0 0
        %1664 = vmatprep.subr.bf16.mxu0 0
        %1665 = vmatpush1.bf16.msra.mxu0 0
        %1666 = vmatprep.subr.bf16.mxu0 0
        %1667 = vmatpush1.bf16.msra.mxu0 0
        %1668 = vmatprep.mubr.bf16.mxu0 0
        %1669 = vmatmul.mubr.bf16.gmra.mrb[0].mxu0 %v1138
        %v1670 = vpop.f32.mrb[0].mxu0
        %v1671 = vadd.f32 0.0, %v1670
        %v1672 = vpop.f32.mrb[0].mxu0
        %v1673 = vadd.f32 0.0, %v1672
        %v1674 = vpop.f32.mrb[0].mxu0
        %v1675 = vadd.f32 0.0, %v1674
        %v1676 = vpop.f32.mrb[0].mxu0
        %v1677 = vadd.f32 0.0, %v1676
        %1678 = vdwg.mxu0
        %1679 = vmatprep.subr.bf16.mxu0 0
        %1680 = vmatpush1.bf16.msra.mxu0 %v1371
        %1681 = vmatprep.subr.bf16.mxu0 0
        %1682 = vmatpush1.bf16.msra.mxu0 %v1380
        %1683 = vmatprep.subr.bf16.mxu0 0
        %1684 = vmatpush1.bf16.msra.mxu0 %v1389
        %1685 = vmatprep.subr.bf16.mxu0 0
        %1686 = vmatpush1.bf16.msra.mxu0 %v1398
        %1687 = vmatprep.subr.bf16.mxu0 0
        %1688 = vmatpush1.bf16.msra.mxu0 %v1407
        %1689 = vmatprep.subr.bf16.mxu0 0
        %1690 = vmatpush1.bf16.msra.mxu0 %v1416
        %1691 = vmatprep.subr.bf16.mxu0 0
        %1692 = vmatpush1.bf16.msra.mxu0 %v1425
        %1693 = vmatprep.subr.bf16.mxu0 0
        %1694 = vmatpush1.bf16.msra.mxu0 %v1434
        %1695 = vmatprep.subr.bf16.mxu0 0
        %1696 = vmatpush1.bf16.msra.mxu0 0
        %1697 = vmatprep.subr.bf16.mxu0 0
        %1698 = vmatpush1.bf16.msra.mxu0 0
        %1699 = vmatprep.subr.bf16.mxu0 0
        %1700 = vmatpush1.bf16.msra.mxu0 0
        %1701 = vmatprep.subr.bf16.mxu0 0
        %1702 = vmatpush1.bf16.msra.mxu0 0
        %1703 = vmatprep.subr.bf16.mxu0 0
        %1704 = vmatpush1.bf16.msra.mxu0 0
        %1705 = vmatprep.subr.bf16.mxu0 0
        %1706 = vmatpush1.bf16.msra.mxu0 0
        %1707 = vmatprep.subr.bf16.mxu0 0
        %1708 = vmatpush1.bf16.msra.mxu0 0
        %1709 = vmatprep.subr.bf16.mxu0 0
        %1710 = vmatpush1.bf16.msra.mxu0 0
        %1711 = vmatprep.mubr.bf16.mxu0 0
        %1712 = vmatmul.mubr.bf16.gmra.mrb[0].mxu0 %v1138
        %v1713 = vpop.f32.mrb[0].mxu0
        %v1714 = vadd.f32 0.0, %v1713
        %v1715 = vpop.f32.mrb[0].mxu0
        %v1716 = vpop.f32.mrb[0].mxu0
        %v1717 = vadd.f32 0.0, %v1716
        %v1718 = vpop.f32.mrb[0].mxu0
        %1719 = vdwg.mxu0
        %s1720 = sld [smem:[#allocation2]]
        %v1721 = vpack.c.bf16 %v1546, %v1542
        %v1722 = vpack.c.bf16 %v1548, %v1544
        %v1723 = vpack.c.bf16 %v1589, %v1585
        %v1724 = vpack.c.bf16 %v1591, %v1587
        %v1725 = vpack.c.bf16 %v1632, %v1628
        %v1726 = vpack.c.bf16 %v1634, %v1630
        %v1727 = vpack.c.bf16 %v1675, %v1671
        %v1728 = vpack.c.bf16 %v1677, %v1673
        %v1729 = vpack.c.bf16 %v1717, %v1714
        %1730 = vmatprep.subr.bf16.mxu0 0
        %1731 = vmatpush1.bf16.msra.mxu0 %v789
        %1732 = vmatprep.subr.bf16.mxu0 0
        %1733 = vmatpush1.bf16.msra.mxu0 %v790
        %1734 = vmatprep.subr.bf16.mxu0 0
        %1735 = vmatpush1.bf16.msra.mxu0 %v791
        %1736 = vmatprep.subr.bf16.mxu0 0
        %1737 = vmatpush1.bf16.msra.mxu0 %v792
        %1738 = vmatprep.subr.bf16.mxu0 0
        %1739 = vmatpush1.bf16.msra.mxu0 %v793
        %1740 = vmatprep.subr.bf16.mxu0 0
        %1741 = vmatpush1.bf16.msra.mxu0 %v794
        %1742 = vmatprep.subr.bf16.mxu0 0
        %1743 = vmatpush1.bf16.msra.mxu0 %v795
        %1744 = vmatprep.subr.bf16.mxu0 0
        %1745 = vmatpush1.bf16.msra.mxu0 %v796
        %1746 = vmatprep.subr.bf16.mxu0 0
        %1747 = vmatpush1.bf16.msra.mxu0 %v797
        %1748 = vmatprep.subr.bf16.mxu0 0
        %1749 = vmatpush1.bf16.msra.mxu0 %v798
        %1750 = vmatprep.subr.bf16.mxu0 0
        %1751 = vmatpush1.bf16.msra.mxu0 %v799
        %1752 = vmatprep.subr.bf16.mxu0 0
        %1753 = vmatpush1.bf16.msra.mxu0 %v800
        %1754 = vmatprep.subr.bf16.mxu0 0
        %1755 = vmatpush1.bf16.msra.mxu0 %v801
        %1756 = vmatprep.subr.bf16.mxu0 0
        %1757 = vmatpush1.bf16.msra.mxu0 %v802
        %1758 = vmatprep.subr.bf16.mxu0 0
        %1759 = vmatpush1.bf16.msra.mxu0 %v803
        %1760 = vmatprep.subr.bf16.mxu0 0
        %1761 = vmatpush1.bf16.msra.mxu0 %v804
        %1762 = vmatprep.mubr.bf16.mxu0 %v1722
        %1763 = vmatmul.mubr.bf16.gmra.mrb[0].mxu0 %v1721
        %v1764 = vpop.f32.mrb[0].mxu0
        %v1765 = vadd.f32 0.0, %v1764
        %v1766 = vpop.f32.mrb[0].mxu0
        %v1767 = vpop.f32.mrb[0].mxu0
        %v1768 = vadd.f32 0.0, %v1767
        %v1769 = vpop.f32.mrb[0].mxu0
        %1770 = vdwg.mxu0
        %1771 = vmatprep.subr.bf16.mxu0 0
        %1772 = vmatpush1.bf16.msra.mxu0 %v805
        %1773 = vmatprep.subr.bf16.mxu0 0
        %1774 = vmatpush1.bf16.msra.mxu0 %v806
        %1775 = vmatprep.subr.bf16.mxu0 0
        %1776 = vmatpush1.bf16.msra.mxu0 %v807
        %1777 = vmatprep.subr.bf16.mxu0 0
        %1778 = vmatpush1.bf16.msra.mxu0 %v808
        %1779 = vmatprep.subr.bf16.mxu0 0
        %1780 = vmatpush1.bf16.msra.mxu0 %v809
        %1781 = vmatprep.subr.bf16.mxu0 0
        %1782 = vmatpush1.bf16.msra.mxu0 %v810
        %1783 = vmatprep.subr.bf16.mxu0 0
        %1784 = vmatpush1.bf16.msra.mxu0 %v811
        %1785 = vmatprep.subr.bf16.mxu0 0
        %1786 = vmatpush1.bf16.msra.mxu0 %v812
        %1787 = vmatprep.subr.bf16.mxu0 0
        %1788 = vmatpush1.bf16.msra.mxu0 %v813
        %1789 = vmatprep.subr.bf16.mxu0 0
        %1790 = vmatpush1.bf16.msra.mxu0 %v814
        %1791 = vmatprep.subr.bf16.mxu0 0
        %1792 = vmatpush1.bf16.msra.mxu0 %v815
        %1793 = vmatprep.subr.bf16.mxu0 0
        %1794 = vmatpush1.bf16.msra.mxu0 %v816
        %1795 = vmatprep.subr.bf16.mxu0 0
        %1796 = vmatpush1.bf16.msra.mxu0 %v817
        %1797 = vmatprep.subr.bf16.mxu0 0
        %1798 = vmatpush1.bf16.msra.mxu0 %v818
        %1799 = vmatprep.subr.bf16.mxu0 0
        %1800 = vmatpush1.bf16.msra.mxu0 %v819
        %1801 = vmatprep.subr.bf16.mxu0 0
        %1802 = vmatpush1.bf16.msra.mxu0 %v820
        %1803 = vmatprep.mubr.bf16.mxu0 %v1724
        %1804 = vmatmul.mubr.bf16.gmra.mrb[0].mxu0 %v1723
        %v1805 = vpop.f32.mrb[0].mxu0
        %v1806 = vadd.f32 %v1765, %v1805
        %v1807 = vpop.f32.mrb[0].mxu0
        %v1808 = vpop.f32.mrb[0].mxu0
        %v1809 = vadd.f32 %v1768, %v1808
        %v1810 = vpop.f32.mrb[0].mxu0
        %1811 = vdwg.mxu0
        %1812 = vmatprep.subr.bf16.mxu0 0
        %1813 = vmatpush1.bf16.msra.mxu0 %v821
        %1814 = vmatprep.subr.bf16.mxu0 0
        %1815 = vmatpush1.bf16.msra.mxu0 %v822
        %1816 = vmatprep.subr.bf16.mxu0 0
        %1817 = vmatpush1.bf16.msra.mxu0 %v823
        %1818 = vmatprep.subr.bf16.mxu0 0
        %1819 = vmatpush1.bf16.msra.mxu0 %v824
        %1820 = vmatprep.subr.bf16.mxu0 0
        %1821 = vmatpush1.bf16.msra.mxu0 %v825
        %1822 = vmatprep.subr.bf16.mxu0 0
        %1823 = vmatpush1.bf16.msra.mxu0 %v826
        %1824 = vmatprep.subr.bf16.mxu0 0
        %1825 = vmatpush1.bf16.msra.mxu0 %v827
        %1826 = vmatprep.subr.bf16.mxu0 0
        %1827 = vmatpush1.bf16.msra.mxu0 %v828
        %1828 = vmatprep.subr.bf16.mxu0 0
        %1829 = vmatpush1.bf16.msra.mxu0 %v829
        %1830 = vmatprep.subr.bf16.mxu0 0
        %1831 = vmatpush1.bf16.msra.mxu0 %v830
        %1832 = vmatprep.subr.bf16.mxu0 0
        %1833 = vmatpush1.bf16.msra.mxu0 %v831
        %1834 = vmatprep.subr.bf16.mxu0 0
        %1835 = vmatpush1.bf16.msra.mxu0 %v832
        %1836 = vmatprep.subr.bf16.mxu0 0
        %1837 = vmatpush1.bf16.msra.mxu0 %v833
        %1838 = vmatprep.subr.bf16.mxu0 0
        %1839 = vmatpush1.bf16.msra.mxu0 %v834
        %1840 = vmatprep.subr.bf16.mxu0 0
        %1841 = vmatpush1.bf16.msra.mxu0 %v835
        %1842 = vmatprep.subr.bf16.mxu0 0
        %1843 = vmatpush1.bf16.msra.mxu0 %v836
        %1844 = vmatprep.mubr.bf16.mxu0 %v1726
        %1845 = vmatmul.mubr.bf16.gmra.mrb[0].mxu0 %v1725
        %v1846 = vpop.f32.mrb[0].mxu0
        %v1847 = vadd.f32 %v1806, %v1846
        %v1848 = vpop.f32.mrb[0].mxu0
        %v1849 = vpop.f32.mrb[0].mxu0
        %v1850 = vadd.f32 %v1809, %v1849
        %v1851 = vpop.f32.mrb[0].mxu0
        %1852 = vdwg.mxu0
        %1853 = vmatprep.subr.bf16.mxu0 0
        %1854 = vmatpush1.bf16.msra.mxu0 %v837
        %1855 = vmatprep.subr.bf16.mxu0 0
        %1856 = vmatpush1.bf16.msra.mxu0 %v838
        %1857 = vmatprep.subr.bf16.mxu0 0
        %1858 = vmatpush1.bf16.msra.mxu0 %v839
        %1859 = vmatprep.subr.bf16.mxu0 0
        %1860 = vmatpush1.bf16.msra.mxu0 %v840
        %1861 = vmatprep.subr.bf16.mxu0 0
        %1862 = vmatpush1.bf16.msra.mxu0 %v841
        %1863 = vmatprep.subr.bf16.mxu0 0
        %1864 = vmatpush1.bf16.msra.mxu0 %v842
        %1865 = vmatprep.subr.bf16.mxu0 0
        %1866 = vmatpush1.bf16.msra.mxu0 %v843
        %1867 = vmatprep.subr.bf16.mxu0 0
        %1868 = vmatpush1.bf16.msra.mxu0 %v844
        %1869 = vmatprep.subr.bf16.mxu0 0
        %1870 = vmatpush1.bf16.msra.mxu0 %v845
        %1871 = vmatprep.subr.bf16.mxu0 0
        %1872 = vmatpush1.bf16.msra.mxu0 %v846
        %1873 = vmatprep.subr.bf16.mxu0 0
        %1874 = vmatpush1.bf16.msra.mxu0 %v847
        %1875 = vmatprep.subr.bf16.mxu0 0
        %1876 = vmatpush1.bf16.msra.mxu0 %v848
        %1877 = vmatprep.subr.bf16.mxu0 0
        %1878 = vmatpush1.bf16.msra.mxu0 %v849
        %1879 = vmatprep.subr.bf16.mxu0 0
        %1880 = vmatpush1.bf16.msra.mxu0 %v850
        %1881 = vmatprep.subr.bf16.mxu0 0
        %1882 = vmatpush1.bf16.msra.mxu0 %v851
        %1883 = vmatprep.subr.bf16.mxu0 0
        %1884 = vmatpush1.bf16.msra.mxu0 %v852
        %1885 = vmatprep.mubr.bf16.mxu0 %v1728
        %1886 = vmatmul.mubr.bf16.gmra.mrb[0].mxu0 %v1727
        %v1887 = vpop.f32.mrb[0].mxu0
        %v1888 = vadd.f32 %v1847, %v1887
        %v1889 = vpop.f32.mrb[0].mxu0
        %v1890 = vpop.f32.mrb[0].mxu0
        %v1891 = vadd.f32 %v1850, %v1890
        %v1892 = vpop.f32.mrb[0].mxu0
        %1893 = vdwg.mxu0
        %1894 = vmatprep.subr.bf16.mxu0 0
        %1895 = vmatpush1.bf16.msra.mxu0 %v853
        %1896 = vmatprep.subr.bf16.mxu0 0
        %1897 = vmatpush1.bf16.msra.mxu0 %v854
        %1898 = vmatprep.subr.bf16.mxu0 0
        %1899 = vmatpush1.bf16.msra.mxu0 %v855
        %1900 = vmatprep.subr.bf16.mxu0 0
        %1901 = vmatpush1.bf16.msra.mxu0 %v856
        %1902 = vmatprep.subr.bf16.mxu0 0
        %1903 = vmatpush1.bf16.msra.mxu0 %v857
        %1904 = vmatprep.subr.bf16.mxu0 0
        %1905 = vmatpush1.bf16.msra.mxu0 %v858
        %1906 = vmatprep.subr.bf16.mxu0 0
        %1907 = vmatpush1.bf16.msra.mxu0 %v859
        %1908 = vmatprep.subr.bf16.mxu0 0
        %1909 = vmatpush1.bf16.msra.mxu0 %v860
        %1910 = vmatprep.subr.bf16.mxu0 0
        %1911 = vmatpush1.bf16.msra.mxu0 0
        %1912 = vmatprep.subr.bf16.mxu0 0
        %1913 = vmatpush1.bf16.msra.mxu0 0
        %1914 = vmatprep.subr.bf16.mxu0 0
        %1915 = vmatpush1.bf16.msra.mxu0 0
        %1916 = vmatprep.subr.bf16.mxu0 0
        %1917 = vmatpush1.bf16.msra.mxu0 0
        %1918 = vmatprep.subr.bf16.mxu0 0
        %1919 = vmatpush1.bf16.msra.mxu0 0
        %1920 = vmatprep.subr.bf16.mxu0 0
        %1921 = vmatpush1.bf16.msra.mxu0 0
        %1922 = vmatprep.subr.bf16.mxu0 0
        %1923 = vmatpush1.bf16.msra.mxu0 0
        %1924 = vmatprep.subr.bf16.mxu0 0
        %1925 = vmatpush1.bf16.msra.mxu0 0
        %1926 = vmatprep.mubr.bf16.mxu0 0
        %1927 = vmatmul.mubr.bf16.gmra.mrb[0].mxu0 %v1729
        %v1928 = vpop.f32.mrb[0].mxu0
        %v1929 = vadd.f32 %v1888, %v1928
        %v1930 = vpop.f32.mrb[0].mxu0
        %v1931 = vpop.f32.mrb[0].mxu0
        %v1932 = vadd.f32 %v1891, %v1931
        %v1933 = vpop.f32.mrb[0].mxu0
        %1934 = vdwg.mxu0
        %v1935 = vpack.c.bf16 %v1932, %v1929
        %1936 = vmatprep.subr.bf16.mxu0 %v1364
        %1937 = vmatpush1.bf16.msra.mxu0 %v1363
        %1938 = vmatprep.subr.bf16.mxu0 %v1373
        %1939 = vmatpush1.bf16.msra.mxu0 %v1372
        %1940 = vmatprep.subr.bf16.mxu0 %v1382
        %1941 = vmatpush1.bf16.msra.mxu0 %v1381
        %1942 = vmatprep.subr.bf16.mxu0 %v1391
        %1943 = vmatpush1.bf16.msra.mxu0 %v1390
        %1944 = vmatprep.subr.bf16.mxu0 %v1400
        %1945 = vmatpush1.bf16.msra.mxu0 %v1399
        %1946 = vmatprep.subr.bf16.mxu0 %v1409
        %1947 = vmatpush1.bf16.msra.mxu0 %v1408
        %1948 = vmatprep.subr.bf16.mxu0 %v1418
        %1949 = vmatpush1.bf16.msra.mxu0 %v1417
        %1950 = vmatprep.subr.bf16.mxu0 %v1427
        %1951 = vmatpush1.bf16.msra.mxu0 %v1426
        %1952 = vmatprep.subr.bf16.mxu0 0
        %1953 = vmatpush1.bf16.msra.mxu0 0
        %1954 = vmatprep.subr.bf16.mxu0 0
        %1955 = vmatpush1.bf16.msra.mxu0 0
        %1956 = vmatprep.subr.bf16.mxu0 0
        %1957 = vmatpush1.bf16.msra.mxu0 0
        %1958 = vmatprep.subr.bf16.mxu0 0
        %1959 = vmatpush1.bf16.msra.mxu0 0
        %1960 = vmatprep.subr.bf16.mxu0 0
        %1961 = vmatpush1.bf16.msra.mxu0 0
        %1962 = vmatprep.subr.bf16.mxu0 0
        %1963 = vmatpush1.bf16.msra.mxu0 0
        %1964 = vmatprep.subr.bf16.mxu0 0
        %1965 = vmatpush1.bf16.msra.mxu0 0
        %1966 = vmatprep.subr.bf16.mxu0 0
        %1967 = vmatpush1.bf16.msra.mxu0 0
        %1968 = vmatprep.mubr.bf16.mxu0 0
        %1969 = vmatmul.mubr.bf16.gmra.mrb[0].mxu0 %v1935
        %v1970 = vpop.f32.mrb[0].mxu0
        %v1971 = vadd.f32 0.0, %v1970
        %v1972 = vpop.f32.mrb[0].mxu0
        %v1973 = vadd.f32 0.0, %v1972
        %v1974 = vpop.f32.mrb[0].mxu0
        %v1975 = vadd.f32 0.0, %v1974
        %v1976 = vpop.f32.mrb[0].mxu0
        %v1977 = vadd.f32 0.0, %v1976
        %1978 = vdwg.mxu0
        %1979 = vmatprep.subr.bf16.mxu0 %v1366
        %1980 = vmatpush1.bf16.msra.mxu0 %v1365
        %1981 = vmatprep.subr.bf16.mxu0 %v1375
        %1982 = vmatpush1.bf16.msra.mxu0 %v1374
        %1983 = vmatprep.subr.bf16.mxu0 %v1384
        %1984 = vmatpush1.bf16.msra.mxu0 %v1383
        %1985 = vmatprep.subr.bf16.mxu0 %v1393
        %1986 = vmatpush1.bf16.msra.mxu0 %v1392
        %1987 = vmatprep.subr.bf16.mxu0 %v1402
        %1988 = vmatpush1.bf16.msra.mxu0 %v1401
        %1989 = vmatprep.subr.bf16.mxu0 %v1411
        %1990 = vmatpush1.bf16.msra.mxu0 %v1410
        %1991 = vmatprep.subr.bf16.mxu0 %v1420
        %1992 = vmatpush1.bf16.msra.mxu0 %v1419
        %1993 = vmatprep.subr.bf16.mxu0 %v1429
        %1994 = vmatpush1.bf16.msra.mxu0 %v1428
        %1995 = vmatprep.subr.bf16.mxu0 0
        %1996 = vmatpush1.bf16.msra.mxu0 0
        %1997 = vmatprep.subr.bf16.mxu0 0
        %1998 = vmatpush1.bf16.msra.mxu0 0
        %1999 = vmatprep.subr.bf16.mxu0 0
        %2000 = vmatpush1.bf16.msra.mxu0 0
        %2001 = vmatprep.subr.bf16.mxu0 0
        %2002 = vmatpush1.bf16.msra.mxu0 0
        %2003 = vmatprep.subr.bf16.mxu0 0
        %2004 = vmatpush1.bf16.msra.mxu0 0
        %2005 = vmatprep.subr.bf16.mxu0 0
        %2006 = vmatpush1.bf16.msra.mxu0 0
        %2007 = vmatprep.subr.bf16.mxu0 0
        %2008 = vmatpush1.bf16.msra.mxu0 0
        %2009 = vmatprep.subr.bf16.mxu0 0
        %2010 = vmatpush1.bf16.msra.mxu0 0
        %2011 = vmatprep.mubr.bf16.mxu0 0
        %2012 = vmatmul.mubr.bf16.gmra.mrb[0].mxu0 %v1935
        %v2013 = vpop.f32.mrb[0].mxu0
        %v2014 = vadd.f32 0.0, %v2013
        %v2015 = vpop.f32.mrb[0].mxu0
        %v2016 = vadd.f32 0.0, %v2015
        %v2017 = vpop.f32.mrb[0].mxu0
        %v2018 = vadd.f32 0.0, %v2017
        %v2019 = vpop.f32.mrb[0].mxu0
        %v2020 = vadd.f32 0.0, %v2019
        %2021 = vdwg.mxu0
        %2022 = vmatprep.subr.bf16.mxu0 %v1368
        %2023 = vmatpush1.bf16.msra.mxu0 %v1367
        %2024 = vmatprep.subr.bf16.mxu0 %v1377
        %2025 = vmatpush1.bf16.msra.mxu0 %v1376
        %2026 = vmatprep.subr.bf16.mxu0 %v1386
        %2027 = vmatpush1.bf16.msra.mxu0 %v1385
        %2028 = vmatprep.subr.bf16.mxu0 %v1395
        %2029 = vmatpush1.bf16.msra.mxu0 %v1394
        %2030 = vmatprep.subr.bf16.mxu0 %v1404
        %2031 = vmatpush1.bf16.msra.mxu0 %v1403
        %2032 = vmatprep.subr.bf16.mxu0 %v1413
        %2033 = vmatpush1.bf16.msra.mxu0 %v1412
        %2034 = vmatprep.subr.bf16.mxu0 %v1422
        %2035 = vmatpush1.bf16.msra.mxu0 %v1421
        %2036 = vmatprep.subr.bf16.mxu0 %v1431
        %2037 = vmatpush1.bf16.msra.mxu0 %v1430
        %2038 = vmatprep.subr.bf16.mxu0 0
        %2039 = vmatpush1.bf16.msra.mxu0 0
        %2040 = vmatprep.subr.bf16.mxu0 0
        %2041 = vmatpush1.bf16.msra.mxu0 0
        %2042 = vmatprep.subr.bf16.mxu0 0
        %2043 = vmatpush1.bf16.msra.mxu0 0
        %2044 = vmatprep.subr.bf16.mxu0 0
        %2045 = vmatpush1.bf16.msra.mxu0 0
        %2046 = vmatprep.subr.bf16.mxu0 0
        %2047 = vmatpush1.bf16.msra.mxu0 0
        %2048 = vmatprep.subr.bf16.mxu0 0
        %2049 = vmatpush1.bf16.msra.mxu0 0
        %2050 = vmatprep.subr.bf16.mxu0 0
        %2051 = vmatpush1.bf16.msra.mxu0 0
        %2052 = vmatprep.subr.bf16.mxu0 0
        %2053 = vmatpush1.bf16.msra.mxu0 0
        %2054 = vmatprep.mubr.bf16.mxu0 0
        %2055 = vmatmul.mubr.bf16.gmra.mrb[0].mxu0 %v1935
        %v2056 = vpop.f32.mrb[0].mxu0
        %v2057 = vadd.f32 0.0, %v2056
        %v2058 = vpop.f32.mrb[0].mxu0
        %v2059 = vadd.f32 0.0, %v2058
        %v2060 = vpop.f32.mrb[0].mxu0
        %v2061 = vadd.f32 0.0, %v2060
        %v2062 = vpop.f32.mrb[0].mxu0
        %v2063 = vadd.f32 0.0, %v2062
        %2064 = vdwg.mxu0
        %2065 = vmatprep.subr.bf16.mxu0 %v1370
        %2066 = vmatpush1.bf16.msra.mxu0 %v1369
        %2067 = vmatprep.subr.bf16.mxu0 %v1379
        %2068 = vmatpush1.bf16.msra.mxu0 %v1378
        %2069 = vmatprep.subr.bf16.mxu0 %v1388
        %2070 = vmatpush1.bf16.msra.mxu0 %v1387
        %2071 = vmatprep.subr.bf16.mxu0 %v1397
        %2072 = vmatpush1.bf16.msra.mxu0 %v1396
        %2073 = vmatprep.subr.bf16.mxu0 %v1406
        %2074 = vmatpush1.bf16.msra.mxu0 %v1405
        %2075 = vmatprep.subr.bf16.mxu0 %v1415
        %2076 = vmatpush1.bf16.msra.mxu0 %v1414
        %2077 = vmatprep.subr.bf16.mxu0 %v1424
        %2078 = vmatpush1.bf16.msra.mxu0 %v1423
        %2079 = vmatprep.subr.bf16.mxu0 %v1433
        %2080 = vmatpush1.bf16.msra.mxu0 %v1432
        %2081 = vmatprep.subr.bf16.mxu0 0
        %2082 = vmatpush1.bf16.msra.mxu0 0
        %2083 = vmatprep.subr.bf16.mxu0 0
        %2084 = vmatpush1.bf16.msra.mxu0 0
        %2085 = vmatprep.subr.bf16.mxu0 0
        %2086 = vmatpush1.bf16.msra.mxu0 0
        %2087 = vmatprep.subr.bf16.mxu0 0
        %2088 = vmatpush1.bf16.msra.mxu0 0
        %2089 = vmatprep.subr.bf16.mxu0 0
        %2090 = vmatpush1.bf16.msra.mxu0 0
        %2091 = vmatprep.subr.bf16.mxu0 0
        %2092 = vmatpush1.bf16.msra.mxu0 0
        %2093 = vmatprep.subr.bf16.mxu0 0
        %2094 = vmatpush1.bf16.msra.mxu0 0
        %2095 = vmatprep.subr.bf16.mxu0 0
        %2096 = vmatpush1.bf16.msra.mxu0 0
        %2097 = vmatprep.mubr.bf16.mxu0 0
        %2098 = vmatmul.mubr.bf16.gmra.mrb[0].mxu0 %v1935
        %v2099 = vpop.f32.mrb[0].mxu0
        %v2100 = vadd.f32 0.0, %v2099
        %v2101 = vpop.f32.mrb[0].mxu0
        %v2102 = vadd.f32 0.0, %v2101
        %v2103 = vpop.f32.mrb[0].mxu0
        %v2104 = vadd.f32 0.0, %v2103
        %v2105 = vpop.f32.mrb[0].mxu0
        %v2106 = vadd.f32 0.0, %v2105
        %2107 = vdwg.mxu0
        %2108 = vmatprep.subr.bf16.mxu0 0
        %2109 = vmatpush1.bf16.msra.mxu0 %v1371
        %2110 = vmatprep.subr.bf16.mxu0 0
        %2111 = vmatpush1.bf16.msra.mxu0 %v1380
        %2112 = vmatprep.subr.bf16.mxu0 0
        %2113 = vmatpush1.bf16.msra.mxu0 %v1389
        %2114 = vmatprep.subr.bf16.mxu0 0
        %2115 = vmatpush1.bf16.msra.mxu0 %v1398
        %2116 = vmatprep.subr.bf16.mxu0 0
        %2117 = vmatpush1.bf16.msra.mxu0 %v1407
        %2118 = vmatprep.subr.bf16.mxu0 0
        %2119 = vmatpush1.bf16.msra.mxu0 %v1416
        %2120 = vmatprep.subr.bf16.mxu0 0
        %2121 = vmatpush1.bf16.msra.mxu0 %v1425
        %2122 = vmatprep.subr.bf16.mxu0 0
        %2123 = vmatpush1.bf16.msra.mxu0 %v1434
        %2124 = vmatprep.subr.bf16.mxu0 0
        %2125 = vmatpush1.bf16.msra.mxu0 0
        %2126 = vmatprep.subr.bf16.mxu0 0
        %2127 = vmatpush1.bf16.msra.mxu0 0
        %2128 = vmatprep.subr.bf16.mxu0 0
        %2129 = vmatpush1.bf16.msra.mxu0 0
        %2130 = vmatprep.subr.bf16.mxu0 0
        %2131 = vmatpush1.bf16.msra.mxu0 0
        %2132 = vmatprep.subr.bf16.mxu0 0
        %2133 = vmatpush1.bf16.msra.mxu0 0
        %2134 = vmatprep.subr.bf16.mxu0 0
        %2135 = vmatpush1.bf16.msra.mxu0 0
        %2136 = vmatprep.subr.bf16.mxu0 0
        %2137 = vmatpush1.bf16.msra.mxu0 0
        %2138 = vmatprep.subr.bf16.mxu0 0
        %2139 = vmatpush1.bf16.msra.mxu0 0
        %2140 = vmatprep.mubr.bf16.mxu0 0
        %2141 = vmatmul.mubr.bf16.gmra.mrb[0].mxu0 %v1935
        %v2142 = vpop.f32.mrb[0].mxu0
        %v2143 = vadd.f32 0.0, %v2142
        %v2144 = vpop.f32.mrb[0].mxu0
        %v2145 = vpop.f32.mrb[0].mxu0
        %v2146 = vadd.f32 0.0, %v2145
        %v2147 = vpop.f32.mrb[0].mxu0
        %2148 = vdwg.mxu0
        %v2149 = vsub.f32 %v1542, %v1971
        %v2150 = vsub.f32 %v1544, %v1973
        %v2151 = vsub.f32 %v1585, %v2014
        %v2152 = vsub.f32 %v1587, %v2016
        %v2153 = vsub.f32 %v1628, %v2057
        %v2154 = vsub.f32 %v1630, %v2059
        %v2155 = vsub.f32 %v1671, %v2100
        %v2156 = vsub.f32 %v1673, %v2102
        %v2157 = vsub.f32 %v1714, %v2143
        %v2158 = vsub.f32 %v1546, %v1975
        %v2159 = vsub.f32 %v1548, %v1977
        %v2160 = vsub.f32 %v1589, %v2018
        %v2161 = vsub.f32 %v1591, %v2020
        %v2162 = vsub.f32 %v1632, %v2061
        %v2163 = vsub.f32 %v1634, %v2063
        %v2164 = vsub.f32 %v1675, %v2104
        %v2165 = vsub.f32 %v1677, %v2106
        %v2166 = vsub.f32 %v1717, %v2146
        %v2167 = vstv %s1720
        %v2168 = vmul.f32 %v2167, %v2149
        %v2169 = vmul.f32 %v2167, %v2150
        %v2170 = vmul.f32 %v2167, %v2151
        %v2171 = vmul.f32 %v2167, %v2152
        %v2172 = vmul.f32 %v2167, %v2153
        %v2173 = vmul.f32 %v2167, %v2154
        %v2174 = vmul.f32 %v2167, %v2155
        %v2175 = vmul.f32 %v2167, %v2156
        %v2176 = vmul.f32 %v2167, %v2157
        %v2177 = vmul.f32 %v2167, %v2158
        %v2178 = vmul.f32 %v2167, %v2159
        %v2179 = vmul.f32 %v2167, %v2160
        %v2180 = vmul.f32 %v2167, %v2161
        %v2181 = vmul.f32 %v2167, %v2162
        %v2182 = vmul.f32 %v2167, %v2163
        %v2183 = vmul.f32 %v2167, %v2164
        %v2184 = vmul.f32 %v2167, %v2165
        %v2185 = vmul.f32 %v2167, %v2166
        %v2186 = vadd.f32 %v1542, %v2168
        %v2187 = vadd.f32 %v1544, %v2169
        %v2188 = vadd.f32 %v1585, %v2170
        %v2189 = vadd.f32 %v1587, %v2171
        %v2190 = vadd.f32 %v1628, %v2172
        %v2191 = vadd.f32 %v1630, %v2173
        %v2192 = vadd.f32 %v1671, %v2174
        %v2193 = vadd.f32 %v1673, %v2175
        %v2194 = vadd.f32 %v1714, %v2176
        %v2195 = vadd.f32 %v1546, %v2177
        %v2196 = vadd.f32 %v1548, %v2178
        %v2197 = vadd.f32 %v1589, %v2179
        %v2198 = vadd.f32 %v1591, %v2180
        %v2199 = vadd.f32 %v1632, %v2181
        %v2200 = vadd.f32 %v1634, %v2182
        %v2201 = vadd.f32 %v1675, %v2183
        %v2202 = vadd.f32 %v1677, %v2184
        %v2203 = vadd.f32 %v1717, %v2185
        %s2204 = sld [smem:[#allocation2 + $0x1]]
        %v2205 = vpack.c.bf16 %v2195, %v2186
        %v2206 = vpack.c.bf16 %v2196, %v2187
        %v2207 = vpack.c.bf16 %v2197, %v2188
        %v2208 = vpack.c.bf16 %v2198, %v2189
        %v2209 = vpack.c.bf16 %v2199, %v2190
        %v2210 = vpack.c.bf16 %v2200, %v2191
        %v2211 = vpack.c.bf16 %v2201, %v2192
        %v2212 = vpack.c.bf16 %v2202, %v2193
        %v2213 = vpack.c.bf16 %v2203, %v2194
        %2214 = vmatprep.subr.bf16.mxu0 0
        %2215 = vmatpush1.bf16.msra.mxu0 %v789
        %2216 = vmatprep.subr.bf16.mxu0 0
        %2217 = vmatpush1.bf16.msra.mxu0 %v790
        %2218 = vmatprep.subr.bf16.mxu0 0
        %2219 = vmatpush1.bf16.msra.mxu0 %v791
        %2220 = vmatprep.subr.bf16.mxu0 0
        %2221 = vmatpush1.bf16.msra.mxu0 %v792
        %2222 = vmatprep.subr.bf16.mxu0 0
        %2223 = vmatpush1.bf16.msra.mxu0 %v793
        %2224 = vmatprep.subr.bf16.mxu0 0
        %2225 = vmatpush1.bf16.msra.mxu0 %v794
        %2226 = vmatprep.subr.bf16.mxu0 0
        %2227 = vmatpush1.bf16.msra.mxu0 %v795
        %2228 = vmatprep.subr.bf16.mxu0 0
        %2229 = vmatpush1.bf16.msra.mxu0 %v796
        %2230 = vmatprep.subr.bf16.mxu0 0
        %2231 = vmatpush1.bf16.msra.mxu0 %v797
        %2232 = vmatprep.subr.bf16.mxu0 0
        %2233 = vmatpush1.bf16.msra.mxu0 %v798
        %2234 = vmatprep.subr.bf16.mxu0 0
        %2235 = vmatpush1.bf16.msra.mxu0 %v799
        %2236 = vmatprep.subr.bf16.mxu0 0
        %2237 = vmatpush1.bf16.msra.mxu0 %v800
        %2238 = vmatprep.subr.bf16.mxu0 0
        %2239 = vmatpush1.bf16.msra.mxu0 %v801
        %2240 = vmatprep.subr.bf16.mxu0 0
        %2241 = vmatpush1.bf16.msra.mxu0 %v802
        %2242 = vmatprep.subr.bf16.mxu0 0
        %2243 = vmatpush1.bf16.msra.mxu0 %v803
        %2244 = vmatprep.subr.bf16.mxu0 0
        %2245 = vmatpush1.bf16.msra.mxu0 %v804
        %2246 = vmatprep.mubr.bf16.mxu0 %v2206
        %2247 = vmatmul.mubr.bf16.gmra.mrb[0].mxu0 %v2205
        %v2248 = vpop.f32.mrb[0].mxu0
        %v2249 = vadd.f32 0.0, %v2248
        %v2250 = vpop.f32.mrb[0].mxu0
        %v2251 = vpop.f32.mrb[0].mxu0
        %v2252 = vadd.f32 0.0, %v2251
        %v2253 = vpop.f32.mrb[0].mxu0
        %2254 = vdwg.mxu0
        %2255 = vmatprep.subr.bf16.mxu0 0
        %2256 = vmatpush1.bf16.msra.mxu0 %v805
        %2257 = vmatprep.subr.bf16.mxu0 0
        %2258 = vmatpush1.bf16.msra.mxu0 %v806
        %2259 = vmatprep.subr.bf16.mxu0 0
        %2260 = vmatpush1.bf16.msra.mxu0 %v807
        %2261 = vmatprep.subr.bf16.mxu0 0
        %2262 = vmatpush1.bf16.msra.mxu0 %v808
        %2263 = vmatprep.subr.bf16.mxu0 0
        %2264 = vmatpush1.bf16.msra.mxu0 %v809
        %2265 = vmatprep.subr.bf16.mxu0 0
        %2266 = vmatpush1.bf16.msra.mxu0 %v810
        %2267 = vmatprep.subr.bf16.mxu0 0
        %2268 = vmatpush1.bf16.msra.mxu0 %v811
        %2269 = vmatprep.subr.bf16.mxu0 0
        %2270 = vmatpush1.bf16.msra.mxu0 %v812
        %2271 = vmatprep.subr.bf16.mxu0 0
        %2272 = vmatpush1.bf16.msra.mxu0 %v813
        %2273 = vmatprep.subr.bf16.mxu0 0
        %2274 = vmatpush1.bf16.msra.mxu0 %v814
        %2275 = vmatprep.subr.bf16.mxu0 0
        %2276 = vmatpush1.bf16.msra.mxu0 %v815
        %2277 = vmatprep.subr.bf16.mxu0 0
        %2278 = vmatpush1.bf16.msra.mxu0 %v816
        %2279 = vmatprep.subr.bf16.mxu0 0
        %2280 = vmatpush1.bf16.msra.mxu0 %v817
        %2281 = vmatprep.subr.bf16.mxu0 0
        %2282 = vmatpush1.bf16.msra.mxu0 %v818
        %2283 = vmatprep.subr.bf16.mxu0 0
        %2284 = vmatpush1.bf16.msra.mxu0 %v819
        %2285 = vmatprep.subr.bf16.mxu0 0
        %2286 = vmatpush1.bf16.msra.mxu0 %v820
        %2287 = vmatprep.mubr.bf16.mxu0 %v2208
        %2288 = vmatmul.mubr.bf16.gmra.mrb[0].mxu0 %v2207
        %v2289 = vpop.f32.mrb[0].mxu0
        %v2290 = vadd.f32 %v2249, %v2289
        %v2291 = vpop.f32.mrb[0].mxu0
        %v2292 = vpop.f32.mrb[0].mxu0
        %v2293 = vadd.f32 %v2252, %v2292
        %v2294 = vpop.f32.mrb[0].mxu0
        %2295 = vdwg.mxu0
        %2296 = vmatprep.subr.bf16.mxu0 0
        %2297 = vmatpush1.bf16.msra.mxu0 %v821
        %2298 = vmatprep.subr.bf16.mxu0 0
        %2299 = vmatpush1.bf16.msra.mxu0 %v822
        %2300 = vmatprep.subr.bf16.mxu0 0
        %2301 = vmatpush1.bf16.msra.mxu0 %v823
        %2302 = vmatprep.subr.bf16.mxu0 0
        %2303 = vmatpush1.bf16.msra.mxu0 %v824
        %2304 = vmatprep.subr.bf16.mxu0 0
        %2305 = vmatpush1.bf16.msra.mxu0 %v825
        %2306 = vmatprep.subr.bf16.mxu0 0
        %2307 = vmatpush1.bf16.msra.mxu0 %v826
        %2308 = vmatprep.subr.bf16.mxu0 0
        %2309 = vmatpush1.bf16.msra.mxu0 %v827
        %2310 = vmatprep.subr.bf16.mxu0 0
        %2311 = vmatpush1.bf16.msra.mxu0 %v828
        %2312 = vmatprep.subr.bf16.mxu0 0
        %2313 = vmatpush1.bf16.msra.mxu0 %v829
        %2314 = vmatprep.subr.bf16.mxu0 0
        %2315 = vmatpush1.bf16.msra.mxu0 %v830
        %2316 = vmatprep.subr.bf16.mxu0 0
        %2317 = vmatpush1.bf16.msra.mxu0 %v831
        %2318 = vmatprep.subr.bf16.mxu0 0
        %2319 = vmatpush1.bf16.msra.mxu0 %v832
        %2320 = vmatprep.subr.bf16.mxu0 0
        %2321 = vmatpush1.bf16.msra.mxu0 %v833
        %2322 = vmatprep.subr.bf16.mxu0 0
        %2323 = vmatpush1.bf16.msra.mxu0 %v834
        %2324 = vmatprep.subr.bf16.mxu0 0
        %2325 = vmatpush1.bf16.msra.mxu0 %v835
        %2326 = vmatprep.subr.bf16.mxu0 0
        %2327 = vmatpush1.bf16.msra.mxu0 %v836
        %2328 = vmatprep.mubr.bf16.mxu0 %v2210
        %2329 = vmatmul.mubr.bf16.gmra.mrb[0].mxu0 %v2209
        %v2330 = vpop.f32.mrb[0].mxu0
        %v2331 = vadd.f32 %v2290, %v2330
        %v2332 = vpop.f32.mrb[0].mxu0
        %v2333 = vpop.f32.mrb[0].mxu0
        %v2334 = vadd.f32 %v2293, %v2333
        %v2335 = vpop.f32.mrb[0].mxu0
        %2336 = vdwg.mxu0
        %2337 = vmatprep.subr.bf16.mxu0 0
        %2338 = vmatpush1.bf16.msra.mxu0 %v837
        %2339 = vmatprep.subr.bf16.mxu0 0
        %2340 = vmatpush1.bf16.msra.mxu0 %v838
        %2341 = vmatprep.subr.bf16.mxu0 0
        %2342 = vmatpush1.bf16.msra.mxu0 %v839
        %2343 = vmatprep.subr.bf16.mxu0 0
        %2344 = vmatpush1.bf16.msra.mxu0 %v840
        %2345 = vmatprep.subr.bf16.mxu0 0
        %2346 = vmatpush1.bf16.msra.mxu0 %v841
        %2347 = vmatprep.subr.bf16.mxu0 0
        %2348 = vmatpush1.bf16.msra.mxu0 %v842
        %2349 = vmatprep.subr.bf16.mxu0 0
        %2350 = vmatpush1.bf16.msra.mxu0 %v843
        %2351 = vmatprep.subr.bf16.mxu0 0
        %2352 = vmatpush1.bf16.msra.mxu0 %v844
        %2353 = vmatprep.subr.bf16.mxu0 0
        %2354 = vmatpush1.bf16.msra.mxu0 %v845
        %2355 = vmatprep.subr.bf16.mxu0 0
        %2356 = vmatpush1.bf16.msra.mxu0 %v846
        %2357 = vmatprep.subr.bf16.mxu0 0
        %2358 = vmatpush1.bf16.msra.mxu0 %v847
        %2359 = vmatprep.subr.bf16.mxu0 0
        %2360 = vmatpush1.bf16.msra.mxu0 %v848
        %2361 = vmatprep.subr.bf16.mxu0 0
        %2362 = vmatpush1.bf16.msra.mxu0 %v849
        %2363 = vmatprep.subr.bf16.mxu0 0
        %2364 = vmatpush1.bf16.msra.mxu0 %v850
        %2365 = vmatprep.subr.bf16.mxu0 0
        %2366 = vmatpush1.bf16.msra.mxu0 %v851
        %2367 = vmatprep.subr.bf16.mxu0 0
        %2368 = vmatpush1.bf16.msra.mxu0 %v852
        %2369 = vmatprep.mubr.bf16.mxu0 %v2212
        %2370 = vmatmul.mubr.bf16.gmra.mrb[0].mxu0 %v2211
        %v2371 = vpop.f32.mrb[0].mxu0
        %v2372 = vadd.f32 %v2331, %v2371
        %v2373 = vpop.f32.mrb[0].mxu0
        %v2374 = vpop.f32.mrb[0].mxu0
        %v2375 = vadd.f32 %v2334, %v2374
        %v2376 = vpop.f32.mrb[0].mxu0
        %2377 = vdwg.mxu0
        %2378 = vmatprep.subr.bf16.mxu0 0
        %2379 = vmatpush1.bf16.msra.mxu0 %v853
        %2380 = vmatprep.subr.bf16.mxu0 0
        %2381 = vmatpush1.bf16.msra.mxu0 %v854
        %2382 = vmatprep.subr.bf16.mxu0 0
        %2383 = vmatpush1.bf16.msra.mxu0 %v855
        %2384 = vmatprep.subr.bf16.mxu0 0
        %2385 = vmatpush1.bf16.msra.mxu0 %v856
        %2386 = vmatprep.subr.bf16.mxu0 0
        %2387 = vmatpush1.bf16.msra.mxu0 %v857
        %2388 = vmatprep.subr.bf16.mxu0 0
        %2389 = vmatpush1.bf16.msra.mxu0 %v858
        %2390 = vmatprep.subr.bf16.mxu0 0
        %2391 = vmatpush1.bf16.msra.mxu0 %v859
        %2392 = vmatprep.subr.bf16.mxu0 0
        %2393 = vmatpush1.bf16.msra.mxu0 %v860
        %2394 = vmatprep.subr.bf16.mxu0 0
        %2395 = vmatpush1.bf16.msra.mxu0 0
        %2396 = vmatprep.subr.bf16.mxu0 0
        %2397 = vmatpush1.bf16.msra.mxu0 0
        %2398 = vmatprep.subr.bf16.mxu0 0
        %2399 = vmatpush1.bf16.msra.mxu0 0
        %2400 = vmatprep.subr.bf16.mxu0 0
        %2401 = vmatpush1.bf16.msra.mxu0 0
        %2402 = vmatprep.subr.bf16.mxu0 0
        %2403 = vmatpush1.bf16.msra.mxu0 0
        %2404 = vmatprep.subr.bf16.mxu0 0
        %2405 = vmatpush1.bf16.msra.mxu0 0
        %2406 = vmatprep.subr.bf16.mxu0 0
        %2407 = vmatpush1.bf16.msra.mxu0 0
        %2408 = vmatprep.subr.bf16.mxu0 0
        %2409 = vmatpush1.bf16.msra.mxu0 0
        %2410 = vmatprep.mubr.bf16.mxu0 0
        %2411 = vmatmul.mubr.bf16.gmra.mrb[0].mxu0 %v2213
        %v2412 = vpop.f32.mrb[0].mxu0
        %v2413 = vadd.f32 %v2372, %v2412
        %v2414 = vpop.f32.mrb[0].mxu0
        %v2415 = vpop.f32.mrb[0].mxu0
        %v2416 = vadd.f32 %v2375, %v2415
        %v2417 = vpop.f32.mrb[0].mxu0
        %2418 = vdwg.mxu0
        %v2419 = vpack.c.bf16 %v2416, %v2413
        %2420 = vmatprep.subr.bf16.mxu0 %v1364
        %2421 = vmatpush1.bf16.msra.mxu0 %v1363
        %2422 = vmatprep.subr.bf16.mxu0 %v1373
        %2423 = vmatpush1.bf16.msra.mxu0 %v1372
        %2424 = vmatprep.subr.bf16.mxu0 %v1382
        %2425 = vmatpush1.bf16.msra.mxu0 %v1381
        %2426 = vmatprep.subr.bf16.mxu0 %v1391
        %2427 = vmatpush1.bf16.msra.mxu0 %v1390
        %2428 = vmatprep.subr.bf16.mxu0 %v1400
        %2429 = vmatpush1.bf16.msra.mxu0 %v1399
        %2430 = vmatprep.subr.bf16.mxu0 %v1409
        %2431 = vmatpush1.bf16.msra.mxu0 %v1408
        %2432 = vmatprep.subr.bf16.mxu0 %v1418
        %2433 = vmatpush1.bf16.msra.mxu0 %v1417
        %2434 = vmatprep.subr.bf16.mxu0 %v1427
        %2435 = vmatpush1.bf16.msra.mxu0 %v1426
        %2436 = vmatprep.subr.bf16.mxu0 0
        %2437 = vmatpush1.bf16.msra.mxu0 0
        %2438 = vmatprep.subr.bf16.mxu0 0
        %2439 = vmatpush1.bf16.msra.mxu0 0
        %2440 = vmatprep.subr.bf16.mxu0 0
        %2441 = vmatpush1.bf16.msra.mxu0 0
        %2442 = vmatprep.subr.bf16.mxu0 0
        %2443 = vmatpush1.bf16.msra.mxu0 0
        %2444 = vmatprep.subr.bf16.mxu0 0
        %2445 = vmatpush1.bf16.msra.mxu0 0
        %2446 = vmatprep.subr.bf16.mxu0 0
        %2447 = vmatpush1.bf16.msra.mxu0 0
        %2448 = vmatprep.subr.bf16.mxu0 0
        %2449 = vmatpush1.bf16.msra.mxu0 0
        %2450 = vmatprep.subr.bf16.mxu0 0
        %2451 = vmatpush1.bf16.msra.mxu0 0
        %2452 = vmatprep.mubr.bf16.mxu0 0
        %2453 = vmatmul.mubr.bf16.gmra.mrb[0].mxu0 %v2419
        %v2454 = vpop.f32.mrb[0].mxu0
        %v2455 = vadd.f32 0.0, %v2454
        %v2456 = vpop.f32.mrb[0].mxu0
        %v2457 = vadd.f32 0.0, %v2456
        %v2458 = vpop.f32.mrb[0].mxu0
        %v2459 = vadd.f32 0.0, %v2458
        %v2460 = vpop.f32.mrb[0].mxu0
        %v2461 = vadd.f32 0.0, %v2460
        %2462 = vdwg.mxu0
        %2463 = vmatprep.subr.bf16.mxu0 %v1366
        %2464 = vmatpush1.bf16.msra.mxu0 %v1365
        %2465 = vmatprep.subr.bf16.mxu0 %v1375
        %2466 = vmatpush1.bf16.msra.mxu0 %v1374
        %2467 = vmatprep.subr.bf16.mxu0 %v1384
        %2468 = vmatpush1.bf16.msra.mxu0 %v1383
        %2469 = vmatprep.subr.bf16.mxu0 %v1393
        %2470 = vmatpush1.bf16.msra.mxu0 %v1392
        %2471 = vmatprep.subr.bf16.mxu0 %v1402
        %2472 = vmatpush1.bf16.msra.mxu0 %v1401
        %2473 = vmatprep.subr.bf16.mxu0 %v1411
        %2474 = vmatpush1.bf16.msra.mxu0 %v1410
        %2475 = vmatprep.subr.bf16.mxu0 %v1420
        %2476 = vmatpush1.bf16.msra.mxu0 %v1419
        %2477 = vmatprep.subr.bf16.mxu0 %v1429
        %2478 = vmatpush1.bf16.msra.mxu0 %v1428
        %2479 = vmatprep.subr.bf16.mxu0 0
        %2480 = vmatpush1.bf16.msra.mxu0 0
        %2481 = vmatprep.subr.bf16.mxu0 0
        %2482 = vmatpush1.bf16.msra.mxu0 0
        %2483 = vmatprep.subr.bf16.mxu0 0
        %2484 = vmatpush1.bf16.msra.mxu0 0
        %2485 = vmatprep.subr.bf16.mxu0 0
        %2486 = vmatpush1.bf16.msra.mxu0 0
        %2487 = vmatprep.subr.bf16.mxu0 0
        %2488 = vmatpush1.bf16.msra.mxu0 0
        %2489 = vmatprep.subr.bf16.mxu0 0
        %2490 = vmatpush1.bf16.msra.mxu0 0
        %2491 = vmatprep.subr.bf16.mxu0 0
        %2492 = vmatpush1.bf16.msra.mxu0 0
        %2493 = vmatprep.subr.bf16.mxu0 0
        %2494 = vmatpush1.bf16.msra.mxu0 0
        %2495 = vmatprep.mubr.bf16.mxu0 0
        %2496 = vmatmul.mubr.bf16.gmra.mrb[0].mxu0 %v2419
        %v2497 = vpop.f32.mrb[0].mxu0
        %v2498 = vadd.f32 0.0, %v2497
        %v2499 = vpop.f32.mrb[0].mxu0
        %v2500 = vadd.f32 0.0, %v2499
        %v2501 = vpop.f32.mrb[0].mxu0
        %v2502 = vadd.f32 0.0, %v2501
        %v2503 = vpop.f32.mrb[0].mxu0
        %v2504 = vadd.f32 0.0, %v2503
        %2505 = vdwg.mxu0
        %2506 = vmatprep.subr.bf16.mxu0 %v1368
        %2507 = vmatpush1.bf16.msra.mxu0 %v1367
        %2508 = vmatprep.subr.bf16.mxu0 %v1377
        %2509 = vmatpush1.bf16.msra.mxu0 %v1376
        %2510 = vmatprep.subr.bf16.mxu0 %v1386
        %2511 = vmatpush1.bf16.msra.mxu0 %v1385
        %2512 = vmatprep.subr.bf16.mxu0 %v1395
        %2513 = vmatpush1.bf16.msra.mxu0 %v1394
        %2514 = vmatprep.subr.bf16.mxu0 %v1404
        %2515 = vmatpush1.bf16.msra.mxu0 %v1403
        %2516 = vmatprep.subr.bf16.mxu0 %v1413
        %2517 = vmatpush1.bf16.msra.mxu0 %v1412
        %2518 = vmatprep.subr.bf16.mxu0 %v1422
        %2519 = vmatpush1.bf16.msra.mxu0 %v1421
        %2520 = vmatprep.subr.bf16.mxu0 %v1431
        %2521 = vmatpush1.bf16.msra.mxu0 %v1430
        %2522 = vmatprep.subr.bf16.mxu0 0
        %2523 = vmatpush1.bf16.msra.mxu0 0
        %2524 = vmatprep.subr.bf16.mxu0 0
        %2525 = vmatpush1.bf16.msra.mxu0 0
        %2526 = vmatprep.subr.bf16.mxu0 0
        %2527 = vmatpush1.bf16.msra.mxu0 0
        %2528 = vmatprep.subr.bf16.mxu0 0
        %2529 = vmatpush1.bf16.msra.mxu0 0
        %2530 = vmatprep.subr.bf16.mxu0 0
        %2531 = vmatpush1.bf16.msra.mxu0 0
        %2532 = vmatprep.subr.bf16.mxu0 0
        %2533 = vmatpush1.bf16.msra.mxu0 0
        %2534 = vmatprep.subr.bf16.mxu0 0
        %2535 = vmatpush1.bf16.msra.mxu0 0
        %2536 = vmatprep.subr.bf16.mxu0 0
        %2537 = vmatpush1.bf16.msra.mxu0 0
        %2538 = vmatprep.mubr.bf16.mxu0 0
        %2539 = vmatmul.mubr.bf16.gmra.mrb[0].mxu0 %v2419
        %v2540 = vpop.f32.mrb[0].mxu0
        %v2541 = vadd.f32 0.0, %v2540
        %v2542 = vpop.f32.mrb[0].mxu0
        %v2543 = vadd.f32 0.0, %v2542
        %v2544 = vpop.f32.mrb[0].mxu0
        %v2545 = vadd.f32 0.0, %v2544
        %v2546 = vpop.f32.mrb[0].mxu0
        %v2547 = vadd.f32 0.0, %v2546
        %2548 = vdwg.mxu0
        %2549 = vmatprep.subr.bf16.mxu0 %v1370
        %2550 = vmatpush1.bf16.msra.mxu0 %v1369
        %2551 = vmatprep.subr.bf16.mxu0 %v1379
        %2552 = vmatpush1.bf16.msra.mxu0 %v1378
        %2553 = vmatprep.subr.bf16.mxu0 %v1388
        %2554 = vmatpush1.bf16.msra.mxu0 %v1387
        %2555 = vmatprep.subr.bf16.mxu0 %v1397
        %2556 = vmatpush1.bf16.msra.mxu0 %v1396
        %2557 = vmatprep.subr.bf16.mxu0 %v1406
        %2558 = vmatpush1.bf16.msra.mxu0 %v1405
        %2559 = vmatprep.subr.bf16.mxu0 %v1415
        %2560 = vmatpush1.bf16.msra.mxu0 %v1414
        %2561 = vmatprep.subr.bf16.mxu0 %v1424
        %2562 = vmatpush1.bf16.msra.mxu0 %v1423
        %2563 = vmatprep.subr.bf16.mxu0 %v1433
        %2564 = vmatpush1.bf16.msra.mxu0 %v1432
        %2565 = vmatprep.subr.bf16.mxu0 0
        %2566 = vmatpush1.bf16.msra.mxu0 0
        %2567 = vmatprep.subr.bf16.mxu0 0
        %2568 = vmatpush1.bf16.msra.mxu0 0
        %2569 = vmatprep.subr.bf16.mxu0 0
        %2570 = vmatpush1.bf16.msra.mxu0 0
        %2571 = vmatprep.subr.bf16.mxu0 0
        %2572 = vmatpush1.bf16.msra.mxu0 0
        %2573 = vmatprep.subr.bf16.mxu0 0
        %2574 = vmatpush1.bf16.msra.mxu0 0
        %2575 = vmatprep.subr.bf16.mxu0 0
        %2576 = vmatpush1.bf16.msra.mxu0 0
        %2577 = vmatprep.subr.bf16.mxu0 0
        %2578 = vmatpush1.bf16.msra.mxu0 0
        %2579 = vmatprep.subr.bf16.mxu0 0
        %2580 = vmatpush1.bf16.msra.mxu0 0
        %2581 = vmatprep.mubr.bf16.mxu0 0
        %2582 = vmatmul.mubr.bf16.gmra.mrb[0].mxu0 %v2419
        %v2583 = vpop.f32.mrb[0].mxu0
        %v2584 = vadd.f32 0.0, %v2583
        %v2585 = vpop.f32.mrb[0].mxu0
        %v2586 = vadd.f32 0.0, %v2585
        %v2587 = vpop.f32.mrb[0].mxu0
        %v2588 = vadd.f32 0.0, %v2587
        %v2589 = vpop.f32.mrb[0].mxu0
        %v2590 = vadd.f32 0.0, %v2589
        %2591 = vdwg.mxu0
        %2592 = vmatprep.subr.bf16.mxu0 0
        %2593 = vmatpush1.bf16.msra.mxu0 %v1371
        %2594 = vmatprep.subr.bf16.mxu0 0
        %2595 = vmatpush1.bf16.msra.mxu0 %v1380
        %2596 = vmatprep.subr.bf16.mxu0 0
        %2597 = vmatpush1.bf16.msra.mxu0 %v1389
        %2598 = vmatprep.subr.bf16.mxu0 0
        %2599 = vmatpush1.bf16.msra.mxu0 %v1398
        %2600 = vmatprep.subr.bf16.mxu0 0
        %2601 = vmatpush1.bf16.msra.mxu0 %v1407
        %2602 = vmatprep.subr.bf16.mxu0 0
        %2603 = vmatpush1.bf16.msra.mxu0 %v1416
        %2604 = vmatprep.subr.bf16.mxu0 0
        %2605 = vmatpush1.bf16.msra.mxu0 %v1425
        %2606 = vmatprep.subr.bf16.mxu0 0
        %2607 = vmatpush1.bf16.msra.mxu0 %v1434
        %2608 = vmatprep.subr.bf16.mxu0 0
        %2609 = vmatpush1.bf16.msra.mxu0 0
        %2610 = vmatprep.subr.bf16.mxu0 0
        %2611 = vmatpush1.bf16.msra.mxu0 0
        %2612 = vmatprep.subr.bf16.mxu0 0
        %2613 = vmatpush1.bf16.msra.mxu0 0
        %2614 = vmatprep.subr.bf16.mxu0 0
        %2615 = vmatpush1.bf16.msra.mxu0 0
        %2616 = vmatprep.subr.bf16.mxu0 0
        %2617 = vmatpush1.bf16.msra.mxu0 0
        %2618 = vmatprep.subr.bf16.mxu0 0
        %2619 = vmatpush1.bf16.msra.mxu0 0
        %2620 = vmatprep.subr.bf16.mxu0 0
        %2621 = vmatpush1.bf16.msra.mxu0 0
        %2622 = vmatprep.subr.bf16.mxu0 0
        %2623 = vmatpush1.bf16.msra.mxu0 0
        %2624 = vmatprep.mubr.bf16.mxu0 0
        %2625 = vmatmul.mubr.bf16.gmra.mrb[0].mxu0 %v2419
        %v2626 = vpop.f32.mrb[0].mxu0
        %v2627 = vadd.f32 0.0, %v2626
        %v2628 = vpop.f32.mrb[0].mxu0
        %v2629 = vpop.f32.mrb[0].mxu0
        %v2630 = vadd.f32 0.0, %v2629
        %v2631 = vpop.f32.mrb[0].mxu0
        %2632 = vdwg.mxu0
        %v2633 = vsub.f32 %v1542, %v2455
        %v2634 = vsub.f32 %v1544, %v2457
        %v2635 = vsub.f32 %v1585, %v2498
        %v2636 = vsub.f32 %v1587, %v2500
        %v2637 = vsub.f32 %v1628, %v2541
        %v2638 = vsub.f32 %v1630, %v2543
        %v2639 = vsub.f32 %v1671, %v2584
        %v2640 = vsub.f32 %v1673, %v2586
        %v2641 = vsub.f32 %v1714, %v2627
        %v2642 = vsub.f32 %v1546, %v2459
        %v2643 = vsub.f32 %v1548, %v2461
        %v2644 = vsub.f32 %v1589, %v2502
        %v2645 = vsub.f32 %v1591, %v2504
        %v2646 = vsub.f32 %v1632, %v2545
        %v2647 = vsub.f32 %v1634, %v2547
        %v2648 = vsub.f32 %v1675, %v2588
        %v2649 = vsub.f32 %v1677, %v2590
        %v2650 = vsub.f32 %v1717, %v2630
        %v2651 = vstv %s2204
        %v2652 = vmul.f32 %v2651, %v2633
        %v2653 = vmul.f32 %v2651, %v2634
        %v2654 = vmul.f32 %v2651, %v2635
        %v2655 = vmul.f32 %v2651, %v2636
        %v2656 = vmul.f32 %v2651, %v2637
        %v2657 = vmul.f32 %v2651, %v2638
        %v2658 = vmul.f32 %v2651, %v2639
        %v2659 = vmul.f32 %v2651, %v2640
        %v2660 = vmul.f32 %v2651, %v2641
        %v2661 = vmul.f32 %v2651, %v2642
        %v2662 = vmul.f32 %v2651, %v2643
        %v2663 = vmul.f32 %v2651, %v2644
        %v2664 = vmul.f32 %v2651, %v2645
        %v2665 = vmul.f32 %v2651, %v2646
        %v2666 = vmul.f32 %v2651, %v2647
        %v2667 = vmul.f32 %v2651, %v2648
        %v2668 = vmul.f32 %v2651, %v2649
        %v2669 = vmul.f32 %v2651, %v2650
        %v2670 = vadd.f32 %v2186, %v2652
        %v2671 = vadd.f32 %v2187, %v2653
        %v2672 = vadd.f32 %v2188, %v2654
        %v2673 = vadd.f32 %v2189, %v2655
        %v2674 = vadd.f32 %v2190, %v2656
        %v2675 = vadd.f32 %v2191, %v2657
        %v2676 = vadd.f32 %v2192, %v2658
        %v2677 = vadd.f32 %v2193, %v2659
        %v2678 = vadd.f32 %v2194, %v2660
        %v2679 = vadd.f32 %v2195, %v2661
        %v2680 = vadd.f32 %v2196, %v2662
        %v2681 = vadd.f32 %v2197, %v2663
        %v2682 = vadd.f32 %v2198, %v2664
        %v2683 = vadd.f32 %v2199, %v2665
        %v2684 = vadd.f32 %v2200, %v2666
        %v2685 = vadd.f32 %v2201, %v2667
        %v2686 = vadd.f32 %v2202, %v2668
        %v2687 = vadd.f32 %v2203, %v2669
        %s2688 = sld [smem:[#allocation2 + $0x2]]
        %v2689 = vpack.c.bf16 %v2679, %v2670
        %v2690 = vpack.c.bf16 %v2680, %v2671
        %v2691 = vpack.c.bf16 %v2681, %v2672
        %v2692 = vpack.c.bf16 %v2682, %v2673
        %v2693 = vpack.c.bf16 %v2683, %v2674
        %v2694 = vpack.c.bf16 %v2684, %v2675
        %v2695 = vpack.c.bf16 %v2685, %v2676
        %v2696 = vpack.c.bf16 %v2686, %v2677
        %v2697 = vpack.c.bf16 %v2687, %v2678
        %2698 = vmatprep.subr.bf16.mxu0 0
        %2699 = vmatpush1.bf16.msra.mxu0 %v789
        %2700 = vmatprep.subr.bf16.mxu0 0
        %2701 = vmatpush1.bf16.msra.mxu0 %v790
        %2702 = vmatprep.subr.bf16.mxu0 0
        %2703 = vmatpush1.bf16.msra.mxu0 %v791
        %2704 = vmatprep.subr.bf16.mxu0 0
        %2705 = vmatpush1.bf16.msra.mxu0 %v792
        %2706 = vmatprep.subr.bf16.mxu0 0
        %2707 = vmatpush1.bf16.msra.mxu0 %v793
        %2708 = vmatprep.subr.bf16.mxu0 0
        %2709 = vmatpush1.bf16.msra.mxu0 %v794
        %2710 = vmatprep.subr.bf16.mxu0 0
        %2711 = vmatpush1.bf16.msra.mxu0 %v795
        %2712 = vmatprep.subr.bf16.mxu0 0
        %2713 = vmatpush1.bf16.msra.mxu0 %v796
        %2714 = vmatprep.subr.bf16.mxu0 0
        %2715 = vmatpush1.bf16.msra.mxu0 %v797
        %2716 = vmatprep.subr.bf16.mxu0 0
        %2717 = vmatpush1.bf16.msra.mxu0 %v798
        %2718 = vmatprep.subr.bf16.mxu0 0
        %2719 = vmatpush1.bf16.msra.mxu0 %v799
        %2720 = vmatprep.subr.bf16.mxu0 0
        %2721 = vmatpush1.bf16.msra.mxu0 %v800
        %2722 = vmatprep.subr.bf16.mxu0 0
        %2723 = vmatpush1.bf16.msra.mxu0 %v801
        %2724 = vmatprep.subr.bf16.mxu0 0
        %2725 = vmatpush1.bf16.msra.mxu0 %v802
        %2726 = vmatprep.subr.bf16.mxu0 0
        %2727 = vmatpush1.bf16.msra.mxu0 %v803
        %2728 = vmatprep.subr.bf16.mxu0 0
        %2729 = vmatpush1.bf16.msra.mxu0 %v804
        %2730 = vmatprep.mubr.bf16.mxu0 %v2690
        %2731 = vmatmul.mubr.bf16.gmra.mrb[0].mxu0 %v2689
        %v2732 = vpop.f32.mrb[0].mxu0
        %v2733 = vadd.f32 0.0, %v2732
        %v2734 = vpop.f32.mrb[0].mxu0
        %v2735 = vpop.f32.mrb[0].mxu0
        %v2736 = vadd.f32 0.0, %v2735
        %v2737 = vpop.f32.mrb[0].mxu0
        %2738 = vdwg.mxu0
        %2739 = vmatprep.subr.bf16.mxu0 0
        %2740 = vmatpush1.bf16.msra.mxu0 %v805
        %2741 = vmatprep.subr.bf16.mxu0 0
        %2742 = vmatpush1.bf16.msra.mxu0 %v806
        %2743 = vmatprep.subr.bf16.mxu0 0
        %2744 = vmatpush1.bf16.msra.mxu0 %v807
        %2745 = vmatprep.subr.bf16.mxu0 0
        %2746 = vmatpush1.bf16.msra.mxu0 %v808
        %2747 = vmatprep.subr.bf16.mxu0 0
        %2748 = vmatpush1.bf16.msra.mxu0 %v809
        %2749 = vmatprep.subr.bf16.mxu0 0
        %2750 = vmatpush1.bf16.msra.mxu0 %v810
        %2751 = vmatprep.subr.bf16.mxu0 0
        %2752 = vmatpush1.bf16.msra.mxu0 %v811
        %2753 = vmatprep.subr.bf16.mxu0 0
        %2754 = vmatpush1.bf16.msra.mxu0 %v812
        %2755 = vmatprep.subr.bf16.mxu0 0
        %2756 = vmatpush1.bf16.msra.mxu0 %v813
        %2757 = vmatprep.subr.bf16.mxu0 0
        %2758 = vmatpush1.bf16.msra.mxu0 %v814
        %2759 = vmatprep.subr.bf16.mxu0 0
        %2760 = vmatpush1.bf16.msra.mxu0 %v815
        %2761 = vmatprep.subr.bf16.mxu0 0
        %2762 = vmatpush1.bf16.msra.mxu0 %v816
        %2763 = vmatprep.subr.bf16.mxu0 0
        %2764 = vmatpush1.bf16.msra.mxu0 %v817
        %2765 = vmatprep.subr.bf16.mxu0 0
        %2766 = vmatpush1.bf16.msra.mxu0 %v818
        %2767 = vmatprep.subr.bf16.mxu0 0
        %2768 = vmatpush1.bf16.msra.mxu0 %v819
        %2769 = vmatprep.subr.bf16.mxu0 0
        %2770 = vmatpush1.bf16.msra.mxu0 %v820
        %2771 = vmatprep.mubr.bf16.mxu0 %v2692
        %2772 = vmatmul.mubr.bf16.gmra.mrb[0].mxu0 %v2691
        %v2773 = vpop.f32.mrb[0].mxu0
        %v2774 = vadd.f32 %v2733, %v2773
        %v2775 = vpop.f32.mrb[0].mxu0
        %v2776 = vpop.f32.mrb[0].mxu0
        %v2777 = vadd.f32 %v2736, %v2776
        %v2778 = vpop.f32.mrb[0].mxu0
        %2779 = vdwg.mxu0
        %2780 = vmatprep.subr.bf16.mxu0 0
        %2781 = vmatpush1.bf16.msra.mxu0 %v821
        %2782 = vmatprep.subr.bf16.mxu0 0
        %2783 = vmatpush1.bf16.msra.mxu0 %v822
        %2784 = vmatprep.subr.bf16.mxu0 0
        %2785 = vmatpush1.bf16.msra.mxu0 %v823
        %2786 = vmatprep.subr.bf16.mxu0 0
        %2787 = vmatpush1.bf16.msra.mxu0 %v824
        %2788 = vmatprep.subr.bf16.mxu0 0
        %2789 = vmatpush1.bf16.msra.mxu0 %v825
        %2790 = vmatprep.subr.bf16.mxu0 0
        %2791 = vmatpush1.bf16.msra.mxu0 %v826
        %2792 = vmatprep.subr.bf16.mxu0 0
        %2793 = vmatpush1.bf16.msra.mxu0 %v827
        %2794 = vmatprep.subr.bf16.mxu0 0
        %2795 = vmatpush1.bf16.msra.mxu0 %v828
        %2796 = vmatprep.subr.bf16.mxu0 0
        %2797 = vmatpush1.bf16.msra.mxu0 %v829
        %2798 = vmatprep.subr.bf16.mxu0 0
        %2799 = vmatpush1.bf16.msra.mxu0 %v830
        %2800 = vmatprep.subr.bf16.mxu0 0
        %2801 = vmatpush1.bf16.msra.mxu0 %v831
        %2802 = vmatprep.subr.bf16.mxu0 0
        %2803 = vmatpush1.bf16.msra.mxu0 %v832
        %2804 = vmatprep.subr.bf16.mxu0 0
        %2805 = vmatpush1.bf16.msra.mxu0 %v833
        %2806 = vmatprep.subr.bf16.mxu0 0
        %2807 = vmatpush1.bf16.msra.mxu0 %v834
        %2808 = vmatprep.subr.bf16.mxu0 0
        %2809 = vmatpush1.bf16.msra.mxu0 %v835
        %2810 = vmatprep.subr.bf16.mxu0 0
        %2811 = vmatpush1.bf16.msra.mxu0 %v836
        %2812 = vmatprep.mubr.bf16.mxu0 %v2694
        %2813 = vmatmul.mubr.bf16.gmra.mrb[0].mxu0 %v2693
        %v2814 = vpop.f32.mrb[0].mxu0
        %v2815 = vadd.f32 %v2774, %v2814
        %v2816 = vpop.f32.mrb[0].mxu0
        %v2817 = vpop.f32.mrb[0].mxu0
        %v2818 = vadd.f32 %v2777, %v2817
        %v2819 = vpop.f32.mrb[0].mxu0
        %2820 = vdwg.mxu0
        %2821 = vmatprep.subr.bf16.mxu0 0
        %2822 = vmatpush1.bf16.msra.mxu0 %v837
        %2823 = vmatprep.subr.bf16.mxu0 0
        %2824 = vmatpush1.bf16.msra.mxu0 %v838
        %2825 = vmatprep.subr.bf16.mxu0 0
        %2826 = vmatpush1.bf16.msra.mxu0 %v839
        %2827 = vmatprep.subr.bf16.mxu0 0
        %2828 = vmatpush1.bf16.msra.mxu0 %v840
        %2829 = vmatprep.subr.bf16.mxu0 0
        %2830 = vmatpush1.bf16.msra.mxu0 %v841
        %2831 = vmatprep.subr.bf16.mxu0 0
        %2832 = vmatpush1.bf16.msra.mxu0 %v842
        %2833 = vmatprep.subr.bf16.mxu0 0
        %2834 = vmatpush1.bf16.msra.mxu0 %v843
        %2835 = vmatprep.subr.bf16.mxu0 0
        %2836 = vmatpush1.bf16.msra.mxu0 %v844
        %2837 = vmatprep.subr.bf16.mxu0 0
        %2838 = vmatpush1.bf16.msra.mxu0 %v845
        %2839 = vmatprep.subr.bf16.mxu0 0
        %2840 = vmatpush1.bf16.msra.mxu0 %v846
        %2841 = vmatprep.subr.bf16.mxu0 0
        %2842 = vmatpush1.bf16.msra.mxu0 %v847
        %2843 = vmatprep.subr.bf16.mxu0 0
        %2844 = vmatpush1.bf16.msra.mxu0 %v848
        %2845 = vmatprep.subr.bf16.mxu0 0
        %2846 = vmatpush1.bf16.msra.mxu0 %v849
        %2847 = vmatprep.subr.bf16.mxu0 0
        %2848 = vmatpush1.bf16.msra.mxu0 %v850
        %2849 = vmatprep.subr.bf16.mxu0 0
        %2850 = vmatpush1.bf16.msra.mxu0 %v851
        %2851 = vmatprep.subr.bf16.mxu0 0
        %2852 = vmatpush1.bf16.msra.mxu0 %v852
        %2853 = vmatprep.mubr.bf16.mxu0 %v2696
        %2854 = vmatmul.mubr.bf16.gmra.mrb[0].mxu0 %v2695
        %v2855 = vpop.f32.mrb[0].mxu0
        %v2856 = vadd.f32 %v2815, %v2855
        %v2857 = vpop.f32.mrb[0].mxu0
        %v2858 = vpop.f32.mrb[0].mxu0
        %v2859 = vadd.f32 %v2818, %v2858
        %v2860 = vpop.f32.mrb[0].mxu0
        %2861 = vdwg.mxu0
        %2862 = vmatprep.subr.bf16.mxu0 0
        %2863 = vmatpush1.bf16.msra.mxu0 %v853
        %2864 = vmatprep.subr.bf16.mxu0 0
        %2865 = vmatpush1.bf16.msra.mxu0 %v854
        %2866 = vmatprep.subr.bf16.mxu0 0
        %2867 = vmatpush1.bf16.msra.mxu0 %v855
        %2868 = vmatprep.subr.bf16.mxu0 0
        %2869 = vmatpush1.bf16.msra.mxu0 %v856
        %2870 = vmatprep.subr.bf16.mxu0 0
        %2871 = vmatpush1.bf16.msra.mxu0 %v857
        %2872 = vmatprep.subr.bf16.mxu0 0
        %2873 = vmatpush1.bf16.msra.mxu0 %v858
        %2874 = vmatprep.subr.bf16.mxu0 0
        %2875 = vmatpush1.bf16.msra.mxu0 %v859
        %2876 = vmatprep.subr.bf16.mxu0 0
        %2877 = vmatpush1.bf16.msra.mxu0 %v860
        %2878 = vmatprep.subr.bf16.mxu0 0
        %2879 = vmatpush1.bf16.msra.mxu0 0
        %2880 = vmatprep.subr.bf16.mxu0 0
        %2881 = vmatpush1.bf16.msra.mxu0 0
        %2882 = vmatprep.subr.bf16.mxu0 0
        %2883 = vmatpush1.bf16.msra.mxu0 0
        %2884 = vmatprep.subr.bf16.mxu0 0
        %2885 = vmatpush1.bf16.msra.mxu0 0
        %2886 = vmatprep.subr.bf16.mxu0 0
        %2887 = vmatpush1.bf16.msra.mxu0 0
        %2888 = vmatprep.subr.bf16.mxu0 0
        %2889 = vmatpush1.bf16.msra.mxu0 0
        %2890 = vmatprep.subr.bf16.mxu0 0
        %2891 = vmatpush1.bf16.msra.mxu0 0
        %2892 = vmatprep.subr.bf16.mxu0 0
        %2893 = vmatpush1.bf16.msra.mxu0 0
        %2894 = vmatprep.mubr.bf16.mxu0 0
        %2895 = vmatmul.mubr.bf16.gmra.mrb[0].mxu0 %v2697
        %v2896 = vpop.f32.mrb[0].mxu0
        %v2897 = vadd.f32 %v2856, %v2896
        %v2898 = vpop.f32.mrb[0].mxu0
        %v2899 = vpop.f32.mrb[0].mxu0
        %v2900 = vadd.f32 %v2859, %v2899
        %v2901 = vpop.f32.mrb[0].mxu0
        %2902 = vdwg.mxu0
        %v2903 = vpack.c.bf16 %v2900, %v2897
        %2904 = vmatprep.subr.bf16.mxu0 %v1364
        %2905 = vmatpush1.bf16.msra.mxu0 %v1363
        %2906 = vmatprep.subr.bf16.mxu0 %v1373
        %2907 = vmatpush1.bf16.msra.mxu0 %v1372
        %2908 = vmatprep.subr.bf16.mxu0 %v1382
        %2909 = vmatpush1.bf16.msra.mxu0 %v1381
        %2910 = vmatprep.subr.bf16.mxu0 %v1391
        %2911 = vmatpush1.bf16.msra.mxu0 %v1390
        %2912 = vmatprep.subr.bf16.mxu0 %v1400
        %2913 = vmatpush1.bf16.msra.mxu0 %v1399
        %2914 = vmatprep.subr.bf16.mxu0 %v1409
        %2915 = vmatpush1.bf16.msra.mxu0 %v1408
        %2916 = vmatprep.subr.bf16.mxu0 %v1418
        %2917 = vmatpush1.bf16.msra.mxu0 %v1417
        %2918 = vmatprep.subr.bf16.mxu0 %v1427
        %2919 = vmatpush1.bf16.msra.mxu0 %v1426
        %2920 = vmatprep.subr.bf16.mxu0 0
        %2921 = vmatpush1.bf16.msra.mxu0 0
        %2922 = vmatprep.subr.bf16.mxu0 0
        %2923 = vmatpush1.bf16.msra.mxu0 0
        %2924 = vmatprep.subr.bf16.mxu0 0
        %2925 = vmatpush1.bf16.msra.mxu0 0
        %2926 = vmatprep.subr.bf16.mxu0 0
        %2927 = vmatpush1.bf16.msra.mxu0 0
        %2928 = vmatprep.subr.bf16.mxu0 0
        %2929 = vmatpush1.bf16.msra.mxu0 0
        %2930 = vmatprep.subr.bf16.mxu0 0
        %2931 = vmatpush1.bf16.msra.mxu0 0
        %2932 = vmatprep.subr.bf16.mxu0 0
        %2933 = vmatpush1.bf16.msra.mxu0 0
        %2934 = vmatprep.subr.bf16.mxu0 0
        %2935 = vmatpush1.bf16.msra.mxu0 0
        %2936 = vmatprep.mubr.bf16.mxu0 0
        %2937 = vmatmul.mubr.bf16.gmra.mrb[0].mxu0 %v2903
        %v2938 = vpop.f32.mrb[0].mxu0
        %v2939 = vadd.f32 0.0, %v2938
        %v2940 = vpop.f32.mrb[0].mxu0
        %v2941 = vadd.f32 0.0, %v2940
        %v2942 = vpop.f32.mrb[0].mxu0
        %v2943 = vadd.f32 0.0, %v2942
        %v2944 = vpop.f32.mrb[0].mxu0
        %v2945 = vadd.f32 0.0, %v2944
        %2946 = vdwg.mxu0
        %2947 = vmatprep.subr.bf16.mxu0 %v1366
        %2948 = vmatpush1.bf16.msra.mxu0 %v1365
        %2949 = vmatprep.subr.bf16.mxu0 %v1375
        %2950 = vmatpush1.bf16.msra.mxu0 %v1374
        %2951 = vmatprep.subr.bf16.mxu0 %v1384
        %2952 = vmatpush1.bf16.msra.mxu0 %v1383
        %2953 = vmatprep.subr.bf16.mxu0 %v1393
        %2954 = vmatpush1.bf16.msra.mxu0 %v1392
        %2955 = vmatprep.subr.bf16.mxu0 %v1402
        %2956 = vmatpush1.bf16.msra.mxu0 %v1401
        %2957 = vmatprep.subr.bf16.mxu0 %v1411
        %2958 = vmatpush1.bf16.msra.mxu0 %v1410
        %2959 = vmatprep.subr.bf16.mxu0 %v1420
        %2960 = vmatpush1.bf16.msra.mxu0 %v1419
        %2961 = vmatprep.subr.bf16.mxu0 %v1429
        %2962 = vmatpush1.bf16.msra.mxu0 %v1428
        %2963 = vmatprep.subr.bf16.mxu0 0
        %2964 = vmatpush1.bf16.msra.mxu0 0
        %2965 = vmatprep.subr.bf16.mxu0 0
        %2966 = vmatpush1.bf16.msra.mxu0 0
        %2967 = vmatprep.subr.bf16.mxu0 0
        %2968 = vmatpush1.bf16.msra.mxu0 0
        %2969 = vmatprep.subr.bf16.mxu0 0
        %2970 = vmatpush1.bf16.msra.mxu0 0
        %2971 = vmatprep.subr.bf16.mxu0 0
        %2972 = vmatpush1.bf16.msra.mxu0 0
        %2973 = vmatprep.subr.bf16.mxu0 0
        %2974 = vmatpush1.bf16.msra.mxu0 0
        %2975 = vmatprep.subr.bf16.mxu0 0
        %2976 = vmatpush1.bf16.msra.mxu0 0
        %2977 = vmatprep.subr.bf16.mxu0 0
        %2978 = vmatpush1.bf16.msra.mxu0 0
        %2979 = vmatprep.mubr.bf16.mxu0 0
        %2980 = vmatmul.mubr.bf16.gmra.mrb[0].mxu0 %v2903
        %v2981 = vpop.f32.mrb[0].mxu0
        %v2982 = vadd.f32 0.0, %v2981
        %v2983 = vpop.f32.mrb[0].mxu0
        %v2984 = vadd.f32 0.0, %v2983
        %v2985 = vpop.f32.mrb[0].mxu0
        %v2986 = vadd.f32 0.0, %v2985
        %v2987 = vpop.f32.mrb[0].mxu0
        %v2988 = vadd.f32 0.0, %v2987
        %2989 = vdwg.mxu0
        %2990 = vmatprep.subr.bf16.mxu0 %v1368
        %2991 = vmatpush1.bf16.msra.mxu0 %v1367
        %2992 = vmatprep.subr.bf16.mxu0 %v1377
        %2993 = vmatpush1.bf16.msra.mxu0 %v1376
        %2994 = vmatprep.subr.bf16.mxu0 %v1386
        %2995 = vmatpush1.bf16.msra.mxu0 %v1385
        %2996 = vmatprep.subr.bf16.mxu0 %v1395
        %2997 = vmatpush1.bf16.msra.mxu0 %v1394
        %2998 = vmatprep.subr.bf16.mxu0 %v1404
        %2999 = vmatpush1.bf16.msra.mxu0 %v1403
        %3000 = vmatprep.subr.bf16.mxu0 %v1413
        %3001 = vmatpush1.bf16.msra.mxu0 %v1412
        %3002 = vmatprep.subr.bf16.mxu0 %v1422
        %3003 = vmatpush1.bf16.msra.mxu0 %v1421
        %3004 = vmatprep.subr.bf16.mxu0 %v1431
        %3005 = vmatpush1.bf16.msra.mxu0 %v1430
        %3006 = vmatprep.subr.bf16.mxu0 0
        %3007 = vmatpush1.bf16.msra.mxu0 0
        %3008 = vmatprep.subr.bf16.mxu0 0
        %3009 = vmatpush1.bf16.msra.mxu0 0
        %3010 = vmatprep.subr.bf16.mxu0 0
        %3011 = vmatpush1.bf16.msra.mxu0 0
        %3012 = vmatprep.subr.bf16.mxu0 0
        %3013 = vmatpush1.bf16.msra.mxu0 0
        %3014 = vmatprep.subr.bf16.mxu0 0
        %3015 = vmatpush1.bf16.msra.mxu0 0
        %3016 = vmatprep.subr.bf16.mxu0 0
        %3017 = vmatpush1.bf16.msra.mxu0 0
        %3018 = vmatprep.subr.bf16.mxu0 0
        %3019 = vmatpush1.bf16.msra.mxu0 0
        %3020 = vmatprep.subr.bf16.mxu0 0
        %3021 = vmatpush1.bf16.msra.mxu0 0
        %3022 = vmatprep.mubr.bf16.mxu0 0
        %3023 = vmatmul.mubr.bf16.gmra.mrb[0].mxu0 %v2903
        %v3024 = vpop.f32.mrb[0].mxu0
        %v3025 = vadd.f32 0.0, %v3024
        %v3026 = vpop.f32.mrb[0].mxu0
        %v3027 = vadd.f32 0.0, %v3026
        %v3028 = vpop.f32.mrb[0].mxu0
        %v3029 = vadd.f32 0.0, %v3028
        %v3030 = vpop.f32.mrb[0].mxu0
        %v3031 = vadd.f32 0.0, %v3030
        %3032 = vdwg.mxu0
        %3033 = vmatprep.subr.bf16.mxu0 %v1370
        %3034 = vmatpush1.bf16.msra.mxu0 %v1369
        %3035 = vmatprep.subr.bf16.mxu0 %v1379
        %3036 = vmatpush1.bf16.msra.mxu0 %v1378
        %3037 = vmatprep.subr.bf16.mxu0 %v1388
        %3038 = vmatpush1.bf16.msra.mxu0 %v1387
        %3039 = vmatprep.subr.bf16.mxu0 %v1397
        %3040 = vmatpush1.bf16.msra.mxu0 %v1396
        %3041 = vmatprep.subr.bf16.mxu0 %v1406
        %3042 = vmatpush1.bf16.msra.mxu0 %v1405
        %3043 = vmatprep.subr.bf16.mxu0 %v1415
        %3044 = vmatpush1.bf16.msra.mxu0 %v1414
        %3045 = vmatprep.subr.bf16.mxu0 %v1424
        %3046 = vmatpush1.bf16.msra.mxu0 %v1423
        %3047 = vmatprep.subr.bf16.mxu0 %v1433
        %3048 = vmatpush1.bf16.msra.mxu0 %v1432
        %3049 = vmatprep.subr.bf16.mxu0 0
        %3050 = vmatpush1.bf16.msra.mxu0 0
        %3051 = vmatprep.subr.bf16.mxu0 0
        %3052 = vmatpush1.bf16.msra.mxu0 0
        %3053 = vmatprep.subr.bf16.mxu0 0
        %3054 = vmatpush1.bf16.msra.mxu0 0
        %3055 = vmatprep.subr.bf16.mxu0 0
        %3056 = vmatpush1.bf16.msra.mxu0 0
        %3057 = vmatprep.subr.bf16.mxu0 0
        %3058 = vmatpush1.bf16.msra.mxu0 0
        %3059 = vmatprep.subr.bf16.mxu0 0
        %3060 = vmatpush1.bf16.msra.mxu0 0
        %3061 = vmatprep.subr.bf16.mxu0 0
        %3062 = vmatpush1.bf16.msra.mxu0 0
        %3063 = vmatprep.subr.bf16.mxu0 0
        %3064 = vmatpush1.bf16.msra.mxu0 0
        %3065 = vmatprep.mubr.bf16.mxu0 0
        %3066 = vmatmul.mubr.bf16.gmra.mrb[0].mxu0 %v2903
        %v3067 = vpop.f32.mrb[0].mxu0
        %v3068 = vadd.f32 0.0, %v3067
        %v3069 = vpop.f32.mrb[0].mxu0
        %v3070 = vadd.f32 0.0, %v3069
        %v3071 = vpop.f32.mrb[0].mxu0
        %v3072 = vadd.f32 0.0, %v3071
        %v3073 = vpop.f32.mrb[0].mxu0
        %v3074 = vadd.f32 0.0, %v3073
        %3075 = vdwg.mxu0
        %3076 = vmatprep.subr.bf16.mxu0 0
        %3077 = vmatpush1.bf16.msra.mxu0 %v1371
        %3078 = vmatprep.subr.bf16.mxu0 0
        %3079 = vmatpush1.bf16.msra.mxu0 %v1380
        %3080 = vmatprep.subr.bf16.mxu0 0
        %3081 = vmatpush1.bf16.msra.mxu0 %v1389
        %3082 = vmatprep.subr.bf16.mxu0 0
        %3083 = vmatpush1.bf16.msra.mxu0 %v1398
        %3084 = vmatprep.subr.bf16.mxu0 0
        %3085 = vmatpush1.bf16.msra.mxu0 %v1407
        %3086 = vmatprep.subr.bf16.mxu0 0
        %3087 = vmatpush1.bf16.msra.mxu0 %v1416
        %3088 = vmatprep.subr.bf16.mxu0 0
        %3089 = vmatpush1.bf16.msra.mxu0 %v1425
        %3090 = vmatprep.subr.bf16.mxu0 0
        %3091 = vmatpush1.bf16.msra.mxu0 %v1434
        %3092 = vmatprep.subr.bf16.mxu0 0
        %3093 = vmatpush1.bf16.msra.mxu0 0
        %3094 = vmatprep.subr.bf16.mxu0 0
        %3095 = vmatpush1.bf16.msra.mxu0 0
        %3096 = vmatprep.subr.bf16.mxu0 0
        %3097 = vmatpush1.bf16.msra.mxu0 0
        %3098 = vmatprep.subr.bf16.mxu0 0
        %3099 = vmatpush1.bf16.msra.mxu0 0
        %3100 = vmatprep.subr.bf16.mxu0 0
        %3101 = vmatpush1.bf16.msra.mxu0 0
        %3102 = vmatprep.subr.bf16.mxu0 0
        %3103 = vmatpush1.bf16.msra.mxu0 0
        %3104 = vmatprep.subr.bf16.mxu0 0
        %3105 = vmatpush1.bf16.msra.mxu0 0
        %3106 = vmatprep.subr.bf16.mxu0 0
        %3107 = vmatpush1.bf16.msra.mxu0 0
        %3108 = vmatprep.mubr.bf16.mxu0 0
        %3109 = vmatmul.mubr.bf16.gmra.mrb[0].mxu0 %v2903
        %v3110 = vpop.f32.mrb[0].mxu0
        %v3111 = vadd.f32 0.0, %v3110
        %v3112 = vpop.f32.mrb[0].mxu0
        %v3113 = vpop.f32.mrb[0].mxu0
        %v3114 = vadd.f32 0.0, %v3113
        %v3115 = vpop.f32.mrb[0].mxu0
        %3116 = vdwg.mxu0
        %v3117 = vsub.f32 %v1542, %v2939
        %v3118 = vsub.f32 %v1544, %v2941
        %v3119 = vsub.f32 %v1585, %v2982
        %v3120 = vsub.f32 %v1587, %v2984
        %v3121 = vsub.f32 %v1628, %v3025
        %v3122 = vsub.f32 %v1630, %v3027
        %v3123 = vsub.f32 %v1671, %v3068
        %v3124 = vsub.f32 %v1673, %v3070
        %v3125 = vsub.f32 %v1714, %v3111
        %v3126 = vsub.f32 %v1546, %v2943
        %v3127 = vsub.f32 %v1548, %v2945
        %v3128 = vsub.f32 %v1589, %v2986
        %v3129 = vsub.f32 %v1591, %v2988
        %v3130 = vsub.f32 %v1632, %v3029
        %v3131 = vsub.f32 %v1634, %v3031
        %v3132 = vsub.f32 %v1675, %v3072
        %v3133 = vsub.f32 %v1677, %v3074
        %v3134 = vsub.f32 %v1717, %v3114
        %v3135 = vstv %s2688
        %v3136 = vmul.f32 %v3135, %v3117
        %v3137 = vmul.f32 %v3135, %v3118
        %v3138 = vmul.f32 %v3135, %v3119
        %v3139 = vmul.f32 %v3135, %v3120
        %v3140 = vmul.f32 %v3135, %v3121
        %v3141 = vmul.f32 %v3135, %v3122
        %v3142 = vmul.f32 %v3135, %v3123
        %v3143 = vmul.f32 %v3135, %v3124
        %v3144 = vmul.f32 %v3135, %v3125
        %v3145 = vmul.f32 %v3135, %v3126
        %v3146 = vmul.f32 %v3135, %v3127
        %v3147 = vmul.f32 %v3135, %v3128
        %v3148 = vmul.f32 %v3135, %v3129
        %v3149 = vmul.f32 %v3135, %v3130
        %v3150 = vmul.f32 %v3135, %v3131
        %v3151 = vmul.f32 %v3135, %v3132
        %v3152 = vmul.f32 %v3135, %v3133
        %v3153 = vmul.f32 %v3135, %v3134
        %v3154 = vadd.f32 %v2670, %v3136
        %v3155 = vadd.f32 %v2671, %v3137
        %v3156 = vadd.f32 %v2672, %v3138
        %v3157 = vadd.f32 %v2673, %v3139
        %v3158 = vadd.f32 %v2674, %v3140
        %v3159 = vadd.f32 %v2675, %v3141
        %v3160 = vadd.f32 %v2676, %v3142
        %v3161 = vadd.f32 %v2677, %v3143
        %v3162 = vadd.f32 %v2678, %v3144
        %v3163 = vadd.f32 %v2679, %v3145
        %v3164 = vadd.f32 %v2680, %v3146
        %v3165 = vadd.f32 %v2681, %v3147
        %v3166 = vadd.f32 %v2682, %v3148
        %v3167 = vadd.f32 %v2683, %v3149
        %v3168 = vadd.f32 %v2684, %v3150
        %v3169 = vadd.f32 %v2685, %v3151
        %v3170 = vadd.f32 %v2686, %v3152
        %v3171 = vadd.f32 %v2687, %v3153
        %3172 = vst [vmem:[%s218] sm:$0xff] %v3154
        %3173 = vst [vmem:[%s218 + $0x8] sm:$0xff] %v3155
        %3174 = vst [vmem:[%s218 + $0x10] sm:$0xff] %v3156
        %3175 = vst [vmem:[%s218 + $0x18] sm:$0xff] %v3157
        %3176 = vst [vmem:[%s218 + $0x20] sm:$0xff] %v3158
        %3177 = vst [vmem:[%s218 + $0x28] sm:$0xff] %v3159
        %3178 = vst [vmem:[%s218 + $0x30] sm:$0xff] %v3160
        %3179 = vst [vmem:[%s218 + $0x38] sm:$0xff] %v3161
        %3180 = vst [vmem:[%s218 + $0x40] sm:$0xff] %v3162
        %3181 = vst [vmem:[%s218 + $0x48] sm:$0xff] %v3163
        %3182 = vst [vmem:[%s218 + $0x50] sm:$0xff] %v3164
        %3183 = vst [vmem:[%s218 + $0x58] sm:$0xff] %v3165
        %3184 = vst [vmem:[%s218 + $0x60] sm:$0xff] %v3166
        %3185 = vst [vmem:[%s218 + $0x68] sm:$0xff] %v3167
        %3186 = vst [vmem:[%s218 + $0x70] sm:$0xff] %v3168
        %3187 = vst [vmem:[%s218 + $0x78] sm:$0xff] %v3169
        %3188 = vst [vmem:[%s218 + $0x80] sm:$0xff] %v3170
        %3189 = vst [vmem:[%s218 + $0x88] sm:$0xff] %v3171
        %s3190 = smul.u32 2, %s16
        %p3191 = scmp.lt.s32.totalorder %s3190, 3
        %s3192 = scalar_select %p3191, %s3190, 3
        %s3193 = smul.addr %s3192, 9
        %s3194 = smul.addr %s3193, 8
        %s3195 = scalar_lea.vmem %s4, %s3194
        // Predicated region
        $region41: #{drtransnet_forward.1} parent=35 // pred_check
          %p3196 = pneg %p123
        $region42: #{drtransnet_forward.1} parent=35 // pred_check_branch
          %3198 = sbr.rel (%p3196) target = $region44
        $region43: #{drtransnet_forward.1} parent=35 // pred_region
          %s3199 = smul.u32 2, %s16
        $region44: #{drtransnet_forward.1} parent=35 // pred_fallthru
          _
      $region36: #{drtransnet_forward.1} parent=5 // pred_fallthru
        _
      %p3200 = scmp.le.s32.totalorder 2, %s11
      // Predicated region
      $region45: #{drtransnet_forward.1} parent=5 // pred_check
        %p3201 = pneg %p3200
      $region46: #{drtransnet_forward.1} parent=5 // pred_check_branch
        %3203 = sbr.rel (%p3201) target = $region48
      $region47: #{drtransnet_forward.1} parent=5 // pred_region
        %s3204 = ssub.s32 %s11, 2
        // Predicated region
        $region49: #{drtransnet_forward.1} parent=47 // pred_check
          %p3205 = pneg %p129
        $region50: #{drtransnet_forward.1} parent=47 // pred_check_branch
          %3207 = sbr.rel (%p3205) target = $region52
        $region51: #{drtransnet_forward.1} parent=47 // pred_region
          %s3208 = smul.u32 2, %s17
          %p3209 = scmp.lt.s32.totalorder %s3208, 3
          %s3210 = scalar_select %p3209, %s3208, 3
          %s3211 = smul.addr %s3210, 9
          %s3212 = smul.addr %s3211, 8
          %s3213 = scalar_lea.vmem %s4, %s3212
        $region52: #{drtransnet_forward.1} parent=47 // pred_fallthru
          _
      $region48: #{drtransnet_forward.1} parent=5 // pred_fallthru
        _
    $region6: #{drtransnet_forward.1} parent=1 // loop_footer
      %s15 = sadd.s32 1, %s11
    $region7: #{drtransnet_forward.1} parent=1 // loop_footer_branch
      %10 = sbr.rel target = $region3
    $region8: #{drtransnet_forward.1} parent=1 // loop_exit
      _
    %3214 = vsyncpa [#allocation3], 1
    %s3215 = scalar_lea.sflag [#allocation3], 1
    %3216 = vsyncpa %s3215, 1

</llo_original>
